<compile_context>
chip_gen: v6e
topology: v6e:2x2x1
jax: 0.10.0
libtpu: 0.0.40
codegen_flags: <defaults>
</compile_context>

<pallas_src>
import math

import jax
import jax.numpy as jnp
from jax.experimental import pallas as pl
from jax.experimental.pallas import tpu as pltpu

_BN_EPS = 1e-5
_LANE = 128
_SUBLANE = 8

_FUSED_WEIGHT_KEYS = ("w_x", "w_h", "b", "w_kv", "pe_kv", "w_q", "w_o", "w_ac",
                      "seg", "segt", "vec")


def _round_up(n, m):
    return ((n + m - 1) // m) * m


def _elu(v):
    # clamp the exp argument so the discarded branch never produces inf
    return jnp.where(v > 0, v, jnp.exp(jnp.minimum(v, 0.0)) - 1.0)


# ------------------------------ the fused sequence kernel ------------------------------

def _larnn_seq_kernel(x_ref, h0_ref, c0_ref, win0_ref,
                      w_x_ref, w_h_ref, b_ref, w_kv_ref, pe_kv_ref,
                      w_q_ref, w_o_ref, w_ac_ref, seg_ref, segt_ref, vec_ref,
                      hid_ref, fin_ref, fwin_ref,
                      h_scr, c_scr, win_scr):
    f32 = jnp.float32
    mxu = w_x_ref.dtype                       # bf16 weights by default, f32 accumulation
    W, Bb, Hp = win_scr.shape
    heads = seg_ref.shape[-1]
    t = pl.program_id(1)

    # ---- carried state: initialize once per batch block (t == 0) ----------------------
    @pl.when(t == 0)
    def _init():
        h_scr[...] = h0_ref[...]
        c_scr[...] = c0_ref[...]
        win_scr[...] = win0_ref[...]

    h = h_scr[...]                            # (Bb, Hp) f32
    c = c_scr[...]                            # (Bb, Hp) f32
    x = x_ref[0]                              # (Bb, Ip) mxu dtype
    win = win_scr[...]                        # (W, Bb, Hp) mxu dtype, oldest cell first

    # ---- fused projection of x and h (two dots, no lane concat) -----------------------
    # lane segments: [query pre-act (Hp) | iv | fg | ig | og], bias slab pre-summed on host
    fused = (jnp.dot(x, w_x_ref[...], preferred_element_type=f32)
             + jnp.dot(h.astype(mxu), w_h_ref[...], preferred_element_type=f32)
             + b_ref[...])
    q0 = _elu(fused[:, :Hp])                  # (Bb, Hp)
    pre_xh = fused[:, Hp:]                    # Wx*x + Wh*h + (b_ih + b_ac + folded BN shift)

    # ---- K/V projection of the past-cell window (PE + biases precomputed on host) -----
    kv = jnp.dot(win.reshape(W * Bb, Hp), w_kv_ref[...],
                 preferred_element_type=f32).reshape(W, Bb, 2 * Hp)
    kv = _elu(kv + pe_kv_ref[...][:, None, :])
    k = kv[:, :, :Hp]                         # (W, Bb, Hp)
    v = kv[:, :, Hp:]                         # (W, Bb, Hp)

    # ---- Q projection (1/sqrt(dk) softmax scale folded into w_q / b_q) ----------------
    q = jnp.dot(q0.astype(mxu), w_q_ref[...], preferred_element_type=f32) + vec_ref[0:1, :]

    # ---- multi-headed attention: one softmax pass over all heads ----------------------
    prod = q[None, :, :] * k                                            # (W, Bb, Hp) f32
    s = jnp.dot(prod.reshape(W * Bb, Hp).astype(mxu), seg_ref[...],
                preferred_element_type=f32).reshape(W, Bb, heads)       # (W, Bb, heads)
    s = s - jnp.max(s, axis=0, keepdims=True)
    p = jnp.exp(s)
    p = p * pl.reciprocal(jnp.sum(p, axis=0, keepdims=True), approx=True)
    p_full = jnp.dot(p.reshape(W * Bb, heads).astype(mxu), segt_ref[...],
                     preferred_element_type=f32).reshape(W, Bb, Hp)
    ctx = jnp.sum(p_full * v, axis=0)                                   # (Bb, Hp)

    attn = _elu(jnp.dot(ctx.astype(mxu), w_o_ref[...], preferred_element_type=f32)
                + vec_ref[1:2, :])
    # attention-result BN (applied AFTER the ELU in the reference) is an eval-mode affine
    # folded into w_ac / the gate-bias slab on the host -> exact.

    # ---- residual mode: pre = Wx*x + Wh*h + Wa*BN(elu(mha)) + b ------------------------
    pre = pre_xh + jnp.dot(attn.astype(mxu), w_ac_ref[...], preferred_element_type=f32)
    # (batch_norm_pre_activation is computed-and-discarded in the reference module.)

    input_values = jnp.tanh(pre[:, :Hp])
    gates = jax.nn.sigmoid(pre[:, Hp:])
    forget_gate = gates[:, :Hp]
    input_gate = gates[:, Hp:2 * Hp]
    output_gate = gates[:, 2 * Hp:]

    # vec rows: [b_q, b_o, bn_cell scale, bn_cell shift, bn_post scale, bn_post shift]
    cell = vec_ref[2:3, :] * (input_values * input_gate + c * forget_gate) + vec_ref[3:4, :]
    hidden = vec_ref[4:5, :] * (output_gate * _elu(cell)) + vec_ref[5:6, :]

    # ---- carry state + slide the attention window (deque: drop oldest, append newest) -
    h_scr[...] = hidden
    c_scr[...] = cell
    cell_mxu = cell.astype(mxu)
    if W > 1:
        win_scr[0:W - 1] = win[1:W]
    win_scr[W - 1] = cell_mxu

    hid_ref[0] = hidden                       # lane-dense store (Hp is a multiple of 128)

    @pl.when(t == pl.num_programs(1) - 1)
    def _finalize():
        fin_ref[0] = hidden
        fin_ref[1] = cell
        if W > 1:
            fwin_ref[0:W - 1] = win[1:W]
        fwin_ref[W - 1] = cell_mxu


# --------------------------------- host-side wrapper -----------------------------------

def _vmem_budget_bytes(fused, Bb, W, Hp, Ip):
    """Resident weights + (double-buffered) streamed/resident blocks + scratch, with 2x
    headroom, clamped to v7x's 64 MiB/TC physical VMEM."""
    mxu_b = jnp.dtype(fused["mxu_dtype"]).itemsize
    weights = sum(int(fused[k].size) * fused[k].dtype.itemsize for k in _FUSED_WEIGHT_KEYS)
    stream = Bb * Ip * mxu_b + Bb * Hp * 4                       # x_t in + hidden_t out
    resident_io = (2 * Bb * Hp * 4 + W * Bb * Hp * mxu_b         # h0, c0, win0
                   + 2 * Bb * Hp * 4 + W * Bb * Hp * mxu_b)      # final state, final window
    scratch = 2 * Bb * Hp * 4 + W * Bb * Hp * mxu_b
    est = 2 * (weights + stream + resident_io) + scratch
    return int(min(64 << 20, max(16 << 20, 2 * est)))


def larnn_sequence_forward(xs, h0, c0, win0, fused, *, batch_block=None):
    """Run the LARNN recurrence over a whole sequence in a single pallas_call.

    xs:   (T, B, input_size), h0/c0: (B, H) initial hidden/cell,
    win0: (W, B, H) initial attention window of past cells, oldest first.
    Returns (hidden_seq (T, B, H), (h_T, c_T, window_T)).
    For full MXU row occupancy, batch enough independent sequences for B >= 128.
    """
    T, B, I = xs.shape
    Wd = win0.shape[0]
    H, Hp, Ip = fused["H"], fused["Hp"], fused["Ip"]
    mxu = fused["mxu_dtype"]
    assert I == fused["I"] and Wd == fused["W"]
    assert h0.shape == (B, H) and c0.shape == (B, H) and win0.shape == (Wd, B, H)

    # batch rows padded to the sublane packing of the MXU dtype (16 for bf16, 8 for f32)
    row_align = max(_SUBLANE, _SUBLANE * (4 // jnp.dtype(mxu).itemsize))
    Bp = _round_up(max(B, row_align), row_align)
    Bb = Bp if batch_block is None else batch_block
    assert Bb % row_align == 0 and Bp % Bb == 0
    nb = Bp // Bb

    xs_p = jnp.zeros((T, Bp, Ip), mxu).at[:, :B, :I].set(xs.astype(mxu))
    h0_p = jnp.zeros((Bp, Hp), jnp.float32).at[:B, :H].set(h0.astype(jnp.float32))
    c0_p = jnp.zeros((Bp, Hp), jnp.float32).at[:B, :H].set(c0.astype(jnp.float32))
    win0_p = jnp.zeros((Wd, Bp, Hp), mxu).at[:, :B, :H].set(win0.astype(mxu))

    wspec = lambda a: pl.BlockSpec(a.shape, lambda b, t: (0, 0))   # VMEM-resident slabs
    in_specs = ([
        pl.BlockSpec((1, Bb, Ip), lambda b, t: (t, b, 0)),         # x_t streamed per step
        pl.BlockSpec((Bb, Hp), lambda b, t: (b, 0)),               # h0
        pl.BlockSpec((Bb, Hp), lambda b, t: (b, 0)),               # c0
        pl.BlockSpec((Wd, Bb, Hp), lambda b, t: (0, b, 0)),        # initial window
    ] + [wspec(fused[k]) for k in _FUSED_WEIGHT_KEYS])

    out_shape = (jax.ShapeDtypeStruct((T, Bp, Hp), jnp.float32),   # hidden trajectory
                 jax.ShapeDtypeStruct((2, Bp, Hp), jnp.float32),   # final (h, c)
                 jax.ShapeDtypeStruct((Wd, Bp, Hp), mxu))          # final window
    out_specs = [pl.BlockSpec((1, Bb, Hp), lambda b, t: (t, b, 0)),
                 pl.BlockSpec((2, Bb, Hp), lambda b, t: (0, b, 0)),
                 pl.BlockSpec((Wd, Bb, Hp), lambda b, t: (0, b, 0))]

    scratch = [pltpu.VMEM((Bb, Hp), jnp.float32),      # h carry
               pltpu.VMEM((Bb, Hp), jnp.float32),      # c carry
               pltpu.VMEM((Wd, Bb, Hp), mxu)]          # attention window of past cells

    grid_spec = pltpu.PrefetchScalarGridSpec(
        num_scalar_prefetch=0, grid=(nb, T),
        in_specs=in_specs, out_specs=out_specs, scratch_shapes=scratch)

    hid, fin, fwin = pl.pallas_call(
        _larnn_seq_kernel,
        out_shape=out_shape,
        grid_spec=grid_spec,
        compiler_params=pltpu.CompilerParams(
            # batch blocks are independent -> shard across v7x's two TensorCores;
            # the time axis is a true recurrence -> "arbitrary".
            dimension_semantics=("parallel", "arbitrary"),
            vmem_limit_bytes=_vmem_budget_bytes(fused, Bb, Wd, Hp, Ip)),
    )(xs_p, h0_p, c0_p, win0_p, *[fused[k] for k in _FUSED_WEIGHT_KEYS])

    hidden_seq = hid[:, :B, :H]
    h_T = fin[0, :B, :H]
    c_T = fin[1, :B, :H]
    win_T = fwin[:, :B, :H].astype(jnp.float32)
    return hidden_seq, (h_T, c_T, win_T)


# ----------------------------- parameter / input glue ----------------------------------

def pe_feature_count(window_size):
    # TODO(synk): PositionalEncoding source not provided; geometric sin/cos series assumed.
    return 2 * max(1, int(math.ceil(math.log2(window_size))))


def positional_encoding(window_size):
    nfreq = pe_feature_count(window_size) // 2
    t = jnp.arange(window_size, dtype=jnp.float32)[:, None]            # (W, 1)
    freqs = (2.0 ** jnp.arange(nfreq, dtype=jnp.float32))[None, :]     # (1, nfreq)
    ang = t / freqs
    return jnp.concatenate([jnp.sin(ang), jnp.cos(ang)], axis=-1)      # (W, 2*nfreq)


def init_larnn_params(key, input_size, hidden_size, pe_feats):
    # init_parameters('pytorch_default'): every parameter ~ U(-1/sqrt(H), 1/sqrt(H)).
    H, I, P = hidden_size, input_size, pe_feats
    inv = 1.0 / math.sqrt(H)
    shapes = {
        "w_ih": (4 * H, I), "b_ih": (4 * H,),
        "w_hh": (4 * H, H),                        # hidden_to_hidden has no bias
        "w_q_ih": (H, I + H), "b_q_ih": (H,),
        "w_ac": (4 * H, H), "b_ac": (4 * H,),
        "mha_wq": (H, H), "mha_bq": (H,),
        "mha_wk": (H, H + P), "mha_bk": (H,),
        "mha_wv": (H, H + P), "mha_bv": (H,),
        "mha_wo": (H, H), "mha_bo": (H,),
        "g_attn": (H,), "b_attn": (H,),
        "g_cell": (H,), "b_cell": (H,),
        "g_post": (H,), "b_post": (H,),
    }
    keys = jax.random.split(key, len(shapes))
    p = {name: jax.random.uniform(k, shp, jnp.float32, -inv, inv)
         for k, (name, shp) in zip(keys, shapes.items())}
    # eval-mode BatchNorm running statistics (fresh: mean 0, var 1).  For a trained
    # checkpoint load the real running stats here; build_fused_params folds them exactly.
    for nm in ("attn", "cell", "post"):
        p["rm_" + nm] = jnp.zeros((H,), jnp.float32)
        p["rv_" + nm] = jnp.ones((H,), jnp.float32)
    return p


def build_fused_params(p, attention_heads, window_size, mxu_dtype=jnp.bfloat16):
    """Host-side fusion: transpose / stack / pad to 128-lane-aligned segments, fold the
    eval-mode BatchNorms and the 1/sqrt(dk) softmax scale, cast MXU operands to bf16."""
    H = p["mha_wq"].shape[0]
    I = p["w_ih"].shape[1]
    W = window_size
    heads = attention_heads
    assert H % heads == 0
    dk = H // heads
    Hp = _round_up(H, _LANE)
    Ip = _round_up(I, _LANE)

    def bn_fold(name):
        # y = scale * x + shift, exact eval-mode fold from running statistics
        scale = p["g_" + name] / jnp.sqrt(p["rv_" + name] + _BN_EPS)
        return scale, p["b_" + name] - scale * p["rm_" + name]

    sc_attn, sh_attn = bn_fold("attn")
    sc_cell, sh_cell = bn_fold("cell")
    sc_post, sh_post = bn_fold("post")

    def seg_slab(blocks, rows, rows_pad):
        # each (rows, H) block goes into its own Hp-wide lane segment; pads are zero
        out = jnp.zeros((rows_pad, len(blocks) * Hp), jnp.float32)
        for i, blk in enumerate(blocks):
            out = out.at[:rows, i * Hp:i * Hp + H].set(blk)
        return out

    # fused x / h projections: segment 0 -> query pre-act, segments 1..4 -> gate pre-acts
    wq_x, wq_h = p["w_q_ih"][:, :I].T, p["w_q_ih"][:, I:].T
    w_ih_t, w_hh_t = p["w_ih"].T, p["w_hh"].T
    w_x = seg_slab([wq_x] + [w_ih_t[:, g * H:(g + 1) * H] for g in range(4)], I, Ip)
    w_h = seg_slab([wq_h] + [w_hh_t[:, g * H:(g + 1) * H] for g in range(4)], H, Hp)

    # attention-result BN (applied after the ELU) folded into attention_to_cell / bias
    w_ac_t = p["w_ac"].T * sc_attn[:, None]                          # (H, 4H)
    b_gate = p["b_ih"] + p["b_ac"] + sh_attn @ p["w_ac"].T           # (4H,)
    b_slab = seg_slab([p["b_q_ih"][None, :]] +
                      [b_gate[None, g * H:(g + 1) * H] for g in range(4)], 1, 1)
    w_ac = seg_slab([w_ac_t[:, g * H:(g + 1) * H] for g in range(4)], H, Hp)

    # K/V stacked; positional-encoding contribution + biases precomputed per window row
    pe = positional_encoding(W)
    wk_cell, wk_pe = p["mha_wk"][:, :H].T, p["mha_wk"][:, H:].T
    wv_cell, wv_pe = p["mha_wv"][:, :H].T, p["mha_wv"][:, H:].T
    w_kv = seg_slab([wk_cell, wv_cell], H, Hp)                       # (Hp, 2Hp)
    pe_kv = seg_slab([pe @ wk_pe + p["mha_bk"][None, :],
                      pe @ wv_pe + p["mha_bv"][None, :]], W, W)      # (W, 2Hp)

    # softmax 1/sqrt(dk) folded into the MHA query projection
    scale = 1.0 / math.sqrt(dk)
    w_q = jnp.zeros((Hp, Hp), jnp.float32).at[:H, :H].set(p["mha_wq"].T * scale)
    w_o = jnp.zeros((Hp, Hp), jnp.float32).at[:H, :H].set(p["mha_wo"].T)

    # head-segmentation masks (hoisted out of the kernel; zero in padded lanes)
    lane = jnp.arange(Hp)
    seg = ((lane[:, None] < H) &
           ((lane[:, None] // dk) == jnp.arange(heads)[None, :])).astype(jnp.float32)
    segt = seg.T

    def padv(v):
        return jnp.zeros((Hp,), jnp.float32).at[:H].set(v)

    vec = jnp.stack([padv(p["mha_bq"] * scale), padv(p["mha_bo"]),
                     padv(sc_cell), padv(sh_cell), padv(sc_post), padv(sh_post)])

    cast = lambda a: a.astype(mxu_dtype)
    return {"w_x": cast(w_x), "w_h": cast(w_h), "b": b_slab.astype(jnp.float32),
            "w_kv": cast(w_kv), "pe_kv": pe_kv.astype(jnp.float32),
            "w_q": cast(w_q), "w_o": cast(w_o), "w_ac": cast(w_ac),
            "seg": cast(seg), "segt": cast(segt), "vec": vec.astype(jnp.float32),
            "H": H, "Hp": Hp, "I": I, "Ip": Ip, "W": W, "heads": heads,
            "mxu_dtype": jnp.dtype(mxu_dtype)}


if __name__ == "__main__":
    T, B, I, H, HEADS, W = 12, 4, 16, 32, 4, 8
    assert H % HEADS == 0
    P = pe_feature_count(W)

    key = jax.random.PRNGKey(0)
    k_x, k_h, k_c, k_w, k_p = jax.random.split(key, 5)

    xs = jax.random.normal(k_x, (T, B, I), jnp.float32)
    h0 = jax.random.normal(k_h, (B, H), jnp.float32)
    c0 = jax.random.normal(k_c, (B, H), jnp.float32)
    # LARNNCellState window of the W most recent past cell states, oldest first.
    win0 = jax.random.normal(k_w, (W, B, H), jnp.float32)

    params = init_larnn_params(k_p, I, H, P)
    # bf16 MXU operands keep every matmul single-pass on v5e/v6e/v7x; elementwise math is
    # f32 either way.  Pass mxu_dtype=jnp.float32 for bit-closer fidelity.
    fused = build_fused_params(params, HEADS, W, mxu_dtype=jnp.bfloat16)

    hidden_seq, (h_T, c_T, win_T) = larnn_sequence_forward(xs, h0, c0, win0, fused)
    jax.block_until_ready((hidden_seq, h_T, c_T, win_T))

    assert hidden_seq.shape == (T, B, H)
    assert h_T.shape == (B, H) and c_T.shape == (B, H) and win_T.shape == (W, B, H)
    assert bool(jnp.all(jnp.isfinite(hidden_seq)))
    assert bool(jnp.all(jnp.isfinite(h_T))) and bool(jnp.all(jnp.isfinite(c_T)))
    print("KERNEL_OK")
</pallas_src>

<mosaic_0001>
module attributes {stable_mosaic.version = 11 : i64} {
  func.func @_larnn_seq_kernel(%arg0: i32, %arg1: i32, %arg2: memref<1x16x128xbf16, #tpu.memory_space<vmem>>, %arg3: memref<16x128xf32, #tpu.memory_space<vmem>>, %arg4: memref<16x128xf32, #tpu.memory_space<vmem>>, %arg5: memref<8x16x128xbf16, #tpu.memory_space<vmem>>, %arg6: memref<128x640xbf16, #tpu.memory_space<vmem>>, %arg7: memref<128x640xbf16, #tpu.memory_space<vmem>>, %arg8: memref<1x640xf32, #tpu.memory_space<vmem>>, %arg9: memref<128x256xbf16, #tpu.memory_space<vmem>>, %arg10: memref<8x256xf32, #tpu.memory_space<vmem>>, %arg11: memref<128x128xbf16, #tpu.memory_space<vmem>>, %arg12: memref<128x128xbf16, #tpu.memory_space<vmem>>, %arg13: memref<128x512xbf16, #tpu.memory_space<vmem>>, %arg14: memref<128x4xbf16, #tpu.memory_space<vmem>>, %arg15: memref<4x128xbf16, #tpu.memory_space<vmem>>, %arg16: memref<6x128xf32, #tpu.memory_space<vmem>>, %arg17: memref<1x16x128xf32, #tpu.memory_space<vmem>>, %arg18: memref<2x16x128xf32, #tpu.memory_space<vmem>>, %arg19: memref<8x16x128xbf16, #tpu.memory_space<vmem>>, %arg20: memref<16x128xf32, #tpu.memory_space<vmem>>, %arg21: memref<16x128xf32, #tpu.memory_space<vmem>>, %arg22: memref<8x16x128xbf16, #tpu.memory_space<vmem>>) attributes {dimension_semantics = [#tpu.dimension_semantics<parallel>, #tpu.dimension_semantics<arbitrary>], iteration_bounds = array<i64: 1, 12>, scalar_prefetch = 0 : i64, scratch_operands = 3 : i64, tpu.core_type = #tpu.core_type<tc>, window_params = [{transform_indices = @transform_0, window_bounds = array<i64: 1, 16, 128>}, {transform_indices = @transform_1, window_bounds = array<i64: 16, 128>}, {transform_indices = @transform_2, window_bounds = array<i64: 16, 128>}, {transform_indices = @transform_3, window_bounds = array<i64: 8, 16, 128>}, {pipeline_mode = #tpu.pipeline_mode<synchronous>, transform_indices = @transform_4, window_bounds = array<i64: 128, 640>}, {pipeline_mode = #tpu.pipeline_mode<synchronous>, transform_indices = @transform_5, window_bounds = array<i64: 128, 640>}, {pipeline_mode = #tpu.pipeline_mode<synchronous>, transform_indices = @transform_6, window_bounds = array<i64: 1, 640>}, {pipeline_mode = #tpu.pipeline_mode<synchronous>, transform_indices = @transform_7, window_bounds = array<i64: 128, 256>}, {pipeline_mode = #tpu.pipeline_mode<synchronous>, transform_indices = @transform_8, window_bounds = array<i64: 8, 256>}, {pipeline_mode = #tpu.pipeline_mode<synchronous>, transform_indices = @transform_9, window_bounds = array<i64: 128, 128>}, {pipeline_mode = #tpu.pipeline_mode<synchronous>, transform_indices = @transform_10, window_bounds = array<i64: 128, 128>}, {pipeline_mode = #tpu.pipeline_mode<synchronous>, transform_indices = @transform_11, window_bounds = array<i64: 128, 512>}, {pipeline_mode = #tpu.pipeline_mode<synchronous>, transform_indices = @transform_12, window_bounds = array<i64: 128, 4>}, {pipeline_mode = #tpu.pipeline_mode<synchronous>, transform_indices = @transform_13, window_bounds = array<i64: 4, 128>}, {pipeline_mode = #tpu.pipeline_mode<synchronous>, transform_indices = @transform_14, window_bounds = array<i64: 6, 128>}, {transform_indices = @transform_15, window_bounds = array<i64: 1, 16, 128>}, {transform_indices = @transform_16, window_bounds = array<i64: 2, 16, 128>}, {transform_indices = @transform_17, window_bounds = array<i64: 8, 16, 128>}]} {
    %c0_i32 = arith.constant 0 : i32
    %0 = arith.cmpi eq, %arg1, %c0_i32 : i32
    %1 = arith.extui %0 : i1 to i32
    %c0_i32_0 = arith.constant 0 : i32
    %2 = arith.cmpi ne, %1, %c0_i32_0 : i32
    scf.if %2 {
      %c0_73 = arith.constant 0 : index
      %c0_74 = arith.constant 0 : index
      %143 = vector.load %arg3[%c0_73, %c0_74] : memref<16x128xf32, #tpu.memory_space<vmem>>, vector<16x128xf32>
      %c0_75 = arith.constant 0 : index
      %c0_76 = arith.constant 0 : index
      %144 = vector.load %arg20[%c0_75, %c0_76] : memref<16x128xf32, #tpu.memory_space<vmem>>, vector<16x128xf32>
      tpu.vector_store %arg20[%c0_75, %c0_76], %143 {strides = array<i32>} : memref<16x128xf32, #tpu.memory_space<vmem>>, vector<16x128xf32>,
      %c0_77 = arith.constant 0 : index
      %c0_78 = arith.constant 0 : index
      %145 = vector.load %arg4[%c0_77, %c0_78] : memref<16x128xf32, #tpu.memory_space<vmem>>, vector<16x128xf32>
      %c0_79 = arith.constant 0 : index
      %c0_80 = arith.constant 0 : index
      %146 = vector.load %arg21[%c0_79, %c0_80] : memref<16x128xf32, #tpu.memory_space<vmem>>, vector<16x128xf32>
      tpu.vector_store %arg21[%c0_79, %c0_80], %145 {strides = array<i32>} : memref<16x128xf32, #tpu.memory_space<vmem>>, vector<16x128xf32>,
      %c0_81 = arith.constant 0 : index
      %c0_82 = arith.constant 0 : index
      %c0_83 = arith.constant 0 : index
      %147 = vector.load %arg5[%c0_81, %c0_82, %c0_83] : memref<8x16x128xbf16, #tpu.memory_space<vmem>>, vector<8x16x128xbf16>
      %c0_84 = arith.constant 0 : index
      %c0_85 = arith.constant 0 : index
      %c0_86 = arith.constant 0 : index
      %148 = vector.load %arg22[%c0_84, %c0_85, %c0_86] : memref<8x16x128xbf16, #tpu.memory_space<vmem>>, vector<8x16x128xbf16>
      tpu.vector_store %arg22[%c0_84, %c0_85, %c0_86], %147 {strides = array<i32>} : memref<8x16x128xbf16, #tpu.memory_space<vmem>>, vector<8x16x128xbf16>,
    } else {
    }
    %c0 = arith.constant 0 : index
    %c0_1 = arith.constant 0 : index
    %3 = vector.load %arg20[%c0, %c0_1] : memref<16x128xf32, #tpu.memory_space<vmem>>, vector<16x128xf32>
    %c0_2 = arith.constant 0 : index
    %c0_3 = arith.constant 0 : index
    %4 = vector.load %arg21[%c0_2, %c0_3] : memref<16x128xf32, #tpu.memory_space<vmem>>, vector<16x128xf32>
    %c0_4 = arith.constant 0 : index
    %c0_5 = arith.constant 0 : index
    %c0_6 = arith.constant 0 : index
    %5 = vector.load %arg2[%c0_4, %c0_5, %c0_6] : memref<1x16x128xbf16, #tpu.memory_space<vmem>>, vector<1x16x128xbf16>
    %6 = vector.shape_cast %5 : vector<1x16x128xbf16> to vector<16x128xbf16>
    %c0_7 = arith.constant 0 : index
    %c0_8 = arith.constant 0 : index
    %c0_9 = arith.constant 0 : index
    %7 = vector.load %arg22[%c0_7, %c0_8, %c0_9] : memref<8x16x128xbf16, #tpu.memory_space<vmem>>, vector<8x16x128xbf16>
    %c0_10 = arith.constant 0 : index
    %c0_11 = arith.constant 0 : index
    %8 = vector.load %arg6[%c0_10, %c0_11] : memref<128x640xbf16, #tpu.memory_space<vmem>>, vector<128x640xbf16>
    %cst = arith.constant dense<0.000000e+00> : vector<16x640xf32>
    %9 = tpu.matmul %6, %8, %cst {dimension_numbers = #tpu.dot_dimension_numbers<[1], [0], [0], [1], [0, 0, 1, 1], [], []>} : vector<16x128xbf16>, vector<128x640xbf16>, vector<16x640xf32> -> vector<16x640xf32>
    %10 = arith.truncf %3 : vector<16x128xf32> to vector<16x128xbf16>
    %c0_12 = arith.constant 0 : index
    %c0_13 = arith.constant 0 : index
    %11 = vector.load %arg7[%c0_12, %c0_13] : memref<128x640xbf16, #tpu.memory_space<vmem>>, vector<128x640xbf16>
    %cst_14 = arith.constant dense<0.000000e+00> : vector<16x640xf32>
    %12 = tpu.matmul %10, %11, %cst_14 {dimension_numbers = #tpu.dot_dimension_numbers<[1], [0], [0], [1], [0, 0, 1, 1], [], []>} : vector<16x128xbf16>, vector<128x640xbf16>, vector<16x640xf32> -> vector<16x640xf32>
    %13 = arith.addf %9, %12 : vector<16x640xf32>
    %c0_15 = arith.constant 0 : index
    %c0_16 = arith.constant 0 : index
    %14 = vector.load %arg8[%c0_15, %c0_16] : memref<1x640xf32, #tpu.memory_space<vmem>>, vector<1x640xf32>
    %15 = vector.broadcast %14 : vector<1x640xf32> to vector<16x640xf32>
    %16 = arith.addf %13, %15 : vector<16x640xf32>
    %17 = vector.extract_strided_slice %16 {offsets = [0, 0], sizes = [16, 128], strides = [1, 1]} : vector<16x640xf32> to vector<16x128xf32>
    %cst_17 = arith.constant 0.000000e+00 : f32
    %18 = vector.broadcast %cst_17 : f32 to vector<16x128xf32>
    %19 = arith.cmpf ogt, %17, %18 : vector<16x128xf32>
    %cst_18 = arith.constant 0.000000e+00 : f32
    %20 = vector.broadcast %cst_18 : f32 to vector<16x128xf32>
    %21 = arith.minimumf %17, %20 : vector<16x128xf32>
    %22 = math.exp %21 : vector<16x128xf32>
    %cst_19 = arith.constant 1.000000e+00 : f32
    %23 = vector.broadcast %cst_19 : f32 to vector<16x128xf32>
    %24 = arith.subf %22, %23 : vector<16x128xf32>
    %25 = arith.select %19, %17, %24 : vector<16x128xi1>, vector<16x128xf32>
    %26 = vector.extract_strided_slice %16 {offsets = [0, 128], sizes = [16, 512], strides = [1, 1]} : vector<16x640xf32> to vector<16x512xf32>
    %27 = vector.shape_cast %7 : vector<8x16x128xbf16> to vector<128x128xbf16>
    %c0_20 = arith.constant 0 : index
    %c0_21 = arith.constant 0 : index
    %28 = vector.load %arg9[%c0_20, %c0_21] : memref<128x256xbf16, #tpu.memory_space<vmem>>, vector<128x256xbf16>
    %cst_22 = arith.constant dense<0.000000e+00> : vector<128x256xf32>
    %29 = tpu.matmul %27, %28, %cst_22 {dimension_numbers = #tpu.dot_dimension_numbers<[1], [0], [0], [1], [0, 0, 1, 1], [], []>} : vector<128x128xbf16>, vector<128x256xbf16>, vector<128x256xf32> -> vector<128x256xf32>
    %30 = vector.shape_cast %29 : vector<128x256xf32> to vector<8x16x256xf32>
    %c0_23 = arith.constant 0 : index
    %c0_24 = arith.constant 0 : index
    %31 = vector.load %arg10[%c0_23, %c0_24] : memref<8x256xf32, #tpu.memory_space<vmem>>, vector<8x256xf32>
    %32 = vector.shape_cast %31 : vector<8x256xf32> to vector<8x1x256xf32>
    %33 = vector.broadcast %32 : vector<8x1x256xf32> to vector<8x16x256xf32>
    %34 = arith.addf %30, %33 : vector<8x16x256xf32>
    %cst_25 = arith.constant 0.000000e+00 : f32
    %35 = vector.broadcast %cst_25 : f32 to vector<8x16x256xf32>
    %36 = arith.cmpf ogt, %34, %35 : vector<8x16x256xf32>
    %cst_26 = arith.constant 0.000000e+00 : f32
    %37 = vector.broadcast %cst_26 : f32 to vector<8x16x256xf32>
    %38 = arith.minimumf %34, %37 : vector<8x16x256xf32>
    %39 = math.exp %38 : vector<8x16x256xf32>
    %cst_27 = arith.constant 1.000000e+00 : f32
    %40 = vector.broadcast %cst_27 : f32 to vector<8x16x256xf32>
    %41 = arith.subf %39, %40 : vector<8x16x256xf32>
    %42 = arith.select %36, %34, %41 : vector<8x16x256xi1>, vector<8x16x256xf32>
    %43 = vector.extract_strided_slice %42 {offsets = [0, 0, 0], sizes = [8, 16, 128], strides = [1, 1, 1]} : vector<8x16x256xf32> to vector<8x16x128xf32>
    %44 = vector.extract_strided_slice %42 {offsets = [0, 0, 128], sizes = [8, 16, 128], strides = [1, 1, 1]} : vector<8x16x256xf32> to vector<8x16x128xf32>
    %45 = arith.truncf %25 : vector<16x128xf32> to vector<16x128xbf16>
    %c0_28 = arith.constant 0 : index
    %c0_29 = arith.constant 0 : index
    %46 = vector.load %arg11[%c0_28, %c0_29] : memref<128x128xbf16, #tpu.memory_space<vmem>>, vector<128x128xbf16>
    %cst_30 = arith.constant dense<0.000000e+00> : vector<16x128xf32>
    %47 = tpu.matmul %45, %46, %cst_30 {dimension_numbers = #tpu.dot_dimension_numbers<[1], [0], [0], [1], [0, 0, 1, 1], [], []>} : vector<16x128xbf16>, vector<128x128xbf16>, vector<16x128xf32> -> vector<16x128xf32>
    %c0_31 = arith.constant 0 : index
    %c0_32 = arith.constant 0 : index
    %48 = vector.load %arg16[%c0_31, %c0_32] : memref<6x128xf32, #tpu.memory_space<vmem>>, vector<1x128xf32>
    %49 = vector.broadcast %48 : vector<1x128xf32> to vector<16x128xf32>
    %50 = arith.addf %47, %49 : vector<16x128xf32>
    %51 = vector.shape_cast %50 : vector<16x128xf32> to vector<1x16x128xf32>
    %52 = vector.broadcast %51 : vector<1x16x128xf32> to vector<8x16x128xf32>
    %53 = arith.mulf %52, %43 : vector<8x16x128xf32>
    %54 = vector.shape_cast %53 : vector<8x16x128xf32> to vector<128x128xf32>
    %55 = arith.truncf %54 : vector<128x128xf32> to vector<128x128xbf16>
    %c0_33 = arith.constant 0 : index
    %c0_34 = arith.constant 0 : index
    %56 = vector.load %arg14[%c0_33, %c0_34] : memref<128x4xbf16, #tpu.memory_space<vmem>>, vector<128x4xbf16>
    %cst_35 = arith.constant dense<0.000000e+00> : vector<128x4xf32>
    %57 = tpu.matmul %55, %56, %cst_35 {dimension_numbers = #tpu.dot_dimension_numbers<[1], [0], [0], [1], [0, 0, 1, 1], [], []>} : vector<128x128xbf16>, vector<128x4xbf16>, vector<128x4xf32> -> vector<128x4xf32>
    %58 = vector.shape_cast %57 : vector<128x4xf32> to vector<8x16x4xf32>
    %cst_36 = arith.constant dense<0xFF800000> : vector<16x4xf32>
    %59 = vector.multi_reduction <maximumf>, %58, %cst_36 [0] : vector<8x16x4xf32> to vector<16x4xf32>
    %60 = vector.shape_cast %59 : vector<16x4xf32> to vector<1x16x4xf32>
    %61 = vector.broadcast %60 : vector<1x16x4xf32> to vector<8x16x4xf32>
    %62 = arith.subf %58, %61 : vector<8x16x4xf32>
    %63 = math.exp %62 : vector<8x16x4xf32>
    %cst_37 = arith.constant dense<0.000000e+00> : vector<16x4xf32>
    %64 = vector.multi_reduction <add>, %63, %cst_37 [0] : vector<8x16x4xf32> to vector<16x4xf32>
    %65 = vector.shape_cast %64 : vector<16x4xf32> to vector<1x16x4xf32>
    %66 = tpu.reciprocal %65 {approx = true} : vector<1x16x4xf32> -> vector<1x16x4xf32>
    %67 = vector.broadcast %66 : vector<1x16x4xf32> to vector<8x16x4xf32>
    %68 = arith.mulf %63, %67 : vector<8x16x4xf32>
    %69 = vector.shape_cast %68 : vector<8x16x4xf32> to vector<128x4xf32>
    %70 = arith.truncf %69 : vector<128x4xf32> to vector<128x4xbf16>
    %c0_38 = arith.constant 0 : index
    %c0_39 = arith.constant 0 : index
    %71 = vector.load %arg15[%c0_38, %c0_39] : memref<4x128xbf16, #tpu.memory_space<vmem>>, vector<4x128xbf16>
    %cst_40 = arith.constant dense<0.000000e+00> : vector<128x128xf32>
    %72 = tpu.matmul %70, %71, %cst_40 {dimension_numbers = #tpu.dot_dimension_numbers<[1], [0], [0], [1], [0, 0, 1, 1], [], []>} : vector<128x4xbf16>, vector<4x128xbf16>, vector<128x128xf32> -> vector<128x128xf32>
    %73 = vector.shape_cast %72 : vector<128x128xf32> to vector<8x16x128xf32>
    %74 = arith.mulf %73, %44 : vector<8x16x128xf32>
    %cst_41 = arith.constant dense<0.000000e+00> : vector<16x128xf32>
    %75 = vector.multi_reduction <add>, %74, %cst_41 [0] : vector<8x16x128xf32> to vector<16x128xf32>
    %76 = arith.truncf %75 : vector<16x128xf32> to vector<16x128xbf16>
    %c0_42 = arith.constant 0 : index
    %c0_43 = arith.constant 0 : index
    %77 = vector.load %arg12[%c0_42, %c0_43] : memref<128x128xbf16, #tpu.memory_space<vmem>>, vector<128x128xbf16>
    %cst_44 = arith.constant dense<0.000000e+00> : vector<16x128xf32>
    %78 = tpu.matmul %76, %77, %cst_44 {dimension_numbers = #tpu.dot_dimension_numbers<[1], [0], [0], [1], [0, 0, 1, 1], [], []>} : vector<16x128xbf16>, vector<128x128xbf16>, vector<16x128xf32> -> vector<16x128xf32>
    %c1 = arith.constant 1 : index
    %c0_45 = arith.constant 0 : index
    %79 = vector.load %arg16[%c1, %c0_45] : memref<6x128xf32, #tpu.memory_space<vmem>>, vector<1x128xf32>
    %80 = vector.broadcast %79 : vector<1x128xf32> to vector<16x128xf32>
    %81 = arith.addf %78, %80 : vector<16x128xf32>
    %cst_46 = arith.constant 0.000000e+00 : f32
    %82 = vector.broadcast %cst_46 : f32 to vector<16x128xf32>
    %83 = arith.cmpf ogt, %81, %82 : vector<16x128xf32>
    %cst_47 = arith.constant 0.000000e+00 : f32
    %84 = vector.broadcast %cst_47 : f32 to vector<16x128xf32>
    %85 = arith.minimumf %81, %84 : vector<16x128xf32>
    %86 = math.exp %85 : vector<16x128xf32>
    %cst_48 = arith.constant 1.000000e+00 : f32
    %87 = vector.broadcast %cst_48 : f32 to vector<16x128xf32>
    %88 = arith.subf %86, %87 : vector<16x128xf32>
    %89 = arith.select %83, %81, %88 : vector<16x128xi1>, vector<16x128xf32>
    %90 = arith.truncf %89 : vector<16x128xf32> to vector<16x128xbf16>
    %c0_49 = arith.constant 0 : index
    %c0_50 = arith.constant 0 : index
    %91 = vector.load %arg13[%c0_49, %c0_50] : memref<128x512xbf16, #tpu.memory_space<vmem>>, vector<128x512xbf16>
    %cst_51 = arith.constant dense<0.000000e+00> : vector<16x512xf32>
    %92 = tpu.matmul %90, %91, %cst_51 {dimension_numbers = #tpu.dot_dimension_numbers<[1], [0], [0], [1], [0, 0, 1, 1], [], []>} : vector<16x128xbf16>, vector<128x512xbf16>, vector<16x512xf32> -> vector<16x512xf32>
    %93 = arith.addf %26, %92 : vector<16x512xf32>
    %94 = vector.extract_strided_slice %93 {offsets = [0, 0], sizes = [16, 128], strides = [1, 1]} : vector<16x512xf32> to vector<16x128xf32>
    %95 = math.tanh %94 : vector<16x128xf32>
    %96 = vector.extract_strided_slice %93 {offsets = [0, 128], sizes = [16, 384], strides = [1, 1]} : vector<16x512xf32> to vector<16x384xf32>
    %97 = arith.negf %96 : vector<16x384xf32>
    %98 = math.exp %97 : vector<16x384xf32>
    %cst_52 = arith.constant 1.000000e+00 : f32
    %99 = vector.broadcast %cst_52 : f32 to vector<16x384xf32>
    %100 = arith.addf %99, %98 : vector<16x384xf32>
    %101 = arith.divf %99, %100 : vector<16x384xf32>
    %102 = vector.extract_strided_slice %101 {offsets = [0, 0], sizes = [16, 128], strides = [1, 1]} : vector<16x384xf32> to vector<16x128xf32>
    %103 = vector.extract_strided_slice %101 {offsets = [0, 128], sizes = [16, 128], strides = [1, 1]} : vector<16x384xf32> to vector<16x128xf32>
    %104 = vector.extract_strided_slice %101 {offsets = [0, 256], sizes = [16, 128], strides = [1, 1]} : vector<16x384xf32> to vector<16x128xf32>
    %c2 = arith.constant 2 : index
    %c0_53 = arith.constant 0 : index
    %105 = vector.load %arg16[%c2, %c0_53] : memref<6x128xf32, #tpu.memory_space<vmem>>, vector<1x128xf32>
    %106 = arith.mulf %95, %103 : vector<16x128xf32>
    %107 = arith.mulf %4, %102 : vector<16x128xf32>
    %108 = arith.addf %106, %107 : vector<16x128xf32>
    %109 = vector.broadcast %105 : vector<1x128xf32> to vector<16x128xf32>
    %110 = arith.mulf %109, %108 : vector<16x128xf32>
    %c3 = arith.constant 3 : index
    %c0_54 = arith.constant 0 : index
    %111 = vector.load %arg16[%c3, %c0_54] : memref<6x128xf32, #tpu.memory_space<vmem>>, vector<1x128xf32>
    %112 = vector.broadcast %111 : vector<1x128xf32> to vector<16x128xf32>
    %113 = arith.addf %110, %112 : vector<16x128xf32>
    %c4 = arith.constant 4 : index
    %c0_55 = arith.constant 0 : index
    %114 = vector.load %arg16[%c4, %c0_55] : memref<6x128xf32, #tpu.memory_space<vmem>>, vector<1x128xf32>
    %cst_56 = arith.constant 0.000000e+00 : f32
    %115 = vector.broadcast %cst_56 : f32 to vector<16x128xf32>
    %116 = arith.cmpf ogt, %113, %115 : vector<16x128xf32>
    %cst_57 = arith.constant 0.000000e+00 : f32
    %117 = vector.broadcast %cst_57 : f32 to vector<16x128xf32>
    %118 = arith.minimumf %113, %117 : vector<16x128xf32>
    %119 = math.exp %118 : vector<16x128xf32>
    %cst_58 = arith.constant 1.000000e+00 : f32
    %120 = vector.broadcast %cst_58 : f32 to vector<16x128xf32>
    %121 = arith.subf %119, %120 : vector<16x128xf32>
    %122 = arith.select %116, %113, %121 : vector<16x128xi1>, vector<16x128xf32>
    %123 = arith.mulf %104, %122 : vector<16x128xf32>
    %124 = vector.broadcast %114 : vector<1x128xf32> to vector<16x128xf32>
    %125 = arith.mulf %124, %123 : vector<16x128xf32>
    %c5 = arith.constant 5 : index
    %c0_59 = arith.constant 0 : index
    %126 = vector.load %arg16[%c5, %c0_59] : memref<6x128xf32, #tpu.memory_space<vmem>>, vector<1x128xf32>
    %127 = vector.broadcast %126 : vector<1x128xf32> to vector<16x128xf32>
    %128 = arith.addf %125, %127 : vector<16x128xf32>
    %c0_60 = arith.constant 0 : index
    %c0_61 = arith.constant 0 : index
    %129 = vector.load %arg20[%c0_60, %c0_61] : memref<16x128xf32, #tpu.memory_space<vmem>>, vector<16x128xf32>
    tpu.vector_store %arg20[%c0_60, %c0_61], %128 {strides = array<i32>} : memref<16x128xf32, #tpu.memory_space<vmem>>, vector<16x128xf32>,
    %c0_62 = arith.constant 0 : index
    %c0_63 = arith.constant 0 : index
    %130 = vector.load %arg21[%c0_62, %c0_63] : memref<16x128xf32, #tpu.memory_space<vmem>>, vector<16x128xf32>
    tpu.vector_store %arg21[%c0_62, %c0_63], %113 {strides = array<i32>} : memref<16x128xf32, #tpu.memory_space<vmem>>, vector<16x128xf32>,
    %131 = arith.truncf %113 : vector<16x128xf32> to vector<16x128xbf16>
    %132 = vector.extract_strided_slice %7 {offsets = [1, 0, 0], sizes = [7, 16, 128], strides = [1, 1, 1]} : vector<8x16x128xbf16> to vector<7x16x128xbf16>
    %c0_64 = arith.constant 0 : index
    %c0_65 = arith.constant 0 : index
    %c0_66 = arith.constant 0 : index
    %133 = vector.load %arg22[%c0_64, %c0_65, %c0_66] : memref<8x16x128xbf16, #tpu.memory_space<vmem>>, vector<7x16x128xbf16>
    tpu.vector_store %arg22[%c0_64, %c0_65, %c0_66], %132 {strides = array<i32>} : memref<8x16x128xbf16, #tpu.memory_space<vmem>>, vector<7x16x128xbf16>,
    %c7 = arith.constant 7 : index
    %c0_67 = arith.constant 0 : index
    %c0_68 = arith.constant 0 : index
    %134 = vector.load %arg22[%c7, %c0_67, %c0_68] : memref<8x16x128xbf16, #tpu.memory_space<vmem>>, vector<1x16x128xbf16>
    %135 = vector.shape_cast %134 : vector<1x16x128xbf16> to vector<16x128xbf16>
    %136 = vector.shape_cast %131 : vector<16x128xbf16> to vector<1x16x128xbf16>
    tpu.vector_store %arg22[%c7, %c0_67, %c0_68], %136 {strides = array<i32>} : memref<8x16x128xbf16, #tpu.memory_space<vmem>>, vector<1x16x128xbf16>,
    %c0_69 = arith.constant 0 : index
    %c0_70 = arith.constant 0 : index
    %c0_71 = arith.constant 0 : index
    %137 = vector.load %arg17[%c0_69, %c0_70, %c0_71] : memref<1x16x128xf32, #tpu.memory_space<vmem>>, vector<1x16x128xf32>
    %138 = vector.shape_cast %137 : vector<1x16x128xf32> to vector<16x128xf32>
    %139 = vector.shape_cast %128 : vector<16x128xf32> to vector<1x16x128xf32>
    tpu.vector_store %arg17[%c0_69, %c0_70, %c0_71], %139 {strides = array<i32>} : memref<1x16x128xf32, #tpu.memory_space<vmem>>, vector<1x16x128xf32>,
    %c11_i32 = arith.constant 11 : i32
    %140 = arith.cmpi eq, %arg1, %c11_i32 : i32
    %141 = arith.extui %140 : i1 to i32
    %c0_i32_72 = arith.constant 0 : i32
    %142 = arith.cmpi ne, %141, %c0_i32_72 : i32
    scf.if %142 {
      %c0_73 = arith.constant 0 : index
      %c0_74 = arith.constant 0 : index
      %c0_75 = arith.constant 0 : index
      %143 = vector.load %arg18[%c0_73, %c0_74, %c0_75] : memref<2x16x128xf32, #tpu.memory_space<vmem>>, vector<1x16x128xf32>
      %144 = vector.shape_cast %143 : vector<1x16x128xf32> to vector<16x128xf32>
      %145 = vector.shape_cast %128 : vector<16x128xf32> to vector<1x16x128xf32>
      tpu.vector_store %arg18[%c0_73, %c0_74, %c0_75], %145 {strides = array<i32>} : memref<2x16x128xf32, #tpu.memory_space<vmem>>, vector<1x16x128xf32>,
      %c1_76 = arith.constant 1 : index
      %c0_77 = arith.constant 0 : index
      %c0_78 = arith.constant 0 : index
      %146 = vector.load %arg18[%c1_76, %c0_77, %c0_78] : memref<2x16x128xf32, #tpu.memory_space<vmem>>, vector<1x16x128xf32>
      %147 = vector.shape_cast %146 : vector<1x16x128xf32> to vector<16x128xf32>
      %148 = vector.shape_cast %113 : vector<16x128xf32> to vector<1x16x128xf32>
      tpu.vector_store %arg18[%c1_76, %c0_77, %c0_78], %148 {strides = array<i32>} : memref<2x16x128xf32, #tpu.memory_space<vmem>>, vector<1x16x128xf32>,
      %149 = vector.extract_strided_slice %7 {offsets = [1, 0, 0], sizes = [7, 16, 128], strides = [1, 1, 1]} : vector<8x16x128xbf16> to vector<7x16x128xbf16>
      %c0_79 = arith.constant 0 : index
      %c0_80 = arith.constant 0 : index
      %c0_81 = arith.constant 0 : index
      %150 = vector.load %arg19[%c0_79, %c0_80, %c0_81] : memref<8x16x128xbf16, #tpu.memory_space<vmem>>, vector<7x16x128xbf16>
      tpu.vector_store %arg19[%c0_79, %c0_80, %c0_81], %149 {strides = array<i32>} : memref<8x16x128xbf16, #tpu.memory_space<vmem>>, vector<7x16x128xbf16>,
      %c7_82 = arith.constant 7 : index
      %c0_83 = arith.constant 0 : index
      %c0_84 = arith.constant 0 : index
      %151 = vector.load %arg19[%c7_82, %c0_83, %c0_84] : memref<8x16x128xbf16, #tpu.memory_space<vmem>>, vector<1x16x128xbf16>
      %152 = vector.shape_cast %151 : vector<1x16x128xbf16> to vector<16x128xbf16>
      %153 = vector.shape_cast %131 : vector<16x128xbf16> to vector<1x16x128xbf16>
      tpu.vector_store %arg19[%c7_82, %c0_83, %c0_84], %153 {strides = array<i32>} : memref<8x16x128xbf16, #tpu.memory_space<vmem>>, vector<1x16x128xbf16>,
    } else {
    }
    return
  }
  func.func @transform_0(%arg0: i32, %arg1: i32) -> (i32, i32, i32) {
    %c0_i32 = arith.constant 0 : i32
    %c0_i32_0 = arith.constant 0 : i32
    return %arg1, %arg0, %c0_i32 : i32, i32, i32
  }
  func.func @transform_1(%arg0: i32, %arg1: i32) -> (i32, i32) {
    %c0_i32 = arith.constant 0 : i32
    %c0_i32_0 = arith.constant 0 : i32
    return %arg0, %c0_i32 : i32, i32
  }
  func.func @transform_2(%arg0: i32, %arg1: i32) -> (i32, i32) {
    %c0_i32 = arith.constant 0 : i32
    %c0_i32_0 = arith.constant 0 : i32
    return %arg0, %c0_i32 : i32, i32
  }
  func.func @transform_3(%arg0: i32, %arg1: i32) -> (i32, i32, i32) {
    %c0_i32 = arith.constant 0 : i32
    %c0_i32_0 = arith.constant 0 : i32
    %c0_i32_1 = arith.constant 0 : i32
    return %c0_i32, %arg0, %c0_i32_0 : i32, i32, i32
  }
  func.func @transform_4(%arg0: i32, %arg1: i32) -> (i32, i32) {
    %c0_i32 = arith.constant 0 : i32
    %c0_i32_0 = arith.constant 0 : i32
    %c0_i32_1 = arith.constant 0 : i32
    return %c0_i32, %c0_i32_0 : i32, i32
  }
  func.func @transform_5(%arg0: i32, %arg1: i32) -> (i32, i32) {
    %c0_i32 = arith.constant 0 : i32
    %c0_i32_0 = arith.constant 0 : i32
    %c0_i32_1 = arith.constant 0 : i32
    return %c0_i32, %c0_i32_0 : i32, i32
  }
  func.func @transform_6(%arg0: i32, %arg1: i32) -> (i32, i32) {
    %c0_i32 = arith.constant 0 : i32
    %c0_i32_0 = arith.constant 0 : i32
    %c0_i32_1 = arith.constant 0 : i32
    return %c0_i32, %c0_i32_0 : i32, i32
  }
  func.func @transform_7(%arg0: i32, %arg1: i32) -> (i32, i32) {
    %c0_i32 = arith.constant 0 : i32
    %c0_i32_0 = arith.constant 0 : i32
    %c0_i32_1 = arith.constant 0 : i32
    return %c0_i32, %c0_i32_0 : i32, i32
  }
  func.func @transform_8(%arg0: i32, %arg1: i32) -> (i32, i32) {
    %c0_i32 = arith.constant 0 : i32
    %c0_i32_0 = arith.constant 0 : i32
    %c0_i32_1 = arith.constant 0 : i32
    return %c0_i32, %c0_i32_0 : i32, i32
  }
  func.func @transform_9(%arg0: i32, %arg1: i32) -> (i32, i32) {
    %c0_i32 = arith.constant 0 : i32
    %c0_i32_0 = arith.constant 0 : i32
    %c0_i32_1 = arith.constant 0 : i32
    return %c0_i32, %c0_i32_0 : i32, i32
  }
  func.func @transform_10(%arg0: i32, %arg1: i32) -> (i32, i32) {
    %c0_i32 = arith.constant 0 : i32
    %c0_i32_0 = arith.constant 0 : i32
    %c0_i32_1 = arith.constant 0 : i32
    return %c0_i32, %c0_i32_0 : i32, i32
  }
  func.func @transform_11(%arg0: i32, %arg1: i32) -> (i32, i32) {
    %c0_i32 = arith.constant 0 : i32
    %c0_i32_0 = arith.constant 0 : i32
    %c0_i32_1 = arith.constant 0 : i32
    return %c0_i32, %c0_i32_0 : i32, i32
  }
  func.func @transform_12(%arg0: i32, %arg1: i32) -> (i32, i32) {
    %c0_i32 = arith.constant 0 : i32
    %c0_i32_0 = arith.constant 0 : i32
    %c0_i32_1 = arith.constant 0 : i32
    return %c0_i32, %c0_i32_0 : i32, i32
  }
  func.func @transform_13(%arg0: i32, %arg1: i32) -> (i32, i32) {
    %c0_i32 = arith.constant 0 : i32
    %c0_i32_0 = arith.constant 0 : i32
    %c0_i32_1 = arith.constant 0 : i32
    return %c0_i32, %c0_i32_0 : i32, i32
  }
  func.func @transform_14(%arg0: i32, %arg1: i32) -> (i32, i32) {
    %c0_i32 = arith.constant 0 : i32
    %c0_i32_0 = arith.constant 0 : i32
    %c0_i32_1 = arith.constant 0 : i32
    return %c0_i32, %c0_i32_0 : i32, i32
  }
  func.func @transform_15(%arg0: i32, %arg1: i32) -> (i32, i32, i32) {
    %c0_i32 = arith.constant 0 : i32
    %c0_i32_0 = arith.constant 0 : i32
    return %arg1, %arg0, %c0_i32 : i32, i32, i32
  }
  func.func @transform_16(%arg0: i32, %arg1: i32) -> (i32, i32, i32) {
    %c0_i32 = arith.constant 0 : i32
    %c0_i32_0 = arith.constant 0 : i32
    %c0_i32_1 = arith.constant 0 : i32
    return %c0_i32, %arg0, %c0_i32_0 : i32, i32, i32
  }
  func.func @transform_17(%arg0: i32, %arg1: i32) -> (i32, i32, i32) {
    %c0_i32 = arith.constant 0 : i32
    %c0_i32_0 = arith.constant 0 : i32
    %c0_i32_1 = arith.constant 0 : i32
    return %c0_i32, %arg0, %c0_i32_0 : i32, i32, i32
  }
}

</mosaic_0001>

<llo_original>
// kernel: tpu_custom_call.1
$region0: #{tpu_custom_call.1}
  #allocation0 [shape = 'u32[]', space=smem, size = 0x4, offset = 0x4, fixed_abs, tag = 'smem constant byte address 0x4 - core index']
  #allocation1 [shape = 'u32[144,128]{1,0:T(1,128)}', space=vmem, size = 0x12000, scoped, tag = 'internal scratch']
  #allocation2 [shape = 'f32[16,128]{1,0:T(8,128)}', space=vmem, size = 0x2000, scoped, tag = 'scratch operand']
  #allocation3 [shape = 'f32[16,128]{1,0:T(8,128)}', space=vmem, size = 0x2000, scoped, tag = 'scratch operand']
  #allocation4 [shape = 'bf16[8,16,128]{2,1,0:T(8,128)(2,1)}', space=vmem, size = 0x8000, scoped, tag = 'scratch operand']
  %s0 = inlined_call_operand.hbm [shape: bf16[12,16,128], index: 0, kind: input, shape index: {}]
  %s1 = inlined_call_operand.hbm [shape: f32[16,128], index: 1, kind: input, shape index: {}]
  %s2 = inlined_call_operand.hbm [shape: f32[16,128], index: 2, kind: input, shape index: {}]
  %s3 = inlined_call_operand.vmem [shape: bf16[8,16,128], index: 3, kind: input, shape index: {}]
  %s4 = inlined_call_operand.hbm [shape: bf16[128,640], index: 4, kind: input, shape index: {}]
  %s5 = inlined_call_operand.hbm [shape: bf16[128,640], index: 5, kind: input, shape index: {}]
  %s6 = inlined_call_operand.hbm [shape: f32[1,640], index: 6, kind: input, shape index: {}]
  %s7 = inlined_call_operand.hbm [shape: bf16[128,256], index: 7, kind: input, shape index: {}]
  %s8 = inlined_call_operand.vmem [shape: f32[8,256], index: 8, kind: input, shape index: {}]
  %s9 = inlined_call_operand.hbm [shape: bf16[128,128], index: 9, kind: input, shape index: {}]
  %s10 = inlined_call_operand.hbm [shape: bf16[128,128], index: 10, kind: input, shape index: {}]
  %s11 = inlined_call_operand.hbm [shape: bf16[128,512], index: 11, kind: input, shape index: {}]
  %s12 = inlined_call_operand.vmem [shape: bf16[128,4], index: 12, kind: input, shape index: {}]
  %s13 = inlined_call_operand.hbm [shape: bf16[4,128], index: 13, kind: input, shape index: {}]
  %s14 = inlined_call_operand.vmem [shape: f32[6,128], index: 14, kind: input, shape index: {}]
  %s15 = inlined_call_operand.hbm [shape: f32[12,16,128], index: 15, kind: output, shape index: {0}]
  %s16 = inlined_call_operand.hbm [shape: f32[2,16,128], index: 16, kind: output, shape index: {1}]
  %s17 = inlined_call_operand.hbm [shape: bf16[8,16,128], index: 17, kind: output, shape index: {2}]
  %18 = xla_tuple %s15, %s16, %s17
  %s19 = sld [smem:[#allocation0]]
  $region161: #{tpu_custom_call.1} parent=0
    _
  %s21 = ssub.s32 1, %s19
  %s22 = scalar_select 0, %s21, %s19
  $region1: #{tpu_custom_call.1} parent=0
    #allocation5 [shape = 'u8[8192]{0}', space=vmem, size = 0x2000, scoped, tag = 'input window, operand 0']
    #allocation6 [shape = 's32[2]{0}', space=sflag, size = 0x8, scoped, tag = 'scoped memory for tpu_custom_call.1']
    #allocation7 [shape = 's32[2]{0}', space=sflag, size = 0x8, scoped, tag = 'scoped memory for tpu_custom_call.1']
    #allocation8 [shape = 'u8[8192]{0}', space=vmem, size = 0x2000, scoped, tag = 'input window, operand 1, single buffered']
    #allocation9 [shape = 's32[1]{0}', space=sflag, size = 0x4, scoped, tag = 'scoped memory for tpu_custom_call.1']
    #allocation10 [shape = 'u8[8192]{0}', space=vmem, size = 0x2000, scoped, tag = 'input window, operand 2, single buffered']
    #allocation11 [shape = 'u8[163840]{0}', space=vmem, size = 0x28000, scoped, tag = 'input window, operand 4, single buffered']
    #allocation12 [shape = 's32[1]{0}', space=sflag, size = 0x4, scoped, tag = 'scoped memory for tpu_custom_call.1']
    #allocation13 [shape = 'u8[163840]{0}', space=vmem, size = 0x28000, scoped, tag = 'input window, operand 5, single buffered']
    #allocation14 [shape = 'u8[2560]{0}', space=vmem, size = 0xc00, scoped, tag = 'input window, operand 6, single buffered']
    #allocation15 [shape = 's32[1]{0}', space=sflag, size = 0x4, scoped, tag = 'scoped memory for tpu_custom_call.1']
    #allocation16 [shape = 'u8[65536]{0}', space=vmem, size = 0x10000, scoped, tag = 'input window, operand 7, single buffered']
    #allocation17 [shape = 'u8[32768]{0}', space=vmem, size = 0x8000, scoped, tag = 'input window, operand 9, single buffered']
    #allocation18 [shape = 's32[1]{0}', space=sflag, size = 0x4, scoped, tag = 'scoped memory for tpu_custom_call.1']
    #allocation19 [shape = 'u8[32768]{0}', space=vmem, size = 0x8000, scoped, tag = 'input window, operand 10, single buffered']
    #allocation20 [shape = 'u8[131072]{0}', space=vmem, size = 0x20000, scoped, tag = 'input window, operand 11, single buffered']
    #allocation21 [shape = 's32[1]{0}', space=sflag, size = 0x4, scoped, tag = 'scoped memory for tpu_custom_call.1']
    #allocation22 [shape = 'u8[1024]{0}', space=vmem, size = 0x400, scoped, tag = 'input window, operand 13, single buffered']
    #allocation23 [shape = 'u8[16384]{0}', space=vmem, size = 0x4000, scoped, tag = 'output window, operand 0']
    #allocation24 [shape = 'u8[16384]{0}', space=vmem, size = 0x4000, scoped, tag = 'output window, operand 1, single buffered']
    #allocation25 [shape = 's32[1]{0}', space=sflag, size = 0x4, scoped, tag = 'scoped memory for tpu_custom_call.1']
    #allocation26 [shape = 'u8[32768]{0}', space=vmem, size = 0x8000, scoped, tag = 'output window, operand 2, single buffered']
    %23 = vsyncpa [#allocation6], 0
    %s24 = scalar_lea.sflag [#allocation6], 1
    %25 = vsyncpa %s24, 0
    %26 = vsyncpa [#allocation9], 0
    %27 = vsyncpa [#allocation12], 0
    %28 = vsyncpa [#allocation15], 0
    %29 = vsyncpa [#allocation18], 0
    %30 = vsyncpa [#allocation21], 0
    %31 = vsyncpa [#allocation7], 0
    %s32 = scalar_lea.sflag [#allocation7], 1
    %33 = vsyncpa %s32, 0
    %34 = vsyncpa [#allocation25], 0
    loop: start=0, step=1, limit=14
    $region2: #{tpu_custom_call.1} parent=1 // loop_pre_header
      _
    $region3: #{tpu_custom_call.1} parent=1 // loop_header
      %s36 = sphi 0, %s40
      %p37 = scmp.ge.s32.totalorder %s36, 14
      %s43 = sphi 0, %s55
      %s44 = sphi 0, %s51
      %s45 = sphi 0, %s43
      %s46 = sphi 0, %s44
      %s47 = sphi 0, %s45
      %s48 = sphi 0, %s46
      %s60 = sphi 0, %s62
      %s63 = sphi 0, %s60
      %s64 = sphi 0, %s63
      %s80 = sphi 0, %s64
      %s86 = sphi 0, %s88
      %s89 = sphi 0, %s86
      %s90 = sphi 0, %s89
      %s106 = sphi 0, %s90
      %s112 = sphi 0, %s114
      %s115 = sphi 0, %s112
      %s116 = sphi 0, %s115
      %s132 = sphi 0, %s116
      %s138 = sphi 0, %s140
      %s141 = sphi 0, %s138
      %s142 = sphi 0, %s141
      %s158 = sphi 0, %s142
      %s162 = sphi 0, %s162
      %s164 = sphi 0, %s162
      %s165 = sphi 0, %s164
      %s179 = sphi 0, %s165
      %s183 = sphi 0, %s183
      %s185 = sphi 0, %s183
      %s186 = sphi 0, %s185
      %s200 = sphi 0, %s186
      %s204 = sphi 0, %s204
      %s206 = sphi 0, %s204
      %s207 = sphi 0, %s206
      %s221 = sphi 0, %s207
      %s225 = sphi 0, %s225
      %s227 = sphi 0, %s225
      %s228 = sphi 0, %s227
      %s242 = sphi 0, %s228
      %s246 = sphi 0, %s246
      %s248 = sphi 0, %s246
      %s249 = sphi 0, %s248
      %s263 = sphi 0, %s249
      %s267 = sphi 0, %s267
      %s269 = sphi 0, %s267
      %s270 = sphi 0, %s269
      %s284 = sphi 0, %s270
      %s288 = sphi 0, %s288
      %s290 = sphi 0, %s288
      %s291 = sphi 0, %s290
      %s305 = sphi 0, %s291
      %s309 = sphi 0, %s309
      %s311 = sphi 0, %s309
      %s312 = sphi 0, %s311
      %s326 = sphi 0, %s312
      %s330 = sphi 0, %s330
      %s332 = sphi 0, %s330
      %s333 = sphi 0, %s332
      %s347 = sphi 0, %s333
      %s351 = sphi 0, %s351
      %s353 = sphi 0, %s351
      %s354 = sphi 0, %s353
      %s368 = sphi 0, %s354
      %s372 = sphi 0, %s372
      %s374 = sphi 0, %s372
      %s375 = sphi 0, %s374
      %s389 = sphi 0, %s375
      %s397 = sphi 0, %s399
      %s400 = sphi 0, %s397
      %s401 = sphi 0, %s400
      %s417 = sphi 0, %s401
      %s423 = sphi 0, %s425
      %s426 = sphi 0, %s423
      %s427 = sphi 0, %s426
      %s443 = sphi 0, %s427
      %s449 = sphi 0, %s451
      %s452 = sphi 0, %s449
      %s453 = sphi 0, %s452
      %s469 = sphi 0, %s453
    $region4: #{tpu_custom_call.1} parent=1 // loop_header_branch
      %39 = sbr.rel (%p37) target = $region8
    $region5: #{tpu_custom_call.1} parent=1 // loop_body
      %s41 = ssub.s32 %s36, 1
      %s42 = ssub.s32 %s36, 2
      %s49 = sadd.s32 1, %s44
      %p50 = scmp.ge.s32.totalorder %s49, 12
      %s51 = scalar_select %p50, 0, %s49
      %s52 = sadd.s32 1, %s43
      %s53 = scalar_select %p50, %s52, %s43
      %p54 = scmp.ge.s32.totalorder %s53, 1
      %s55 = scalar_select %p54, 0, %s53
      %s56 = ssub.s32 %s44, %s51
      %s57 = ssub.s32 %s43, %s55
      %s58 = sor.u32 %s56, %s57
      %p59 = scmp.eq.s32.totalorder %s58, 0
      %s61 = sadd.s32 %s60, 1
      %s62 = scalar_select %p59, %s60, %s61
      %p65 = pneg %p59
      %p66 = scmp.eq.s32.totalorder %s36, 11
      %p67 = por %p65, %p66
      %p68 = scmp.ne.s32.totalorder %s60, %s63
      %p69 = scmp.eq.s32.totalorder %s36, 0
      %p70 = por %p68, %p69
      %p71 = scmp.ne.s32.totalorder %s60, %s63
      %p72 = scmp.eq.s32.totalorder %s41, 11
      %p73 = por %p71, %p72
      %p74 = scmp.ne.s32.totalorder %s63, %s64
      %p75 = scmp.eq.s32.totalorder %s41, 0
      %p76 = por %p74, %p75
      %p77 = scmp.ne.s32.totalorder %s63, %s64
      %p78 = scmp.eq.s32.totalorder %s42, 11
      %p79 = por %p77, %p78
      %p81 = scmp.ne.s32.totalorder %s64, %s80
      %p82 = scmp.eq.s32.totalorder %s42, 0
      %p83 = por %p81, %p82
      %s84 = ssub.s32 %s43, %s55
      %p85 = scmp.eq.s32.totalorder %s84, 0
      %s87 = sadd.s32 %s86, 1
      %s88 = scalar_select %p85, %s86, %s87
      %p91 = pneg %p85
      %p92 = scmp.eq.s32.totalorder %s36, 11
      %p93 = por %p91, %p92
      %p94 = scmp.ne.s32.totalorder %s86, %s89
      %p95 = scmp.eq.s32.totalorder %s36, 0
      %p96 = por %p94, %p95
      %p97 = scmp.ne.s32.totalorder %s86, %s89
      %p98 = scmp.eq.s32.totalorder %s41, 11
      %p99 = por %p97, %p98
      %p100 = scmp.ne.s32.totalorder %s89, %s90
      %p101 = scmp.eq.s32.totalorder %s41, 0
      %p102 = por %p100, %p101
      %p103 = scmp.ne.s32.totalorder %s89, %s90
      %p104 = scmp.eq.s32.totalorder %s42, 11
      %p105 = por %p103, %p104
      %p107 = scmp.ne.s32.totalorder %s90, %s106
      %p108 = scmp.eq.s32.totalorder %s42, 0
      %p109 = por %p107, %p108
      %s110 = ssub.s32 %s43, %s55
      %p111 = scmp.eq.s32.totalorder %s110, 0
      %s113 = sadd.s32 %s112, 1
      %s114 = scalar_select %p111, %s112, %s113
      %p117 = pneg %p111
      %p118 = scmp.eq.s32.totalorder %s36, 11
      %p119 = por %p117, %p118
      %p120 = scmp.ne.s32.totalorder %s112, %s115
      %p121 = scmp.eq.s32.totalorder %s36, 0
      %p122 = por %p120, %p121
      %p123 = scmp.ne.s32.totalorder %s112, %s115
      %p124 = scmp.eq.s32.totalorder %s41, 11
      %p125 = por %p123, %p124
      %p126 = scmp.ne.s32.totalorder %s115, %s116
      %p127 = scmp.eq.s32.totalorder %s41, 0
      %p128 = por %p126, %p127
      %p129 = scmp.ne.s32.totalorder %s115, %s116
      %p130 = scmp.eq.s32.totalorder %s42, 11
      %p131 = por %p129, %p130
      %p133 = scmp.ne.s32.totalorder %s116, %s132
      %p134 = scmp.eq.s32.totalorder %s42, 0
      %p135 = por %p133, %p134
      %s136 = ssub.s32 %s43, %s55
      %p137 = scmp.eq.s32.totalorder %s136, 0
      %s139 = sadd.s32 %s138, 1
      %s140 = scalar_select %p137, %s138, %s139
      %p143 = pneg %p137
      %p144 = scmp.eq.s32.totalorder %s36, 11
      %p145 = por %p143, %p144
      %p146 = scmp.ne.s32.totalorder %s138, %s141
      %p147 = scmp.eq.s32.totalorder %s36, 0
      %p148 = por %p146, %p147
      %p149 = scmp.ne.s32.totalorder %s138, %s141
      %p150 = scmp.eq.s32.totalorder %s41, 11
      %p151 = por %p149, %p150
      %p152 = scmp.ne.s32.totalorder %s141, %s142
      %p153 = scmp.eq.s32.totalorder %s41, 0
      %p154 = por %p152, %p153
      %p155 = scmp.ne.s32.totalorder %s141, %s142
      %p156 = scmp.eq.s32.totalorder %s42, 11
      %p157 = por %p155, %p156
      %p159 = scmp.ne.s32.totalorder %s142, %s158
      %p160 = scmp.eq.s32.totalorder %s42, 0
      %p161 = por %p159, %p160
      %s163 = sadd.s32 %s162, 1
      %p166 = scmp.eq.s32.totalorder %s36, 11
      %p167 = scmp.ne.s32.totalorder %s162, %s164
      %p168 = scmp.eq.s32.totalorder %s36, 0
      %p169 = por %p167, %p168
      %p170 = scmp.ne.s32.totalorder %s162, %s164
      %p171 = scmp.eq.s32.totalorder %s41, 11
      %p172 = por %p170, %p171
      %p173 = scmp.ne.s32.totalorder %s164, %s165
      %p174 = scmp.eq.s32.totalorder %s41, 0
      %p175 = por %p173, %p174
      %p176 = scmp.ne.s32.totalorder %s164, %s165
      %p177 = scmp.eq.s32.totalorder %s42, 11
      %p178 = por %p176, %p177
      %p180 = scmp.ne.s32.totalorder %s165, %s179
      %p181 = scmp.eq.s32.totalorder %s42, 0
      %p182 = por %p180, %p181
      %s184 = sadd.s32 %s183, 1
      %p187 = scmp.eq.s32.totalorder %s36, 11
      %p188 = scmp.ne.s32.totalorder %s183, %s185
      %p189 = scmp.eq.s32.totalorder %s36, 0
      %p190 = por %p188, %p189
      %p191 = scmp.ne.s32.totalorder %s183, %s185
      %p192 = scmp.eq.s32.totalorder %s41, 11
      %p193 = por %p191, %p192
      %p194 = scmp.ne.s32.totalorder %s185, %s186
      %p195 = scmp.eq.s32.totalorder %s41, 0
      %p196 = por %p194, %p195
      %p197 = scmp.ne.s32.totalorder %s185, %s186
      %p198 = scmp.eq.s32.totalorder %s42, 11
      %p199 = por %p197, %p198
      %p201 = scmp.ne.s32.totalorder %s186, %s200
      %p202 = scmp.eq.s32.totalorder %s42, 0
      %p203 = por %p201, %p202
      %s205 = sadd.s32 %s204, 1
      %p208 = scmp.eq.s32.totalorder %s36, 11
      %p209 = scmp.ne.s32.totalorder %s204, %s206
      %p210 = scmp.eq.s32.totalorder %s36, 0
      %p211 = por %p209, %p210
      %p212 = scmp.ne.s32.totalorder %s204, %s206
      %p213 = scmp.eq.s32.totalorder %s41, 11
      %p214 = por %p212, %p213
      %p215 = scmp.ne.s32.totalorder %s206, %s207
      %p216 = scmp.eq.s32.totalorder %s41, 0
      %p217 = por %p215, %p216
      %p218 = scmp.ne.s32.totalorder %s206, %s207
      %p219 = scmp.eq.s32.totalorder %s42, 11
      %p220 = por %p218, %p219
      %p222 = scmp.ne.s32.totalorder %s207, %s221
      %p223 = scmp.eq.s32.totalorder %s42, 0
      %p224 = por %p222, %p223
      %s226 = sadd.s32 %s225, 1
      %p229 = scmp.eq.s32.totalorder %s36, 11
      %p230 = scmp.ne.s32.totalorder %s225, %s227
      %p231 = scmp.eq.s32.totalorder %s36, 0
      %p232 = por %p230, %p231
      %p233 = scmp.ne.s32.totalorder %s225, %s227
      %p234 = scmp.eq.s32.totalorder %s41, 11
      %p235 = por %p233, %p234
      %p236 = scmp.ne.s32.totalorder %s227, %s228
      %p237 = scmp.eq.s32.totalorder %s41, 0
      %p238 = por %p236, %p237
      %p239 = scmp.ne.s32.totalorder %s227, %s228
      %p240 = scmp.eq.s32.totalorder %s42, 11
      %p241 = por %p239, %p240
      %p243 = scmp.ne.s32.totalorder %s228, %s242
      %p244 = scmp.eq.s32.totalorder %s42, 0
      %p245 = por %p243, %p244
      %s247 = sadd.s32 %s246, 1
      %p250 = scmp.eq.s32.totalorder %s36, 11
      %p251 = scmp.ne.s32.totalorder %s246, %s248
      %p252 = scmp.eq.s32.totalorder %s36, 0
      %p253 = por %p251, %p252
      %p254 = scmp.ne.s32.totalorder %s246, %s248
      %p255 = scmp.eq.s32.totalorder %s41, 11
      %p256 = por %p254, %p255
      %p257 = scmp.ne.s32.totalorder %s248, %s249
      %p258 = scmp.eq.s32.totalorder %s41, 0
      %p259 = por %p257, %p258
      %p260 = scmp.ne.s32.totalorder %s248, %s249
      %p261 = scmp.eq.s32.totalorder %s42, 11
      %p262 = por %p260, %p261
      %p264 = scmp.ne.s32.totalorder %s249, %s263
      %p265 = scmp.eq.s32.totalorder %s42, 0
      %p266 = por %p264, %p265
      %s268 = sadd.s32 %s267, 1
      %p271 = scmp.eq.s32.totalorder %s36, 11
      %p272 = scmp.ne.s32.totalorder %s267, %s269
      %p273 = scmp.eq.s32.totalorder %s36, 0
      %p274 = por %p272, %p273
      %p275 = scmp.ne.s32.totalorder %s267, %s269
      %p276 = scmp.eq.s32.totalorder %s41, 11
      %p277 = por %p275, %p276
      %p278 = scmp.ne.s32.totalorder %s269, %s270
      %p279 = scmp.eq.s32.totalorder %s41, 0
      %p280 = por %p278, %p279
      %p281 = scmp.ne.s32.totalorder %s269, %s270
      %p282 = scmp.eq.s32.totalorder %s42, 11
      %p283 = por %p281, %p282
      %p285 = scmp.ne.s32.totalorder %s270, %s284
      %p286 = scmp.eq.s32.totalorder %s42, 0
      %p287 = por %p285, %p286
      %s289 = sadd.s32 %s288, 1
      %p292 = scmp.eq.s32.totalorder %s36, 11
      %p293 = scmp.ne.s32.totalorder %s288, %s290
      %p294 = scmp.eq.s32.totalorder %s36, 0
      %p295 = por %p293, %p294
      %p296 = scmp.ne.s32.totalorder %s288, %s290
      %p297 = scmp.eq.s32.totalorder %s41, 11
      %p298 = por %p296, %p297
      %p299 = scmp.ne.s32.totalorder %s290, %s291
      %p300 = scmp.eq.s32.totalorder %s41, 0
      %p301 = por %p299, %p300
      %p302 = scmp.ne.s32.totalorder %s290, %s291
      %p303 = scmp.eq.s32.totalorder %s42, 11
      %p304 = por %p302, %p303
      %p306 = scmp.ne.s32.totalorder %s291, %s305
      %p307 = scmp.eq.s32.totalorder %s42, 0
      %p308 = por %p306, %p307
      %s310 = sadd.s32 %s309, 1
      %p313 = scmp.eq.s32.totalorder %s36, 11
      %p314 = scmp.ne.s32.totalorder %s309, %s311
      %p315 = scmp.eq.s32.totalorder %s36, 0
      %p316 = por %p314, %p315
      %p317 = scmp.ne.s32.totalorder %s309, %s311
      %p318 = scmp.eq.s32.totalorder %s41, 11
      %p319 = por %p317, %p318
      %p320 = scmp.ne.s32.totalorder %s311, %s312
      %p321 = scmp.eq.s32.totalorder %s41, 0
      %p322 = por %p320, %p321
      %p323 = scmp.ne.s32.totalorder %s311, %s312
      %p324 = scmp.eq.s32.totalorder %s42, 11
      %p325 = por %p323, %p324
      %p327 = scmp.ne.s32.totalorder %s312, %s326
      %p328 = scmp.eq.s32.totalorder %s42, 0
      %p329 = por %p327, %p328
      %s331 = sadd.s32 %s330, 1
      %p334 = scmp.eq.s32.totalorder %s36, 11
      %p335 = scmp.ne.s32.totalorder %s330, %s332
      %p336 = scmp.eq.s32.totalorder %s36, 0
      %p337 = por %p335, %p336
      %p338 = scmp.ne.s32.totalorder %s330, %s332
      %p339 = scmp.eq.s32.totalorder %s41, 11
      %p340 = por %p338, %p339
      %p341 = scmp.ne.s32.totalorder %s332, %s333
      %p342 = scmp.eq.s32.totalorder %s41, 0
      %p343 = por %p341, %p342
      %p344 = scmp.ne.s32.totalorder %s332, %s333
      %p345 = scmp.eq.s32.totalorder %s42, 11
      %p346 = por %p344, %p345
      %p348 = scmp.ne.s32.totalorder %s333, %s347
      %p349 = scmp.eq.s32.totalorder %s42, 0
      %p350 = por %p348, %p349
      %s352 = sadd.s32 %s351, 1
      %p355 = scmp.eq.s32.totalorder %s36, 11
      %p356 = scmp.ne.s32.totalorder %s351, %s353
      %p357 = scmp.eq.s32.totalorder %s36, 0
      %p358 = por %p356, %p357
      %p359 = scmp.ne.s32.totalorder %s351, %s353
      %p360 = scmp.eq.s32.totalorder %s41, 11
      %p361 = por %p359, %p360
      %p362 = scmp.ne.s32.totalorder %s353, %s354
      %p363 = scmp.eq.s32.totalorder %s41, 0
      %p364 = por %p362, %p363
      %p365 = scmp.ne.s32.totalorder %s353, %s354
      %p366 = scmp.eq.s32.totalorder %s42, 11
      %p367 = por %p365, %p366
      %p369 = scmp.ne.s32.totalorder %s354, %s368
      %p370 = scmp.eq.s32.totalorder %s42, 0
      %p371 = por %p369, %p370
      %s373 = sadd.s32 %s372, 1
      %p376 = scmp.eq.s32.totalorder %s36, 11
      %p377 = scmp.ne.s32.totalorder %s372, %s374
      %p378 = scmp.eq.s32.totalorder %s36, 0
      %p379 = por %p377, %p378
      %p380 = scmp.ne.s32.totalorder %s372, %s374
      %p381 = scmp.eq.s32.totalorder %s41, 11
      %p382 = por %p380, %p381
      %p383 = scmp.ne.s32.totalorder %s374, %s375
      %p384 = scmp.eq.s32.totalorder %s41, 0
      %p385 = por %p383, %p384
      %p386 = scmp.ne.s32.totalorder %s374, %s375
      %p387 = scmp.eq.s32.totalorder %s42, 11
      %p388 = por %p386, %p387
      %p390 = scmp.ne.s32.totalorder %s375, %s389
      %p391 = scmp.eq.s32.totalorder %s42, 0
      %p392 = por %p390, %p391
      %s393 = ssub.s32 %s44, %s51
      %s394 = ssub.s32 %s43, %s55
      %s395 = sor.u32 %s393, %s394
      %p396 = scmp.eq.s32.totalorder %s395, 0
      %s398 = sadd.s32 %s397, 1
      %s399 = scalar_select %p396, %s397, %s398
      %p402 = pneg %p396
      %p403 = scmp.eq.s32.totalorder %s36, 11
      %p404 = por %p402, %p403
      %p405 = scmp.ne.s32.totalorder %s397, %s400
      %p406 = scmp.eq.s32.totalorder %s36, 0
      %p407 = por %p405, %p406
      %p408 = scmp.ne.s32.totalorder %s397, %s400
      %p409 = scmp.eq.s32.totalorder %s41, 11
      %p410 = por %p408, %p409
      %p411 = scmp.ne.s32.totalorder %s400, %s401
      %p412 = scmp.eq.s32.totalorder %s41, 0
      %p413 = por %p411, %p412
      %p414 = scmp.ne.s32.totalorder %s400, %s401
      %p415 = scmp.eq.s32.totalorder %s42, 11
      %p416 = por %p414, %p415
      %p418 = scmp.ne.s32.totalorder %s401, %s417
      %p419 = scmp.eq.s32.totalorder %s42, 0
      %p420 = por %p418, %p419
      %s421 = ssub.s32 %s43, %s55
      %p422 = scmp.eq.s32.totalorder %s421, 0
      %s424 = sadd.s32 %s423, 1
      %s425 = scalar_select %p422, %s423, %s424
      %p428 = pneg %p422
      %p429 = scmp.eq.s32.totalorder %s36, 11
      %p430 = por %p428, %p429
      %p431 = scmp.ne.s32.totalorder %s423, %s426
      %p432 = scmp.eq.s32.totalorder %s36, 0
      %p433 = por %p431, %p432
      %p434 = scmp.ne.s32.totalorder %s423, %s426
      %p435 = scmp.eq.s32.totalorder %s41, 11
      %p436 = por %p434, %p435
      %p437 = scmp.ne.s32.totalorder %s426, %s427
      %p438 = scmp.eq.s32.totalorder %s41, 0
      %p439 = por %p437, %p438
      %p440 = scmp.ne.s32.totalorder %s426, %s427
      %p441 = scmp.eq.s32.totalorder %s42, 11
      %p442 = por %p440, %p441
      %p444 = scmp.ne.s32.totalorder %s427, %s443
      %p445 = scmp.eq.s32.totalorder %s42, 0
      %p446 = por %p444, %p445
      %s447 = ssub.s32 %s43, %s55
      %p448 = scmp.eq.s32.totalorder %s447, 0
      %s450 = sadd.s32 %s449, 1
      %s451 = scalar_select %p448, %s449, %s450
      %p454 = pneg %p448
      %p455 = scmp.eq.s32.totalorder %s36, 11
      %p456 = por %p454, %p455
      %p457 = scmp.ne.s32.totalorder %s449, %s452
      %p458 = scmp.eq.s32.totalorder %s36, 0
      %p459 = por %p457, %p458
      %p460 = scmp.ne.s32.totalorder %s449, %s452
      %p461 = scmp.eq.s32.totalorder %s41, 11
      %p462 = por %p460, %p461
      %p463 = scmp.ne.s32.totalorder %s452, %s453
      %p464 = scmp.eq.s32.totalorder %s41, 0
      %p465 = por %p463, %p464
      %p466 = scmp.ne.s32.totalorder %s452, %s453
      %p467 = scmp.eq.s32.totalorder %s42, 11
      %p468 = por %p466, %p467
      %p470 = scmp.ne.s32.totalorder %s453, %s469
      %p471 = scmp.eq.s32.totalorder %s42, 0
      %p472 = por %p470, %p471
      %p473 = scmp.le.s32.totalorder 1, %s36
      %p474 = scmp.lt.s32.totalorder %s36, 13
      %p475 = pnand %p473, %p474
      %p476 = pneg %p475
      // Predicated region
      $region9: #{tpu_custom_call.1} parent=5 // pred_check
        _
      $region10: #{tpu_custom_call.1} parent=5 // pred_check_branch
        %478 = sbr.rel (%p475) target = $region12
      $region11: #{tpu_custom_call.1} parent=5 // pred_region
        %s479 = ssub.s32 %s36, 1
        // Predicated region
        $region13: #{tpu_custom_call.1} parent=11 // pred_check
          %p480 = pneg %p102
        $region14: #{tpu_custom_call.1} parent=11 // pred_check_branch
          %482 = sbr.rel (%p480) target = $region16
        $region15: #{tpu_custom_call.1} parent=11 // pred_region
          %s483 = smul.u32 2, %s45
          %s485 = ssub.s32 256, 256
          %486 = vsyncadd [#allocation9], %s485
          %s487 = smul.addr %s483, 128
          %s488 = scalar_lea.hbm %s1, %s487
          %s489 = sshll.u32 [#allocation8], 4
          %s490 = int_to_ptr.vmem [resolvable:$true] %s489
          %495 = dma.hbm_to_vmem [thread:$0]  %s488, 256, %s490, [#allocation9], 128, 128, 8
        $region16: #{tpu_custom_call.1} parent=11 // pred_fallthru
          _
        // Predicated region
        $region17: #{tpu_custom_call.1} parent=11 // pred_check
          %p496 = pneg %p128
        $region18: #{tpu_custom_call.1} parent=11 // pred_check_branch
          %498 = sbr.rel (%p496) target = $region20
        $region19: #{tpu_custom_call.1} parent=11 // pred_region
          %s499 = smul.u32 2, %s45
          %s501 = ssub.s32 256, 256
          %502 = vsyncadd [#allocation9], %s501
          %s503 = smul.addr %s499, 128
          %s504 = scalar_lea.hbm %s2, %s503
          %s505 = sshll.u32 [#allocation10], 4
          %s506 = int_to_ptr.vmem [resolvable:$true] %s505
          %511 = dma.hbm_to_vmem [thread:$0]  %s504, 256, %s506, [#allocation9], 128, 128, 8
        $region20: #{tpu_custom_call.1} parent=11 // pred_fallthru
          _
        // Predicated region
        $region21: #{tpu_custom_call.1} parent=11 // pred_check
          %p512 = pneg %p154
        $region22: #{tpu_custom_call.1} parent=11 // pred_check_branch
          %514 = sbr.rel (%p512) target = $region24
        $region23: #{tpu_custom_call.1} parent=11 // pred_region
          %s515 = smul.u32 2, %s45
          %p516 = scmp.lt.s32.totalorder %s515, 1
          %s517 = scalar_select %p516, %s515, 1
          %s518 = smul.addr %s517, 4
          %s519 = scalar_lea.vmem %s3, %s518
          %s520 = smul.u32 2, %s45
        $region24: #{tpu_custom_call.1} parent=11 // pred_fallthru
          _
        // Predicated region
        $region25: #{tpu_custom_call.1} parent=11 // pred_check
          %p521 = pneg %p175
        $region26: #{tpu_custom_call.1} parent=11 // pred_check_branch
          %523 = sbr.rel (%p521) target = $region28
        $region27: #{tpu_custom_call.1} parent=11 // pred_region
          %s525 = ssub.s32 5120, 5120
          %526 = vsyncadd [#allocation12], %s525
          %s527 = sshll.u32 [#allocation11], 4
          %s528 = int_to_ptr.vmem [resolvable:$true] %s527
          %533 = dma.hbm_to_vmem [thread:$0]  %s4, 5120, %s528, [#allocation12], 320, 320, 20
        $region28: #{tpu_custom_call.1} parent=11 // pred_fallthru
          _
        // Predicated region
        $region29: #{tpu_custom_call.1} parent=11 // pred_check
          %p534 = pneg %p196
        $region30: #{tpu_custom_call.1} parent=11 // pred_check_branch
          %536 = sbr.rel (%p534) target = $region32
        $region31: #{tpu_custom_call.1} parent=11 // pred_region
          %s538 = ssub.s32 5120, 5120
          %539 = vsyncadd [#allocation12], %s538
          %s540 = sshll.u32 [#allocation13], 4
          %s541 = int_to_ptr.vmem [resolvable:$true] %s540
          %546 = dma.hbm_to_vmem [thread:$0]  %s5, 5120, %s541, [#allocation12], 320, 320, 20
        $region32: #{tpu_custom_call.1} parent=11 // pred_fallthru
          _
        // Predicated region
        $region33: #{tpu_custom_call.1} parent=11 // pred_check
          %p547 = pneg %p217
        $region34: #{tpu_custom_call.1} parent=11 // pred_check_branch
          %549 = sbr.rel (%p547) target = $region36
        $region35: #{tpu_custom_call.1} parent=11 // pred_region
          %s551 = ssub.s32 80, 80
          %552 = vsyncadd [#allocation15], %s551
          %s554 = sshll.u32 [#allocation14], 4
          %s555 = int_to_ptr.vmem [resolvable:$true] %s554
          %557 = dma.hbm_to_vmem [thread:$0]  %s6, 80, %s555, [#allocation15]
        $region36: #{tpu_custom_call.1} parent=11 // pred_fallthru
          _
        // Predicated region
        $region37: #{tpu_custom_call.1} parent=11 // pred_check
          %p558 = pneg %p238
        $region38: #{tpu_custom_call.1} parent=11 // pred_check_branch
          %560 = sbr.rel (%p558) target = $region40
        $region39: #{tpu_custom_call.1} parent=11 // pred_region
          %s562 = ssub.s32 2048, 2048
          %563 = vsyncadd [#allocation15], %s562
          %s564 = sshll.u32 [#allocation16], 4
          %s565 = int_to_ptr.vmem [resolvable:$true] %s564
          %570 = dma.hbm_to_vmem [thread:$0]  %s7, 2048, %s565, [#allocation15], 128, 128, 8
        $region40: #{tpu_custom_call.1} parent=11 // pred_fallthru
          _
        // Predicated region
        $region41: #{tpu_custom_call.1} parent=11 // pred_check
          %p571 = pneg %p259
        $region42: #{tpu_custom_call.1} parent=11 // pred_check_branch
          %573 = sbr.rel (%p571) target = $region44
        $region43: #{tpu_custom_call.1} parent=11 // pred_region
          _
        $region44: #{tpu_custom_call.1} parent=11 // pred_fallthru
          _
        // Predicated region
        $region45: #{tpu_custom_call.1} parent=11 // pred_check
          %p574 = pneg %p280
        $region46: #{tpu_custom_call.1} parent=11 // pred_check_branch
          %576 = sbr.rel (%p574) target = $region48
        $region47: #{tpu_custom_call.1} parent=11 // pred_region
          %s578 = ssub.s32 1024, 1024
          %579 = vsyncadd [#allocation18], %s578
          %s580 = sshll.u32 [#allocation17], 4
          %s581 = int_to_ptr.vmem [resolvable:$true] %s580
          %586 = dma.hbm_to_vmem [thread:$0]  %s9, 1024, %s581, [#allocation18], 64, 64, 4
        $region48: #{tpu_custom_call.1} parent=11 // pred_fallthru
          _
        // Predicated region
        $region49: #{tpu_custom_call.1} parent=11 // pred_check
          %p587 = pneg %p301
        $region50: #{tpu_custom_call.1} parent=11 // pred_check_branch
          %589 = sbr.rel (%p587) target = $region52
        $region51: #{tpu_custom_call.1} parent=11 // pred_region
          %s591 = ssub.s32 1024, 1024
          %592 = vsyncadd [#allocation18], %s591
          %s593 = sshll.u32 [#allocation19], 4
          %s594 = int_to_ptr.vmem [resolvable:$true] %s593
          %599 = dma.hbm_to_vmem [thread:$0]  %s10, 1024, %s594, [#allocation18], 64, 64, 4
        $region52: #{tpu_custom_call.1} parent=11 // pred_fallthru
          _
        // Predicated region
        $region53: #{tpu_custom_call.1} parent=11 // pred_check
          %p600 = pneg %p322
        $region54: #{tpu_custom_call.1} parent=11 // pred_check_branch
          %602 = sbr.rel (%p600) target = $region56
        $region55: #{tpu_custom_call.1} parent=11 // pred_region
          %s604 = ssub.s32 4096, 4096
          %605 = vsyncadd [#allocation21], %s604
          %s606 = sshll.u32 [#allocation20], 4
          %s607 = int_to_ptr.vmem [resolvable:$true] %s606
          %612 = dma.hbm_to_vmem [thread:$0]  %s11, 4096, %s607, [#allocation21], 256, 256, 16
        $region56: #{tpu_custom_call.1} parent=11 // pred_fallthru
          _
        // Predicated region
        $region57: #{tpu_custom_call.1} parent=11 // pred_check
          %p613 = pneg %p343
        $region58: #{tpu_custom_call.1} parent=11 // pred_check_branch
          %615 = sbr.rel (%p613) target = $region60
        $region59: #{tpu_custom_call.1} parent=11 // pred_region
          _
        $region60: #{tpu_custom_call.1} parent=11 // pred_fallthru
          _
        // Predicated region
        $region61: #{tpu_custom_call.1} parent=11 // pred_check
          %p616 = pneg %p364
        $region62: #{tpu_custom_call.1} parent=11 // pred_check_branch
          %618 = sbr.rel (%p616) target = $region64
        $region63: #{tpu_custom_call.1} parent=11 // pred_region
          %s620 = ssub.s32 32, 32
          %621 = vsyncadd [#allocation21], %s620
          %s623 = sshll.u32 [#allocation22], 4
          %s624 = int_to_ptr.vmem [resolvable:$true] %s623
          %626 = dma.hbm_to_vmem [thread:$0]  %s13, 32, %s624, [#allocation21]
        $region64: #{tpu_custom_call.1} parent=11 // pred_fallthru
          _
        // Predicated region
        $region65: #{tpu_custom_call.1} parent=11 // pred_check
          %p627 = pneg %p385
        $region66: #{tpu_custom_call.1} parent=11 // pred_check_branch
          %629 = sbr.rel (%p627) target = $region68
        $region67: #{tpu_custom_call.1} parent=11 // pred_region
          _
        $region68: #{tpu_custom_call.1} parent=11 // pred_fallthru
          _
      $region12: #{tpu_custom_call.1} parent=5 // pred_fallthru
        _
      %p630 = scmp.lt.s32.totalorder %s36, 12
      // Predicated region
      $region69: #{tpu_custom_call.1} parent=5 // pred_check
        %p631 = pneg %p630
      $region70: #{tpu_custom_call.1} parent=5 // pred_check_branch
        %633 = sbr.rel (%p631) target = $region72
      $region71: #{tpu_custom_call.1} parent=5 // pred_region
        // Predicated region
        $region73: #{tpu_custom_call.1} parent=71 // pred_check
          %p634 = pneg %p70
        $region74: #{tpu_custom_call.1} parent=71 // pred_check_branch
          %636 = sbr.rel (%p634) target = $region76
        $region75: #{tpu_custom_call.1} parent=71 // pred_region
          %s637 = sand.u32 %s60, 1
          %s638 = scalar_lea.sflag [#allocation6], %s637
          %s639 = sand.u32 %s60, 1
          %s640 = smul.addr %s639, 8
          %s641 = scalar_lea.vmem [#allocation5], %s640
          %s642 = smul.u32 2, %s43
          %s644 = ssub.s32 128, 128
          %645 = vsyncadd %s638, %s644
          %s646 = smul.addr %s44, 2
          %s647 = sadd.s32 %s642, %s646
          %s648 = smul.addr %s647, 64
          %s649 = scalar_lea.hbm %s0, %s648
          %s650 = sshll.u32 %s641, 4
          %s651 = int_to_ptr.vmem [resolvable:$true] %s650
          %656 = dma.hbm_to_vmem [thread:$0]  %s649, 128, %s651, %s638, 64, 64, 4
        $region76: #{tpu_custom_call.1} parent=71 // pred_fallthru
          _
      $region72: #{tpu_custom_call.1} parent=5 // pred_fallthru
        _
      %p657 = scmp.le.s32.totalorder 1, %s36
      %p658 = scmp.lt.s32.totalorder %s36, 13
      %p659 = pnand %p657, %p658
      %p660 = pneg %p659
      // Predicated region
      $region77: #{tpu_custom_call.1} parent=5 // pred_check
        _
      $region78: #{tpu_custom_call.1} parent=5 // pred_check_branch
        %662 = sbr.rel (%p659) target = $region80
      $region79: #{tpu_custom_call.1} parent=5 // pred_region
        %s663 = ssub.s32 %s36, 1
        %s664 = sand.u32 %s63, 1
        %s665 = scalar_lea.sflag [#allocation6], %s664
        %s666 = sand.u32 %s63, 1
        %s667 = smul.addr %s666, 8
        %s668 = scalar_lea.vmem [#allocation5], %s667
        // Predicated region
        $region81: #{tpu_custom_call.1} parent=79 // pred_check
          %p669 = pneg %p76
        $region82: #{tpu_custom_call.1} parent=79 // pred_check_branch
          %671 = sbr.rel (%p669) target = $region84
        $region83: #{tpu_custom_call.1} parent=79 // pred_region
          %672 = dma.done %s665, 128
        $region84: #{tpu_custom_call.1} parent=79 // pred_fallthru
          _
        // Predicated region
        $region85: #{tpu_custom_call.1} parent=79 // pred_check
          %p673 = pneg %p102
        $region86: #{tpu_custom_call.1} parent=79 // pred_check_branch
          %675 = sbr.rel (%p673) target = $region88
        $region87: #{tpu_custom_call.1} parent=79 // pred_region
          %676 = dma.done [#allocation9], 256
        $region88: #{tpu_custom_call.1} parent=79 // pred_fallthru
          _
        // Predicated region
        $region89: #{tpu_custom_call.1} parent=79 // pred_check
          %p677 = pneg %p128
        $region90: #{tpu_custom_call.1} parent=79 // pred_check_branch
          %679 = sbr.rel (%p677) target = $region92
        $region91: #{tpu_custom_call.1} parent=79 // pred_region
          %680 = dma.done [#allocation9], 256
        $region92: #{tpu_custom_call.1} parent=79 // pred_fallthru
          _
        // Predicated region
        $region93: #{tpu_custom_call.1} parent=79 // pred_check
          %p681 = pneg %p175
        $region94: #{tpu_custom_call.1} parent=79 // pred_check_branch
          %683 = sbr.rel (%p681) target = $region96
        $region95: #{tpu_custom_call.1} parent=79 // pred_region
          %684 = dma.done [#allocation12], 5120
        $region96: #{tpu_custom_call.1} parent=79 // pred_fallthru
          _
        // Predicated region
        $region97: #{tpu_custom_call.1} parent=79 // pred_check
          %p685 = pneg %p196
        $region98: #{tpu_custom_call.1} parent=79 // pred_check_branch
          %687 = sbr.rel (%p685) target = $region100
        $region99: #{tpu_custom_call.1} parent=79 // pred_region
          %688 = dma.done [#allocation12], 5120
        $region100: #{tpu_custom_call.1} parent=79 // pred_fallthru
          _
        // Predicated region
        $region101: #{tpu_custom_call.1} parent=79 // pred_check
          %p689 = pneg %p217
        $region102: #{tpu_custom_call.1} parent=79 // pred_check_branch
          %691 = sbr.rel (%p689) target = $region104
        $region103: #{tpu_custom_call.1} parent=79 // pred_region
          %692 = dma.done [#allocation15], 80
        $region104: #{tpu_custom_call.1} parent=79 // pred_fallthru
          _
        // Predicated region
        $region105: #{tpu_custom_call.1} parent=79 // pred_check
          %p693 = pneg %p238
        $region106: #{tpu_custom_call.1} parent=79 // pred_check_branch
          %695 = sbr.rel (%p693) target = $region108
        $region107: #{tpu_custom_call.1} parent=79 // pred_region
          %696 = dma.done [#allocation15], 2048
        $region108: #{tpu_custom_call.1} parent=79 // pred_fallthru
          _
        // Predicated region
        $region109: #{tpu_custom_call.1} parent=79 // pred_check
          %p697 = pneg %p280
        $region110: #{tpu_custom_call.1} parent=79 // pred_check_branch
          %699 = sbr.rel (%p697) target = $region112
        $region111: #{tpu_custom_call.1} parent=79 // pred_region
          %700 = dma.done [#allocation18], 1024
        $region112: #{tpu_custom_call.1} parent=79 // pred_fallthru
          _
        // Predicated region
        $region113: #{tpu_custom_call.1} parent=79 // pred_check
          %p701 = pneg %p301
        $region114: #{tpu_custom_call.1} parent=79 // pred_check_branch
          %703 = sbr.rel (%p701) target = $region116
        $region115: #{tpu_custom_call.1} parent=79 // pred_region
          %704 = dma.done [#allocation18], 1024
        $region116: #{tpu_custom_call.1} parent=79 // pred_fallthru
          _
        // Predicated region
        $region117: #{tpu_custom_call.1} parent=79 // pred_check
          %p705 = pneg %p322
        $region118: #{tpu_custom_call.1} parent=79 // pred_check_branch
          %707 = sbr.rel (%p705) target = $region120
        $region119: #{tpu_custom_call.1} parent=79 // pred_region
          %708 = dma.done [#allocation21], 4096
        $region120: #{tpu_custom_call.1} parent=79 // pred_fallthru
          _
        // Predicated region
        $region121: #{tpu_custom_call.1} parent=79 // pred_check
          %p709 = pneg %p364
        $region122: #{tpu_custom_call.1} parent=79 // pred_check_branch
          %711 = sbr.rel (%p709) target = $region124
        $region123: #{tpu_custom_call.1} parent=79 // pred_region
          %712 = dma.done [#allocation21], 32
        $region124: #{tpu_custom_call.1} parent=79 // pred_fallthru
          _
        %s713 = sand.u32 %s63, 1
        %s714 = scalar_lea.sflag [#allocation6], %s713
        %s715 = sand.u32 %s63, 1
        %s716 = smul.addr %s715, 8
        %s717 = scalar_lea.vmem [#allocation5], %s716
        %p718 = pneg %p76
        %p719 = pneg %p73
        %p720 = pneg %p102
        %p721 = pneg %p99
        %p722 = pneg %p128
        %p723 = pneg %p125
        %s724 = smul.u32 2, %s45
        %p725 = scmp.lt.s32.totalorder %s724, 1
        %s726 = scalar_select %p725, %s724, 1
        %s727 = smul.addr %s726, 4
        %s728 = scalar_lea.vmem %s3, %s727
        %p729 = pneg %p154
        %p730 = pneg %p151
        %p731 = pneg %p175
        %p732 = pneg %p172
        %p733 = pneg %p196
        %p734 = pneg %p193
        %p735 = pneg %p217
        %p736 = pneg %p214
        %p737 = pneg %p238
        %p738 = pneg %p235
        %p739 = pneg %p259
        %p740 = pneg %p256
        %p741 = pneg %p280
        %p742 = pneg %p277
        %p743 = pneg %p301
        %p744 = pneg %p298
        %p745 = pneg %p322
        %p746 = pneg %p319
        %p747 = pneg %p343
        %p748 = pneg %p340
        %p749 = pneg %p364
        %p750 = pneg %p361
        %p751 = pneg %p385
        %p752 = pneg %p382
        %p753 = pneg %p413
        %p754 = pneg %p410
        %s755 = sand.u32 %s400, 1
        %s756 = scalar_lea.sflag [#allocation7], %s755
        %s757 = sand.u32 %s400, 1
        %s758 = smul.addr %s757, 16
        %s759 = scalar_lea.vmem [#allocation23], %s758
        %p760 = pneg %p439
        %p761 = pneg %p436
        %p762 = pneg %p465
        %p763 = pneg %p462
        %s764 = smul.u32 2, %s45
        %s765 = smul.u32 2, %s45
        %s766 = smul.u32 2, %s45
        %s767 = smul.u32 2, %s45
        %p768 = scmp.lt.s32.totalorder %s767, 1
        %s769 = scalar_select %p768, %s767, 1
        %s770 = smul.addr %s769, 4
        %s771 = scalar_lea.vmem %s3, %s770
        %s772 = smul.u32 2, %s45
        %s773 = smul.u32 2, %s45
        %s774 = smul.u32 2, %s45
        %s775 = smul.u32 2, %s45
        %p777 = scmp.eq.s32.totalorder %s46, 0
        // Predicated region
        $region125: #{tpu_custom_call.1} parent=79 // pred_check
          %p778 = pneg %p777
        $region126: #{tpu_custom_call.1} parent=79 // pred_check_branch
          %780 = sbr.rel (%p778) target = $region128
        $region127: #{tpu_custom_call.1} parent=79 // pred_region
          %v781 = vld [vmem:[#allocation8] sm:$0xff]
          %v782 = vld [vmem:[#allocation8 + $0x8] sm:$0xff]
          %783 = vst [vmem:[#allocation2] sm:$0xff] %v781
          %784 = vst [vmem:[#allocation2 + $0x8] sm:$0xff] %v782
          %v785 = vld [vmem:[#allocation10] sm:$0xff]
          %v786 = vld [vmem:[#allocation10 + $0x8] sm:$0xff]
          %787 = vst [vmem:[#allocation3] sm:$0xff] %v785
          %788 = vst [vmem:[#allocation3 + $0x8] sm:$0xff] %v786
          %v789 = vld [vmem:[%s771] sm:$0xf]
          %v790 = vld [vmem:[%s771 + $0x4] sm:$0xf]
          %v791 = vld [vmem:[%s771 + $0x8] sm:$0xf]
          %v792 = vld [vmem:[%s771 + $0xc] sm:$0xf]
          %v793 = vld [vmem:[%s771 + $0x10] sm:$0xf]
          %v794 = vld [vmem:[%s771 + $0x14] sm:$0xf]
          %v795 = vld [vmem:[%s771 + $0x18] sm:$0xf]
          %v796 = vld [vmem:[%s771 + $0x1c] sm:$0xf]
          %v797 = vld [vmem:[%s771 + $0x20] sm:$0xf]
          %v798 = vld [vmem:[%s771 + $0x24] sm:$0xf]
          %v799 = vld [vmem:[%s771 + $0x28] sm:$0xf]
          %v800 = vld [vmem:[%s771 + $0x2c] sm:$0xf]
          %v801 = vld [vmem:[%s771 + $0x30] sm:$0xf]
          %v802 = vld [vmem:[%s771 + $0x34] sm:$0xf]
          %v803 = vld [vmem:[%s771 + $0x38] sm:$0xf]
          %v804 = vld [vmem:[%s771 + $0x3c] sm:$0xf]
          %805 = vst [vmem:[#allocation4] sm:$0xf] %v789
          %806 = vst [vmem:[#allocation4 + $0x4] sm:$0xf] %v790
          %807 = vst [vmem:[#allocation4 + $0x8] sm:$0xf] %v791
          %808 = vst [vmem:[#allocation4 + $0xc] sm:$0xf] %v792
          %809 = vst [vmem:[#allocation4 + $0x10] sm:$0xf] %v793
          %810 = vst [vmem:[#allocation4 + $0x14] sm:$0xf] %v794
          %811 = vst [vmem:[#allocation4 + $0x18] sm:$0xf] %v795
          %812 = vst [vmem:[#allocation4 + $0x1c] sm:$0xf] %v796
          %813 = vst [vmem:[#allocation4 + $0x20] sm:$0xf] %v797
          %814 = vst [vmem:[#allocation4 + $0x24] sm:$0xf] %v798
          %815 = vst [vmem:[#allocation4 + $0x28] sm:$0xf] %v799
          %816 = vst [vmem:[#allocation4 + $0x2c] sm:$0xf] %v800
          %817 = vst [vmem:[#allocation4 + $0x30] sm:$0xf] %v801
          %818 = vst [vmem:[#allocation4 + $0x34] sm:$0xf] %v802
          %819 = vst [vmem:[#allocation4 + $0x38] sm:$0xf] %v803
          %820 = vst [vmem:[#allocation4 + $0x3c] sm:$0xf] %v804
        $region128: #{tpu_custom_call.1} parent=79 // pred_fallthru
          _
        %v821 = vld [vmem:[#allocation2] sm:$0xff]
        %v822 = vld [vmem:[#allocation2 + $0x8] sm:$0xff]
        %v823 = vld [vmem:[#allocation3] sm:$0xff]
        %v824 = vld [vmem:[#allocation3 + $0x8] sm:$0xff]
        %v825 = vld [vmem:[%s668] sm:$0xf]
        %v826 = vld [vmem:[%s668 + $0x4] sm:$0xf]
        %v827 = vld [vmem:[#allocation4] sm:$0xf]
        %v828 = vld [vmem:[#allocation4 + $0x4] sm:$0xf]
        %v829 = vld [vmem:[#allocation4 + $0x8] sm:$0xf]
        %v830 = vld [vmem:[#allocation4 + $0xc] sm:$0xf]
        %v831 = vld [vmem:[#allocation4 + $0x10] sm:$0xf]
        %v832 = vld [vmem:[#allocation4 + $0x14] sm:$0xf]
        %v833 = vld [vmem:[#allocation4 + $0x18] sm:$0xf]
        %v834 = vld [vmem:[#allocation4 + $0x1c] sm:$0xf]
        %v835 = vld [vmem:[#allocation4 + $0x20] sm:$0xf]
        %v836 = vld [vmem:[#allocation4 + $0x24] sm:$0xf]
        %v837 = vld [vmem:[#allocation4 + $0x28] sm:$0xf]
        %v838 = vld [vmem:[#allocation4 + $0x2c] sm:$0xf]
        %v839 = vld [vmem:[#allocation4 + $0x30] sm:$0xf]
        %v840 = vld [vmem:[#allocation4 + $0x34] sm:$0xf]
        %v841 = vld [vmem:[#allocation4 + $0x38] sm:$0xf]
        %v842 = vld [vmem:[#allocation4 + $0x3c] sm:$0xf]
        %v843 = vld [vmem:[#allocation11] sm:$0xff]
        %v844 = vld [vmem:[#allocation11 + $0x8] sm:$0xff]
        %v845 = vld [vmem:[#allocation11 + $0x10] sm:$0xf]
        %v846 = vld [vmem:[#allocation11 + $0x14] sm:$0xff]
        %v847 = vld [vmem:[#allocation11 + $0x1c] sm:$0xff]
        %v848 = vld [vmem:[#allocation11 + $0x24] sm:$0xf]
        %v849 = vld [vmem:[#allocation11 + $0x28] sm:$0xff]
        %v850 = vld [vmem:[#allocation11 + $0x30] sm:$0xff]
        %v851 = vld [vmem:[#allocation11 + $0x38] sm:$0xf]
        %v852 = vld [vmem:[#allocation11 + $0x3c] sm:$0xff]
        %v853 = vld [vmem:[#allocation11 + $0x44] sm:$0xff]
        %v854 = vld [vmem:[#allocation11 + $0x4c] sm:$0xf]
        %v855 = vld [vmem:[#allocation11 + $0x50] sm:$0xff]
        %v856 = vld [vmem:[#allocation11 + $0x58] sm:$0xff]
        %v857 = vld [vmem:[#allocation11 + $0x60] sm:$0xf]
        %v858 = vld [vmem:[#allocation11 + $0x64] sm:$0xff]
        %v859 = vld [vmem:[#allocation11 + $0x6c] sm:$0xff]
        %v860 = vld [vmem:[#allocation11 + $0x74] sm:$0xf]
        %v861 = vld [vmem:[#allocation11 + $0x78] sm:$0xff]
        %v862 = vld [vmem:[#allocation11 + $0x80] sm:$0xff]
        %v863 = vld [vmem:[#allocation11 + $0x88] sm:$0xf]
        %v864 = vld [vmem:[#allocation11 + $0x8c] sm:$0xff]
        %v865 = vld [vmem:[#allocation11 + $0x94] sm:$0xff]
        %v866 = vld [vmem:[#allocation11 + $0x9c] sm:$0xf]
        %v867 = vld [vmem:[#allocation11 + $0xa0] sm:$0xff]
        %v868 = vld [vmem:[#allocation11 + $0xa8] sm:$0xff]
        %v869 = vld [vmem:[#allocation11 + $0xb0] sm:$0xf]
        %v870 = vld [vmem:[#allocation11 + $0xb4] sm:$0xff]
        %v871 = vld [vmem:[#allocation11 + $0xbc] sm:$0xff]
        %v872 = vld [vmem:[#allocation11 + $0xc4] sm:$0xf]
        %v873 = vld [vmem:[#allocation11 + $0xc8] sm:$0xff]
        %v874 = vld [vmem:[#allocation11 + $0xd0] sm:$0xff]
        %v875 = vld [vmem:[#allocation11 + $0xd8] sm:$0xf]
        %v876 = vld [vmem:[#allocation11 + $0xdc] sm:$0xff]
        %v877 = vld [vmem:[#allocation11 + $0xe4] sm:$0xff]
        %v878 = vld [vmem:[#allocation11 + $0xec] sm:$0xf]
        %v879 = vld [vmem:[#allocation11 + $0xf0] sm:$0xff]
        %v880 = vld [vmem:[#allocation11 + $0xf8] sm:$0xff]
        %v881 = vld [vmem:[#allocation11 + $0x100] sm:$0xf]
        %v882 = vld [vmem:[#allocation11 + $0x104] sm:$0xff]
        %v883 = vld [vmem:[#allocation11 + $0x10c] sm:$0xff]
        %v884 = vld [vmem:[#allocation11 + $0x114] sm:$0xf]
        %v885 = vld [vmem:[#allocation11 + $0x118] sm:$0xff]
        %v886 = vld [vmem:[#allocation11 + $0x120] sm:$0xff]
        %v887 = vld [vmem:[#allocation11 + $0x128] sm:$0xf]
        %v888 = vld [vmem:[#allocation11 + $0x12c] sm:$0xff]
        %v889 = vld [vmem:[#allocation11 + $0x134] sm:$0xff]
        %v890 = vld [vmem:[#allocation11 + $0x13c] sm:$0xf]
        %v891 = vpack.c.bf16 %v822, %v821
        %v892 = vld [vmem:[#allocation13] sm:$0xff]
        %v893 = vld [vmem:[#allocation13 + $0x8] sm:$0xff]
        %v894 = vld [vmem:[#allocation13 + $0x10] sm:$0xf]
        %v895 = vld [vmem:[#allocation13 + $0x14] sm:$0xff]
        %v896 = vld [vmem:[#allocation13 + $0x1c] sm:$0xff]
        %v897 = vld [vmem:[#allocation13 + $0x24] sm:$0xf]
        %v898 = vld [vmem:[#allocation13 + $0x28] sm:$0xff]
        %v899 = vld [vmem:[#allocation13 + $0x30] sm:$0xff]
        %v900 = vld [vmem:[#allocation13 + $0x38] sm:$0xf]
        %v901 = vld [vmem:[#allocation13 + $0x3c] sm:$0xff]
        %v902 = vld [vmem:[#allocation13 + $0x44] sm:$0xff]
        %v903 = vld [vmem:[#allocation13 + $0x4c] sm:$0xf]
        %v904 = vld [vmem:[#allocation13 + $0x50] sm:$0xff]
        %v905 = vld [vmem:[#allocation13 + $0x58] sm:$0xff]
        %v906 = vld [vmem:[#allocation13 + $0x60] sm:$0xf]
        %v907 = vld [vmem:[#allocation13 + $0x64] sm:$0xff]
        %v908 = vld [vmem:[#allocation13 + $0x6c] sm:$0xff]
        %v909 = vld [vmem:[#allocation13 + $0x74] sm:$0xf]
        %v910 = vld [vmem:[#allocation13 + $0x78] sm:$0xff]
        %v911 = vld [vmem:[#allocation13 + $0x80] sm:$0xff]
        %v912 = vld [vmem:[#allocation13 + $0x88] sm:$0xf]
        %v913 = vld [vmem:[#allocation13 + $0x8c] sm:$0xff]
        %v914 = vld [vmem:[#allocation13 + $0x94] sm:$0xff]
        %v915 = vld [vmem:[#allocation13 + $0x9c] sm:$0xf]
        %v916 = vld [vmem:[#allocation13 + $0xa0] sm:$0xff]
        %v917 = vld [vmem:[#allocation13 + $0xa8] sm:$0xff]
        %v918 = vld [vmem:[#allocation13 + $0xb0] sm:$0xf]
        %v919 = vld [vmem:[#allocation13 + $0xb4] sm:$0xff]
        %v920 = vld [vmem:[#allocation13 + $0xbc] sm:$0xff]
        %v921 = vld [vmem:[#allocation13 + $0xc4] sm:$0xf]
        %v922 = vld [vmem:[#allocation13 + $0xc8] sm:$0xff]
        %v923 = vld [vmem:[#allocation13 + $0xd0] sm:$0xff]
        %v924 = vld [vmem:[#allocation13 + $0xd8] sm:$0xf]
        %v925 = vld [vmem:[#allocation13 + $0xdc] sm:$0xff]
        %v926 = vld [vmem:[#allocation13 + $0xe4] sm:$0xff]
        %v927 = vld [vmem:[#allocation13 + $0xec] sm:$0xf]
        %v928 = vld [vmem:[#allocation13 + $0xf0] sm:$0xff]
        %v929 = vld [vmem:[#allocation13 + $0xf8] sm:$0xff]
        %v930 = vld [vmem:[#allocation13 + $0x100] sm:$0xf]
        %v931 = vld [vmem:[#allocation13 + $0x104] sm:$0xff]
        %v932 = vld [vmem:[#allocation13 + $0x10c] sm:$0xff]
        %v933 = vld [vmem:[#allocation13 + $0x114] sm:$0xf]
        %v934 = vld [vmem:[#allocation13 + $0x118] sm:$0xff]
        %v935 = vld [vmem:[#allocation13 + $0x120] sm:$0xff]
        %v936 = vld [vmem:[#allocation13 + $0x128] sm:$0xf]
        %v937 = vld [vmem:[#allocation13 + $0x12c] sm:$0xff]
        %v938 = vld [vmem:[#allocation13 + $0x134] sm:$0xff]
        %v939 = vld [vmem:[#allocation13 + $0x13c] sm:$0xf]
        %v988 = vunpack.c.l.b16 %v892
        %v989 = vunpack.c.h.b16 %v892
        %v990 = vunpack.c.l.b16 %v893
        %v991 = vunpack.c.h.b16 %v893
        %v992 = vunpack.c.l.b16 %v894
        %v993 = vunpack.c.l.b16 %v895
        %v994 = vunpack.c.h.b16 %v895
        %v995 = vunpack.c.l.b16 %v896
        %v996 = vunpack.c.h.b16 %v896
        %v997 = vunpack.c.l.b16 %v897
        %v998 = vunpack.c.l.b16 %v898
        %v999 = vunpack.c.h.b16 %v898
        %v1000 = vunpack.c.l.b16 %v899
        %v1001 = vunpack.c.h.b16 %v899
        %v1002 = vunpack.c.l.b16 %v900
        %v1003 = vunpack.c.l.b16 %v901
        %v1004 = vunpack.c.h.b16 %v901
        %v1005 = vunpack.c.l.b16 %v902
        %v1006 = vunpack.c.h.b16 %v902
        %v1007 = vunpack.c.l.b16 %v903
        %v1008 = vunpack.c.l.b16 %v904
        %v1009 = vunpack.c.h.b16 %v904
        %v1010 = vunpack.c.l.b16 %v905
        %v1011 = vunpack.c.h.b16 %v905
        %v1012 = vunpack.c.l.b16 %v906
        %v1013 = vunpack.c.l.b16 %v907
        %v1014 = vunpack.c.h.b16 %v907
        %v1015 = vunpack.c.l.b16 %v908
        %v1016 = vunpack.c.h.b16 %v908
        %v1017 = vunpack.c.l.b16 %v909
        %v1018 = vunpack.c.l.b16 %v910
        %v1019 = vunpack.c.h.b16 %v910
        %v1020 = vunpack.c.l.b16 %v911
        %v1021 = vunpack.c.h.b16 %v911
        %v1022 = vunpack.c.l.b16 %v912
        %v1023 = vunpack.c.l.b16 %v913
        %v1024 = vunpack.c.h.b16 %v913
        %v1025 = vunpack.c.l.b16 %v914
        %v1026 = vunpack.c.h.b16 %v914
        %v1027 = vunpack.c.l.b16 %v915
        %v1028 = vunpack.c.l.b16 %v916
        %v1029 = vunpack.c.h.b16 %v916
        %v1030 = vunpack.c.l.b16 %v917
        %v1031 = vunpack.c.h.b16 %v917
        %v1032 = vunpack.c.l.b16 %v918
        %v1033 = vunpack.c.l.b16 %v919
        %v1034 = vunpack.c.h.b16 %v919
        %v1035 = vunpack.c.l.b16 %v920
        %v1036 = vunpack.c.h.b16 %v920
        %v1037 = vunpack.c.l.b16 %v921
        %v1038 = vunpack.c.l.b16 %v922
        %v1039 = vunpack.c.h.b16 %v922
        %v1040 = vunpack.c.l.b16 %v923
        %v1041 = vunpack.c.h.b16 %v923
        %v1042 = vunpack.c.l.b16 %v924
        %v1043 = vunpack.c.l.b16 %v925
        %v1044 = vunpack.c.h.b16 %v925
        %v1045 = vunpack.c.l.b16 %v926
        %v1046 = vunpack.c.h.b16 %v926
        %v1047 = vunpack.c.l.b16 %v927
        %v1048 = vunpack.c.l.b16 %v928
        %v1049 = vunpack.c.h.b16 %v928
        %v1050 = vunpack.c.l.b16 %v929
        %v1051 = vunpack.c.h.b16 %v929
        %v1052 = vunpack.c.l.b16 %v930
        %v1053 = vunpack.c.l.b16 %v931
        %v1054 = vunpack.c.h.b16 %v931
        %v1055 = vunpack.c.l.b16 %v932
        %v1056 = vunpack.c.h.b16 %v932
        %v1057 = vunpack.c.l.b16 %v933
        %v1058 = vunpack.c.l.b16 %v934
        %v1059 = vunpack.c.h.b16 %v934
        %v1060 = vunpack.c.l.b16 %v935
        %v1061 = vunpack.c.h.b16 %v935
        %v1062 = vunpack.c.l.b16 %v936
        %v1063 = vunpack.c.l.b16 %v937
        %v1064 = vunpack.c.h.b16 %v937
        %v1065 = vunpack.c.l.b16 %v938
        %v1066 = vunpack.c.h.b16 %v938
        %v1067 = vunpack.c.l.b16 %v939
        %v1068 = vpack.c.b16 %v993, %v988
        %v1069 = vpack.c.b16 %v994, %v989
        %v1070 = vpack.c.b16 %v995, %v990
        %v1071 = vpack.c.b16 %v996, %v991
        %v1072 = vpack.c.b16 %v997, %v992
        %v1073 = vpack.c.b16 %v1003, %v998
        %v1074 = vpack.c.b16 %v1004, %v999
        %v1075 = vpack.c.b16 %v1005, %v1000
        %v1076 = vpack.c.b16 %v1006, %v1001
        %v1077 = vpack.c.b16 %v1007, %v1002
        %v1078 = vpack.c.b16 %v1013, %v1008
        %v1079 = vpack.c.b16 %v1014, %v1009
        %v1080 = vpack.c.b16 %v1015, %v1010
        %v1081 = vpack.c.b16 %v1016, %v1011
        %v1082 = vpack.c.b16 %v1017, %v1012
        %v1083 = vpack.c.b16 %v1023, %v1018
        %v1084 = vpack.c.b16 %v1024, %v1019
        %v1085 = vpack.c.b16 %v1025, %v1020
        %v1086 = vpack.c.b16 %v1026, %v1021
        %v1087 = vpack.c.b16 %v1027, %v1022
        %v1088 = vpack.c.b16 %v1033, %v1028
        %v1089 = vpack.c.b16 %v1034, %v1029
        %v1090 = vpack.c.b16 %v1035, %v1030
        %v1091 = vpack.c.b16 %v1036, %v1031
        %v1092 = vpack.c.b16 %v1037, %v1032
        %v1093 = vpack.c.b16 %v1043, %v1038
        %v1094 = vpack.c.b16 %v1044, %v1039
        %v1095 = vpack.c.b16 %v1045, %v1040
        %v1096 = vpack.c.b16 %v1046, %v1041
        %v1097 = vpack.c.b16 %v1047, %v1042
        %v1098 = vpack.c.b16 %v1053, %v1048
        %v1099 = vpack.c.b16 %v1054, %v1049
        %v1100 = vpack.c.b16 %v1055, %v1050
        %v1101 = vpack.c.b16 %v1056, %v1051
        %v1102 = vpack.c.b16 %v1057, %v1052
        %v1103 = vpack.c.b16 %v1063, %v1058
        %v1104 = vpack.c.b16 %v1064, %v1059
        %v1105 = vpack.c.b16 %v1065, %v1060
        %v1106 = vpack.c.b16 %v1066, %v1061
        %v1107 = vpack.c.b16 %v1067, %v1062
        %1148 = vmatprep.subr.bf16.mxu0 %v1104
        %1149 = vmatpush1.bf16.msra.mxu0 %v1103
        %1150 = vmatprep.subr.bf16.mxu0 %v1099
        %1151 = vmatpush1.bf16.msra.mxu0 %v1098
        %1152 = vmatprep.subr.bf16.mxu0 %v1094
        %1153 = vmatpush1.bf16.msra.mxu0 %v1093
        %1154 = vmatprep.subr.bf16.mxu0 %v1089
        %1155 = vmatpush1.bf16.msra.mxu0 %v1088
        %1156 = vmatprep.subr.bf16.mxu0 %v1084
        %1157 = vmatpush1.bf16.msra.mxu0 %v1083
        %1158 = vmatprep.subr.bf16.mxu0 %v1079
        %1159 = vmatpush1.bf16.msra.mxu0 %v1078
        %1160 = vmatprep.subr.bf16.mxu0 %v1074
        %1161 = vmatpush1.bf16.msra.mxu0 %v1073
        %1162 = vmatprep.subr.bf16.mxu0 %v1069
        %1163 = vmatpush1.bf16.msra.mxu0 %v1068
        %1164 = vmatprep.subr.bf16.mxu0 0
        %1165 = vmatpush2.bf16.msra.mxu0 0
        %1166 = vmatprep.subr.bf16.mxu0 0
        %1167 = vmatpush2.bf16.msra.mxu0 0
        %1168 = vmatprep.subr.bf16.mxu0 0
        %1169 = vmatpush2.bf16.msra.mxu0 0
        %1170 = vmatprep.subr.bf16.mxu0 0
        %1171 = vmatpush2.bf16.msra.mxu0 0
        %1172 = vmatprep.subr.bf16.mxu0 0
        %1173 = vmatpush2.bf16.msra.mxu0 0
        %1174 = vmatprep.subr.bf16.mxu0 0
        %1175 = vmatpush2.bf16.msra.mxu0 0
        %1176 = vmatprep.subr.bf16.mxu0 0
        %1177 = vmatpush2.bf16.msra.mxu0 0
        %1178 = vmatprep.subr.bf16.mxu0 0
        %1179 = vmatpush2.bf16.msra.mxu0 0
        %1180 = vmatprep.mubr.bf16.mxu0 0
        %1181 = vmatmul.mubr.bf16.gmra.mxu0 %v891
        %v1182 = vpop.f32.mrf.mxu0
        %v1183 = vadd.f32 0.0, %v1182
        %v1184 = vpop.f32.mrf.mxu0
        %v1185 = vadd.f32 0.0, %v1184
        %v1186 = vpop.f32.mrf.mxu0
        %v1187 = vadd.f32 0.0, %v1186
        %v1188 = vpop.f32.mrf.mxu0
        %v1189 = vadd.f32 0.0, %v1188
        %1190 = vdwg.mxu0
        %1191 = vmatprep.subr.bf16.mxu0 %v1106
        %1192 = vmatpush1.bf16.msra.mxu0 %v1105
        %1193 = vmatprep.subr.bf16.mxu0 %v1101
        %1194 = vmatpush1.bf16.msra.mxu0 %v1100
        %1195 = vmatprep.subr.bf16.mxu0 %v1096
        %1196 = vmatpush1.bf16.msra.mxu0 %v1095
        %1197 = vmatprep.subr.bf16.mxu0 %v1091
        %1198 = vmatpush1.bf16.msra.mxu0 %v1090
        %1199 = vmatprep.subr.bf16.mxu0 %v1086
        %1200 = vmatpush1.bf16.msra.mxu0 %v1085
        %1201 = vmatprep.subr.bf16.mxu0 %v1081
        %1202 = vmatpush1.bf16.msra.mxu0 %v1080
        %1203 = vmatprep.subr.bf16.mxu0 %v1076
        %1204 = vmatpush1.bf16.msra.mxu0 %v1075
        %1205 = vmatprep.subr.bf16.mxu0 %v1071
        %1206 = vmatpush1.bf16.msra.mxu0 %v1070
        %1207 = vmatprep.subr.bf16.mxu0 0
        %1208 = vmatpush2.bf16.msra.mxu0 0
        %1209 = vmatprep.subr.bf16.mxu0 0
        %1210 = vmatpush2.bf16.msra.mxu0 0
        %1211 = vmatprep.subr.bf16.mxu0 0
        %1212 = vmatpush2.bf16.msra.mxu0 0
        %1213 = vmatprep.subr.bf16.mxu0 0
        %1214 = vmatpush2.bf16.msra.mxu0 0
        %1215 = vmatprep.subr.bf16.mxu0 0
        %1216 = vmatpush2.bf16.msra.mxu0 0
        %1217 = vmatprep.subr.bf16.mxu0 0
        %1218 = vmatpush2.bf16.msra.mxu0 0
        %1219 = vmatprep.subr.bf16.mxu0 0
        %1220 = vmatpush2.bf16.msra.mxu0 0
        %1221 = vmatprep.subr.bf16.mxu0 0
        %1222 = vmatpush2.bf16.msra.mxu0 0
        %1223 = vmatprep.mubr.bf16.mxu0 0
        %1224 = vmatmul.mubr.bf16.gmra.mxu0 %v891
        %v1225 = vpop.f32.mrf.mxu0
        %v1226 = vadd.f32 0.0, %v1225
        %v1227 = vpop.f32.mrf.mxu0
        %v1228 = vadd.f32 0.0, %v1227
        %v1229 = vpop.f32.mrf.mxu0
        %v1230 = vadd.f32 0.0, %v1229
        %v1231 = vpop.f32.mrf.mxu0
        %v1232 = vadd.f32 0.0, %v1231
        %1233 = vdwg.mxu0
        %1234 = vmatprep.subr.bf16.mxu0 0
        %1235 = vmatpush1.bf16.msra.mxu0 %v1107
        %1236 = vmatprep.subr.bf16.mxu0 0
        %1237 = vmatpush1.bf16.msra.mxu0 %v1102
        %1238 = vmatprep.subr.bf16.mxu0 0
        %1239 = vmatpush1.bf16.msra.mxu0 %v1097
        %1240 = vmatprep.subr.bf16.mxu0 0
        %1241 = vmatpush1.bf16.msra.mxu0 %v1092
        %1242 = vmatprep.subr.bf16.mxu0 0
        %1243 = vmatpush1.bf16.msra.mxu0 %v1087
        %1244 = vmatprep.subr.bf16.mxu0 0
        %1245 = vmatpush1.bf16.msra.mxu0 %v1082
        %1246 = vmatprep.subr.bf16.mxu0 0
        %1247 = vmatpush1.bf16.msra.mxu0 %v1077
        %1248 = vmatprep.subr.bf16.mxu0 0
        %1249 = vmatpush1.bf16.msra.mxu0 %v1072
        %1250 = vmatprep.subr.bf16.mxu0 0
        %1251 = vmatpush2.bf16.msra.mxu0 0
        %1252 = vmatprep.subr.bf16.mxu0 0
        %1253 = vmatpush2.bf16.msra.mxu0 0
        %1254 = vmatprep.subr.bf16.mxu0 0
        %1255 = vmatpush2.bf16.msra.mxu0 0
        %1256 = vmatprep.subr.bf16.mxu0 0
        %1257 = vmatpush2.bf16.msra.mxu0 0
        %1258 = vmatprep.subr.bf16.mxu0 0
        %1259 = vmatpush2.bf16.msra.mxu0 0
        %1260 = vmatprep.subr.bf16.mxu0 0
        %1261 = vmatpush2.bf16.msra.mxu0 0
        %1262 = vmatprep.subr.bf16.mxu0 0
        %1263 = vmatpush2.bf16.msra.mxu0 0
        %1264 = vmatprep.subr.bf16.mxu0 0
        %1265 = vmatpush2.bf16.msra.mxu0 0
        %1266 = vmatprep.mubr.bf16.mxu0 0
        %1267 = vmatmul.mubr.bf16.gmra.mxu0 %v891
        %v1268 = vpop.f32.mrf.mxu0
        %v1269 = vadd.f32 0.0, %v1268
        %v1270 = vpop.f32.mrf.mxu0
        %v1271 = vpop.f32.mrf.mxu0
        %v1272 = vadd.f32 0.0, %v1271
        %v1273 = vpop.f32.mrf.mxu0
        %1274 = vdwg.mxu0
        %v1277 = vunpack.c.l.b16 %v825
        %v1278 = vunpack.c.l.b16 %v826
        %v1279 = vpack.c.b16 %v1278, %v1277
        %v1329 = vunpack.c.l.b16 %v843
        %v1330 = vunpack.c.h.b16 %v843
        %v1331 = vunpack.c.l.b16 %v844
        %v1332 = vunpack.c.h.b16 %v844
        %v1333 = vunpack.c.l.b16 %v845
        %v1334 = vunpack.c.l.b16 %v846
        %v1335 = vunpack.c.h.b16 %v846
        %v1336 = vunpack.c.l.b16 %v847
        %v1337 = vunpack.c.h.b16 %v847
        %v1338 = vunpack.c.l.b16 %v848
        %v1339 = vunpack.c.l.b16 %v849
        %v1340 = vunpack.c.h.b16 %v849
        %v1341 = vunpack.c.l.b16 %v850
        %v1342 = vunpack.c.h.b16 %v850
        %v1343 = vunpack.c.l.b16 %v851
        %v1344 = vunpack.c.l.b16 %v852
        %v1345 = vunpack.c.h.b16 %v852
        %v1346 = vunpack.c.l.b16 %v853
        %v1347 = vunpack.c.h.b16 %v853
        %v1348 = vunpack.c.l.b16 %v854
        %v1349 = vunpack.c.l.b16 %v855
        %v1350 = vunpack.c.h.b16 %v855
        %v1351 = vunpack.c.l.b16 %v856
        %v1352 = vunpack.c.h.b16 %v856
        %v1353 = vunpack.c.l.b16 %v857
        %v1354 = vunpack.c.l.b16 %v858
        %v1355 = vunpack.c.h.b16 %v858
        %v1356 = vunpack.c.l.b16 %v859
        %v1357 = vunpack.c.h.b16 %v859
        %v1358 = vunpack.c.l.b16 %v860
        %v1359 = vunpack.c.l.b16 %v861
        %v1360 = vunpack.c.h.b16 %v861
        %v1361 = vunpack.c.l.b16 %v862
        %v1362 = vunpack.c.h.b16 %v862
        %v1363 = vunpack.c.l.b16 %v863
        %v1364 = vunpack.c.l.b16 %v864
        %v1365 = vunpack.c.h.b16 %v864
        %v1366 = vunpack.c.l.b16 %v865
        %v1367 = vunpack.c.h.b16 %v865
        %v1368 = vunpack.c.l.b16 %v866
        %v1369 = vunpack.c.l.b16 %v867
        %v1370 = vunpack.c.h.b16 %v867
        %v1371 = vunpack.c.l.b16 %v868
        %v1372 = vunpack.c.h.b16 %v868
        %v1373 = vunpack.c.l.b16 %v869
        %v1374 = vunpack.c.l.b16 %v870
        %v1375 = vunpack.c.h.b16 %v870
        %v1376 = vunpack.c.l.b16 %v871
        %v1377 = vunpack.c.h.b16 %v871
        %v1378 = vunpack.c.l.b16 %v872
        %v1379 = vunpack.c.l.b16 %v873
        %v1380 = vunpack.c.h.b16 %v873
        %v1381 = vunpack.c.l.b16 %v874
        %v1382 = vunpack.c.h.b16 %v874
        %v1383 = vunpack.c.l.b16 %v875
        %v1384 = vunpack.c.l.b16 %v876
        %v1385 = vunpack.c.h.b16 %v876
        %v1386 = vunpack.c.l.b16 %v877
        %v1387 = vunpack.c.h.b16 %v877
        %v1388 = vunpack.c.l.b16 %v878
        %v1389 = vunpack.c.l.b16 %v879
        %v1390 = vunpack.c.h.b16 %v879
        %v1391 = vunpack.c.l.b16 %v880
        %v1392 = vunpack.c.h.b16 %v880
        %v1393 = vunpack.c.l.b16 %v881
        %v1394 = vunpack.c.l.b16 %v882
        %v1395 = vunpack.c.h.b16 %v882
        %v1396 = vunpack.c.l.b16 %v883
        %v1397 = vunpack.c.h.b16 %v883
        %v1398 = vunpack.c.l.b16 %v884
        %v1399 = vunpack.c.l.b16 %v885
        %v1400 = vunpack.c.h.b16 %v885
        %v1401 = vunpack.c.l.b16 %v886
        %v1402 = vunpack.c.h.b16 %v886
        %v1403 = vunpack.c.l.b16 %v887
        %v1404 = vunpack.c.l.b16 %v888
        %v1405 = vunpack.c.h.b16 %v888
        %v1406 = vunpack.c.l.b16 %v889
        %v1407 = vunpack.c.h.b16 %v889
        %v1408 = vunpack.c.l.b16 %v890
        %v1409 = vpack.c.b16 %v1334, %v1329
        %v1410 = vpack.c.b16 %v1335, %v1330
        %v1411 = vpack.c.b16 %v1336, %v1331
        %v1412 = vpack.c.b16 %v1337, %v1332
        %v1413 = vpack.c.b16 %v1338, %v1333
        %v1414 = vpack.c.b16 %v1344, %v1339
        %v1415 = vpack.c.b16 %v1345, %v1340
        %v1416 = vpack.c.b16 %v1346, %v1341
        %v1417 = vpack.c.b16 %v1347, %v1342
        %v1418 = vpack.c.b16 %v1348, %v1343
        %v1419 = vpack.c.b16 %v1354, %v1349
        %v1420 = vpack.c.b16 %v1355, %v1350
        %v1421 = vpack.c.b16 %v1356, %v1351
        %v1422 = vpack.c.b16 %v1357, %v1352
        %v1423 = vpack.c.b16 %v1358, %v1353
        %v1424 = vpack.c.b16 %v1364, %v1359
        %v1425 = vpack.c.b16 %v1365, %v1360
        %v1426 = vpack.c.b16 %v1366, %v1361
        %v1427 = vpack.c.b16 %v1367, %v1362
        %v1428 = vpack.c.b16 %v1368, %v1363
        %v1429 = vpack.c.b16 %v1374, %v1369
        %v1430 = vpack.c.b16 %v1375, %v1370
        %v1431 = vpack.c.b16 %v1376, %v1371
        %v1432 = vpack.c.b16 %v1377, %v1372
        %v1433 = vpack.c.b16 %v1378, %v1373
        %v1434 = vpack.c.b16 %v1384, %v1379
        %v1435 = vpack.c.b16 %v1385, %v1380
        %v1436 = vpack.c.b16 %v1386, %v1381
        %v1437 = vpack.c.b16 %v1387, %v1382
        %v1438 = vpack.c.b16 %v1388, %v1383
        %v1439 = vpack.c.b16 %v1394, %v1389
        %v1440 = vpack.c.b16 %v1395, %v1390
        %v1441 = vpack.c.b16 %v1396, %v1391
        %v1442 = vpack.c.b16 %v1397, %v1392
        %v1443 = vpack.c.b16 %v1398, %v1393
        %v1444 = vpack.c.b16 %v1404, %v1399
        %v1445 = vpack.c.b16 %v1405, %v1400
        %v1446 = vpack.c.b16 %v1406, %v1401
        %v1447 = vpack.c.b16 %v1407, %v1402
        %v1448 = vpack.c.b16 %v1408, %v1403
        %1489 = vmatprep.subr.bf16.mxu0 %v1445
        %1490 = vmatpush1.bf16.msra.mxu0 %v1444
        %1491 = vmatprep.subr.bf16.mxu0 %v1440
        %1492 = vmatpush1.bf16.msra.mxu0 %v1439
        %1493 = vmatprep.subr.bf16.mxu0 %v1435
        %1494 = vmatpush1.bf16.msra.mxu0 %v1434
        %1495 = vmatprep.subr.bf16.mxu0 %v1430
        %1496 = vmatpush1.bf16.msra.mxu0 %v1429
        %1497 = vmatprep.subr.bf16.mxu0 %v1425
        %1498 = vmatpush1.bf16.msra.mxu0 %v1424
        %1499 = vmatprep.subr.bf16.mxu0 %v1420
        %1500 = vmatpush1.bf16.msra.mxu0 %v1419
        %1501 = vmatprep.subr.bf16.mxu0 %v1415
        %1502 = vmatpush1.bf16.msra.mxu0 %v1414
        %1503 = vmatprep.subr.bf16.mxu0 %v1410
        %1504 = vmatpush1.bf16.msra.mxu0 %v1409
        %1505 = vmatprep.subr.bf16.mxu0 0
        %1506 = vmatpush2.bf16.msra.mxu0 0
        %1507 = vmatprep.subr.bf16.mxu0 0
        %1508 = vmatpush2.bf16.msra.mxu0 0
        %1509 = vmatprep.subr.bf16.mxu0 0
        %1510 = vmatpush2.bf16.msra.mxu0 0
        %1511 = vmatprep.subr.bf16.mxu0 0
        %1512 = vmatpush2.bf16.msra.mxu0 0
        %1513 = vmatprep.subr.bf16.mxu0 0
        %1514 = vmatpush2.bf16.msra.mxu0 0
        %1515 = vmatprep.subr.bf16.mxu0 0
        %1516 = vmatpush2.bf16.msra.mxu0 0
        %1517 = vmatprep.subr.bf16.mxu0 0
        %1518 = vmatpush2.bf16.msra.mxu0 0
        %1519 = vmatprep.subr.bf16.mxu0 0
        %1520 = vmatpush2.bf16.msra.mxu0 0
        %1521 = vmatprep.mubr.bf16.mxu0 0
        %1522 = vmatmul.mubr.bf16.gmra.mxu0 %v1279
        %v1523 = vpop.f32.mrf.mxu0
        %v1524 = vadd.f32 %v1183, %v1523
        %v1525 = vpop.f32.mrf.mxu0
        %v1526 = vadd.f32 %v1185, %v1525
        %v1527 = vpop.f32.mrf.mxu0
        %v1528 = vadd.f32 %v1187, %v1527
        %v1529 = vpop.f32.mrf.mxu0
        %v1530 = vadd.f32 %v1189, %v1529
        %1531 = vdwg.mxu0
        %1532 = vmatprep.subr.bf16.mxu0 %v1447
        %1533 = vmatpush1.bf16.msra.mxu0 %v1446
        %1534 = vmatprep.subr.bf16.mxu0 %v1442
        %1535 = vmatpush1.bf16.msra.mxu0 %v1441
        %1536 = vmatprep.subr.bf16.mxu0 %v1437
        %1537 = vmatpush1.bf16.msra.mxu0 %v1436
        %1538 = vmatprep.subr.bf16.mxu0 %v1432
        %1539 = vmatpush1.bf16.msra.mxu0 %v1431
        %1540 = vmatprep.subr.bf16.mxu0 %v1427
        %1541 = vmatpush1.bf16.msra.mxu0 %v1426
        %1542 = vmatprep.subr.bf16.mxu0 %v1422
        %1543 = vmatpush1.bf16.msra.mxu0 %v1421
        %1544 = vmatprep.subr.bf16.mxu0 %v1417
        %1545 = vmatpush1.bf16.msra.mxu0 %v1416
        %1546 = vmatprep.subr.bf16.mxu0 %v1412
        %1547 = vmatpush1.bf16.msra.mxu0 %v1411
        %1548 = vmatprep.subr.bf16.mxu0 0
        %1549 = vmatpush2.bf16.msra.mxu0 0
        %1550 = vmatprep.subr.bf16.mxu0 0
        %1551 = vmatpush2.bf16.msra.mxu0 0
        %1552 = vmatprep.subr.bf16.mxu0 0
        %1553 = vmatpush2.bf16.msra.mxu0 0
        %1554 = vmatprep.subr.bf16.mxu0 0
        %1555 = vmatpush2.bf16.msra.mxu0 0
        %1556 = vmatprep.subr.bf16.mxu0 0
        %1557 = vmatpush2.bf16.msra.mxu0 0
        %1558 = vmatprep.subr.bf16.mxu0 0
        %1559 = vmatpush2.bf16.msra.mxu0 0
        %1560 = vmatprep.subr.bf16.mxu0 0
        %1561 = vmatpush2.bf16.msra.mxu0 0
        %1562 = vmatprep.subr.bf16.mxu0 0
        %1563 = vmatpush2.bf16.msra.mxu0 0
        %1564 = vmatprep.mubr.bf16.mxu0 0
        %1565 = vmatmul.mubr.bf16.gmra.mxu0 %v1279
        %v1566 = vpop.f32.mrf.mxu0
        %v1567 = vadd.f32 %v1226, %v1566
        %v1568 = vpop.f32.mrf.mxu0
        %v1569 = vadd.f32 %v1228, %v1568
        %v1570 = vpop.f32.mrf.mxu0
        %v1571 = vadd.f32 %v1230, %v1570
        %v1572 = vpop.f32.mrf.mxu0
        %v1573 = vadd.f32 %v1232, %v1572
        %1574 = vdwg.mxu0
        %1575 = vmatprep.subr.bf16.mxu0 0
        %1576 = vmatpush1.bf16.msra.mxu0 %v1448
        %1577 = vmatprep.subr.bf16.mxu0 0
        %1578 = vmatpush1.bf16.msra.mxu0 %v1443
        %1579 = vmatprep.subr.bf16.mxu0 0
        %1580 = vmatpush1.bf16.msra.mxu0 %v1438
        %1581 = vmatprep.subr.bf16.mxu0 0
        %1582 = vmatpush1.bf16.msra.mxu0 %v1433
        %1583 = vmatprep.subr.bf16.mxu0 0
        %1584 = vmatpush1.bf16.msra.mxu0 %v1428
        %1585 = vmatprep.subr.bf16.mxu0 0
        %1586 = vmatpush1.bf16.msra.mxu0 %v1423
        %1587 = vmatprep.subr.bf16.mxu0 0
        %1588 = vmatpush1.bf16.msra.mxu0 %v1418
        %1589 = vmatprep.subr.bf16.mxu0 0
        %1590 = vmatpush1.bf16.msra.mxu0 %v1413
        %1591 = vmatprep.subr.bf16.mxu0 0
        %1592 = vmatpush2.bf16.msra.mxu0 0
        %1593 = vmatprep.subr.bf16.mxu0 0
        %1594 = vmatpush2.bf16.msra.mxu0 0
        %1595 = vmatprep.subr.bf16.mxu0 0
        %1596 = vmatpush2.bf16.msra.mxu0 0
        %1597 = vmatprep.subr.bf16.mxu0 0
        %1598 = vmatpush2.bf16.msra.mxu0 0
        %1599 = vmatprep.subr.bf16.mxu0 0
        %1600 = vmatpush2.bf16.msra.mxu0 0
        %1601 = vmatprep.subr.bf16.mxu0 0
        %1602 = vmatpush2.bf16.msra.mxu0 0
        %1603 = vmatprep.subr.bf16.mxu0 0
        %1604 = vmatpush2.bf16.msra.mxu0 0
        %1605 = vmatprep.subr.bf16.mxu0 0
        %1606 = vmatpush2.bf16.msra.mxu0 0
        %1607 = vmatprep.mubr.bf16.mxu0 0
        %1608 = vmatmul.mubr.bf16.gmra.mxu0 %v1279
        %v1609 = vpop.f32.mrf.mxu0
        %v1610 = vadd.f32 %v1269, %v1609
        %v1611 = vpop.f32.mrf.mxu0
        %v1612 = vpop.f32.mrf.mxu0
        %v1613 = vadd.f32 %v1272, %v1612
        %v1614 = vpop.f32.mrf.mxu0
        %1615 = vdwg.mxu0
        %v1616 = vld [vmem:[#allocation14] sm:$0x1f]
        %v1618 = vlaneseq
        %v1619 = vshrl.u32 %v1618, 7
        %v1620 = vsub.s32 0, %v1619
        %v1621 = vrot.slane %v1616, %v1620
        %v1622 = vlaneseq
        %v1623 = vshrl.u32 %v1622, 7
        %v1624 = vsub.s32 1, %v1623
        %v1625 = vrot.slane %v1616, %v1624
        %v1626 = vlaneseq
        %v1627 = vshrl.u32 %v1626, 7
        %v1628 = vsub.s32 2, %v1627
        %v1629 = vrot.slane %v1616, %v1628
        %v1630 = vlaneseq
        %v1631 = vshrl.u32 %v1630, 7
        %v1632 = vsub.s32 3, %v1631
        %v1633 = vrot.slane %v1616, %v1632
        %v1634 = vlaneseq
        %v1635 = vshrl.u32 %v1634, 7
        %v1636 = vsub.s32 4, %v1635
        %v1637 = vrot.slane %v1616, %v1636
        %v1643 = vadd.f32 %v1524, %v1621
        %v1644 = vadd.f32 %v1526, %v1625
        %v1645 = vadd.f32 %v1567, %v1629
        %v1646 = vadd.f32 %v1569, %v1633
        %v1647 = vadd.f32 %v1610, %v1637
        %v1648 = vadd.f32 %v1528, %v1621
        %v1649 = vadd.f32 %v1530, %v1625
        %v1650 = vadd.f32 %v1571, %v1629
        %v1651 = vadd.f32 %v1573, %v1633
        %v1652 = vadd.f32 %v1613, %v1637
        %vm1653 = vcmp.gt.f32.partialorder %v1643, 0.0
        %vm1654 = vcmp.gt.f32.partialorder %v1648, 0.0
        %v1655 = vmin.f32 %v1643, 0.0
        %v1656 = vmin.f32 %v1648, 0.0
        %v1657 = vmul.f32 %v1655, 1.442695
        %v1658 = vpow.pop %v1657
        %v1659 = vmul.f32 %v1656, 1.442695
        %v1660 = vpow.pop %v1659
        %v1661 = vsub.f32 %v1658, 1.0
        %v1662 = vsub.f32 %v1660, 1.0
        %v1663 = vsel %vm1653, %v1643, %v1661
        %v1664 = vsel %vm1654, %v1648, %v1662
        %v1665 = vld [vmem:[#allocation16] sm:$0xff]
        %v1666 = vld [vmem:[#allocation16 + $0x8] sm:$0xff]
        %v1667 = vld [vmem:[#allocation16 + $0x10] sm:$0xff]
        %v1668 = vld [vmem:[#allocation16 + $0x18] sm:$0xff]
        %v1669 = vld [vmem:[#allocation16 + $0x20] sm:$0xff]
        %v1670 = vld [vmem:[#allocation16 + $0x28] sm:$0xff]
        %v1671 = vld [vmem:[#allocation16 + $0x30] sm:$0xff]
        %v1672 = vld [vmem:[#allocation16 + $0x38] sm:$0xff]
        %v1673 = vld [vmem:[#allocation16 + $0x40] sm:$0xff]
        %v1674 = vld [vmem:[#allocation16 + $0x48] sm:$0xff]
        %v1675 = vld [vmem:[#allocation16 + $0x50] sm:$0xff]
        %v1676 = vld [vmem:[#allocation16 + $0x58] sm:$0xff]
        %v1677 = vld [vmem:[#allocation16 + $0x60] sm:$0xff]
        %v1678 = vld [vmem:[#allocation16 + $0x68] sm:$0xff]
        %v1679 = vld [vmem:[#allocation16 + $0x70] sm:$0xff]
        %v1680 = vld [vmem:[#allocation16 + $0x78] sm:$0xff]
        %v1697 = vunpack.c.l.b16 %v827
        %v1698 = vunpack.c.l.b16 %v828
        %v1699 = vunpack.c.l.b16 %v829
        %v1700 = vunpack.c.l.b16 %v830
        %v1701 = vunpack.c.l.b16 %v831
        %v1702 = vunpack.c.l.b16 %v832
        %v1703 = vunpack.c.l.b16 %v833
        %v1704 = vunpack.c.l.b16 %v834
        %v1705 = vunpack.c.l.b16 %v835
        %v1706 = vunpack.c.l.b16 %v836
        %v1707 = vunpack.c.l.b16 %v837
        %v1708 = vunpack.c.l.b16 %v838
        %v1709 = vunpack.c.l.b16 %v839
        %v1710 = vunpack.c.l.b16 %v840
        %v1711 = vunpack.c.l.b16 %v841
        %v1712 = vunpack.c.l.b16 %v842
        %v1713 = vpack.c.b16 %v1698, %v1697
        %v1714 = vpack.c.b16 %v1700, %v1699
        %v1715 = vpack.c.b16 %v1702, %v1701
        %v1716 = vpack.c.b16 %v1704, %v1703
        %v1717 = vpack.c.b16 %v1706, %v1705
        %v1718 = vpack.c.b16 %v1708, %v1707
        %v1719 = vpack.c.b16 %v1710, %v1709
        %v1720 = vpack.c.b16 %v1712, %v1711
        %v1745 = vunpack.c.l.b16 %v1665
        %v1746 = vunpack.c.h.b16 %v1665
        %v1747 = vunpack.c.l.b16 %v1666
        %v1748 = vunpack.c.h.b16 %v1666
        %v1749 = vunpack.c.l.b16 %v1667
        %v1750 = vunpack.c.h.b16 %v1667
        %v1751 = vunpack.c.l.b16 %v1668
        %v1752 = vunpack.c.h.b16 %v1668
        %v1753 = vunpack.c.l.b16 %v1669
        %v1754 = vunpack.c.h.b16 %v1669
        %v1755 = vunpack.c.l.b16 %v1670
        %v1756 = vunpack.c.h.b16 %v1670
        %v1757 = vunpack.c.l.b16 %v1671
        %v1758 = vunpack.c.h.b16 %v1671
        %v1759 = vunpack.c.l.b16 %v1672
        %v1760 = vunpack.c.h.b16 %v1672
        %v1761 = vunpack.c.l.b16 %v1673
        %v1762 = vunpack.c.h.b16 %v1673
        %v1763 = vunpack.c.l.b16 %v1674
        %v1764 = vunpack.c.h.b16 %v1674
        %v1765 = vunpack.c.l.b16 %v1675
        %v1766 = vunpack.c.h.b16 %v1675
        %v1767 = vunpack.c.l.b16 %v1676
        %v1768 = vunpack.c.h.b16 %v1676
        %v1769 = vunpack.c.l.b16 %v1677
        %v1770 = vunpack.c.h.b16 %v1677
        %v1771 = vunpack.c.l.b16 %v1678
        %v1772 = vunpack.c.h.b16 %v1678
        %v1773 = vunpack.c.l.b16 %v1679
        %v1774 = vunpack.c.h.b16 %v1679
        %v1775 = vunpack.c.l.b16 %v1680
        %v1776 = vunpack.c.h.b16 %v1680
        %v1777 = vpack.c.b16 %v1747, %v1745
        %v1778 = vpack.c.b16 %v1748, %v1746
        %v1779 = vpack.c.b16 %v1751, %v1749
        %v1780 = vpack.c.b16 %v1752, %v1750
        %v1781 = vpack.c.b16 %v1755, %v1753
        %v1782 = vpack.c.b16 %v1756, %v1754
        %v1783 = vpack.c.b16 %v1759, %v1757
        %v1784 = vpack.c.b16 %v1760, %v1758
        %v1785 = vpack.c.b16 %v1763, %v1761
        %v1786 = vpack.c.b16 %v1764, %v1762
        %v1787 = vpack.c.b16 %v1767, %v1765
        %v1788 = vpack.c.b16 %v1768, %v1766
        %v1789 = vpack.c.b16 %v1771, %v1769
        %v1790 = vpack.c.b16 %v1772, %v1770
        %v1791 = vpack.c.b16 %v1775, %v1773
        %v1792 = vpack.c.b16 %v1776, %v1774
        %1809 = vmatprep.subr.bf16.mxu0 %v1792
        %1810 = vmatpush1.bf16.msra.mxu0 %v1791
        %1811 = vmatprep.subr.bf16.mxu0 %v1790
        %1812 = vmatpush1.bf16.msra.mxu0 %v1789
        %1813 = vmatprep.subr.bf16.mxu0 %v1788
        %1814 = vmatpush1.bf16.msra.mxu0 %v1787
        %1815 = vmatprep.subr.bf16.mxu0 %v1786
        %1816 = vmatpush1.bf16.msra.mxu0 %v1785
        %1817 = vmatprep.subr.bf16.mxu0 %v1784
        %1818 = vmatpush1.bf16.msra.mxu0 %v1783
        %1819 = vmatprep.subr.bf16.mxu0 %v1782
        %1820 = vmatpush1.bf16.msra.mxu0 %v1781
        %1821 = vmatprep.subr.bf16.mxu0 %v1780
        %1822 = vmatpush1.bf16.msra.mxu0 %v1779
        %1823 = vmatprep.subr.bf16.mxu0 %v1778
        %1824 = vmatpush1.bf16.msra.mxu0 %v1777
        %1825 = vmatprep.subr.bf16.mxu0 0
        %1826 = vmatpush2.bf16.msra.mxu0 0
        %1827 = vmatprep.subr.bf16.mxu0 0
        %1828 = vmatpush2.bf16.msra.mxu0 0
        %1829 = vmatprep.subr.bf16.mxu0 0
        %1830 = vmatpush2.bf16.msra.mxu0 0
        %1831 = vmatprep.subr.bf16.mxu0 0
        %1832 = vmatpush2.bf16.msra.mxu0 0
        %1833 = vmatprep.subr.bf16.mxu0 0
        %1834 = vmatpush2.bf16.msra.mxu0 0
        %1835 = vmatprep.subr.bf16.mxu0 0
        %1836 = vmatpush2.bf16.msra.mxu0 0
        %1837 = vmatprep.subr.bf16.mxu0 0
        %1838 = vmatpush2.bf16.msra.mxu0 0
        %1839 = vmatprep.subr.bf16.mxu0 0
        %1840 = vmatpush2.bf16.msra.mxu0 0
        %1841 = vmatprep.mubr.bf16.mxu0 0
        %1842 = vmatmul.mubr.bf16.gmra.mxu0 %v1713
        %v1843 = vpop.f32.mrf.mxu0
        %v1844 = vadd.f32 0.0, %v1843
        %v1845 = vpop.f32.mrf.mxu0
        %v1846 = vadd.f32 0.0, %v1845
        %v1847 = vpop.f32.mrf.mxu0
        %v1848 = vadd.f32 0.0, %v1847
        %v1849 = vpop.f32.mrf.mxu0
        %v1850 = vadd.f32 0.0, %v1849
        %1851 = vmatprep.mubr.bf16.mxu0 0
        %1852 = vmatmul.mubr.bf16.gmra.mxu0 %v1714
        %v1853 = vpop.f32.mrf.mxu0
        %v1854 = vadd.f32 0.0, %v1853
        %v1855 = vpop.f32.mrf.mxu0
        %v1856 = vadd.f32 0.0, %v1855
        %v1857 = vpop.f32.mrf.mxu0
        %v1858 = vadd.f32 0.0, %v1857
        %v1859 = vpop.f32.mrf.mxu0
        %v1860 = vadd.f32 0.0, %v1859
        %1861 = vmatprep.mubr.bf16.mxu0 0
        %1862 = vmatmul.mubr.bf16.gmra.mxu0 %v1715
        %v1863 = vpop.f32.mrf.mxu0
        %v1864 = vadd.f32 0.0, %v1863
        %v1865 = vpop.f32.mrf.mxu0
        %v1866 = vadd.f32 0.0, %v1865
        %v1867 = vpop.f32.mrf.mxu0
        %v1868 = vadd.f32 0.0, %v1867
        %v1869 = vpop.f32.mrf.mxu0
        %v1870 = vadd.f32 0.0, %v1869
        %1871 = vmatprep.mubr.bf16.mxu0 0
        %1872 = vmatmul.mubr.bf16.gmra.mxu0 %v1716
        %v1873 = vpop.f32.mrf.mxu0
        %v1874 = vadd.f32 0.0, %v1873
        %v1875 = vpop.f32.mrf.mxu0
        %v1876 = vadd.f32 0.0, %v1875
        %v1877 = vpop.f32.mrf.mxu0
        %v1878 = vadd.f32 0.0, %v1877
        %v1879 = vpop.f32.mrf.mxu0
        %v1880 = vadd.f32 0.0, %v1879
        %1881 = vmatprep.mubr.bf16.mxu0 0
        %1882 = vmatmul.mubr.bf16.gmra.mxu0 %v1717
        %v1883 = vpop.f32.mrf.mxu0
        %v1884 = vadd.f32 0.0, %v1883
        %v1885 = vpop.f32.mrf.mxu0
        %v1886 = vadd.f32 0.0, %v1885
        %v1887 = vpop.f32.mrf.mxu0
        %v1888 = vadd.f32 0.0, %v1887
        %v1889 = vpop.f32.mrf.mxu0
        %v1890 = vadd.f32 0.0, %v1889
        %1891 = vmatprep.mubr.bf16.mxu0 0
        %1892 = vmatmul.mubr.bf16.gmra.mxu0 %v1718
        %v1893 = vpop.f32.mrf.mxu0
        %v1894 = vadd.f32 0.0, %v1893
        %v1895 = vpop.f32.mrf.mxu0
        %v1896 = vadd.f32 0.0, %v1895
        %v1897 = vpop.f32.mrf.mxu0
        %v1898 = vadd.f32 0.0, %v1897
        %v1899 = vpop.f32.mrf.mxu0
        %v1900 = vadd.f32 0.0, %v1899
        %1901 = vmatprep.mubr.bf16.mxu0 0
        %1902 = vmatmul.mubr.bf16.gmra.mxu0 %v1719
        %v1903 = vpop.f32.mrf.mxu0
        %v1904 = vadd.f32 0.0, %v1903
        %v1905 = vpop.f32.mrf.mxu0
        %v1906 = vadd.f32 0.0, %v1905
        %v1907 = vpop.f32.mrf.mxu0
        %v1908 = vadd.f32 0.0, %v1907
        %v1909 = vpop.f32.mrf.mxu0
        %v1910 = vadd.f32 0.0, %v1909
        %1911 = vmatprep.mubr.bf16.mxu0 0
        %1912 = vmatmul.mubr.bf16.gmra.mxu0 %v1720
        %v1913 = vpop.f32.mrf.mxu0
        %v1914 = vadd.f32 0.0, %v1913
        %v1915 = vpop.f32.mrf.mxu0
        %v1916 = vadd.f32 0.0, %v1915
        %v1917 = vpop.f32.mrf.mxu0
        %v1918 = vadd.f32 0.0, %v1917
        %v1919 = vpop.f32.mrf.mxu0
        %v1920 = vadd.f32 0.0, %v1919
        %1921 = vdwg.mxu0
        %v1922 = vld [vmem:[%s8] sm:$0xff]
        %v1923 = vld [vmem:[%s8 + $0x8] sm:$0xff]
        %v1926 = vcombine.low %v1922, %v1923
        %v1927 = vcombine.high %v1922, %v1923
        %v1929 = vunpack.c.l.s4 1966171168
        %v1930 = vunpack.c.0.s8 %v1929
        %v1931 = vlaneseq
        %v1932 = vshrl.u32 %v1931, 7
        %v1933 = vsub.s32 %v1930, %v1932
        %v1934 = vrot.slane %v1926, %v1933
        %v1936 = vunpack.c.l.s4 1966171168
        %v1937 = vunpack.c.0.s8 %v1936
        %v1938 = vlaneseq
        %v1939 = vshrl.u32 %v1938, 7
        %v1940 = vsub.s32 %v1937, %v1939
        %v1941 = vrot.slane %v1927, %v1940
        %v1942 = vcombine.high %v1934, %v1934
        %v1943 = vcombine.high %v1941, %v1941
        %v1945 = vunpack.c.l.s4 1966171168
        %v1946 = vunpack.c.0.s8 %v1945
        %v1947 = vlaneseq
        %v1948 = vshrl.u32 %v1947, 7
        %v1949 = vsub.s32 %v1946, %v1948
        %v1950 = vrot.slane %v1934, %v1949
        %v1952 = vunpack.c.l.s4 1966171168
        %v1953 = vunpack.c.0.s8 %v1952
        %v1954 = vlaneseq
        %v1955 = vshrl.u32 %v1954, 7
        %v1956 = vsub.s32 %v1953, %v1955
        %v1957 = vrot.slane %v1941, %v1956
        %v1959 = vunpack.c.l.s4 1966171168
        %v1960 = vunpack.c.0.s8 %v1959
        %v1961 = vlaneseq
        %v1962 = vshrl.u32 %v1961, 7
        %v1963 = vsub.s32 %v1960, %v1962
        %v1964 = vrot.slane %v1942, %v1963
        %v1966 = vunpack.c.l.s4 1966171168
        %v1967 = vunpack.c.0.s8 %v1966
        %v1968 = vlaneseq
        %v1969 = vshrl.u32 %v1968, 7
        %v1970 = vsub.s32 %v1967, %v1969
        %v1971 = vrot.slane %v1943, %v1970
        %v1972 = vcombine.high %v1950, %v1950
        %v1973 = vcombine.high %v1957, %v1957
        %v1974 = vcombine.high %v1964, %v1964
        %v1975 = vcombine.high %v1971, %v1971
        %v1976 = vlaneseq
        %v1977 = vshrl.u32 %v1976, 7
        %v1978 = vsub.s32 0, %v1977
        %v1979 = vrot.slane %v1950, %v1978
        %v1980 = vlaneseq
        %v1981 = vshrl.u32 %v1980, 7
        %v1982 = vsub.s32 1, %v1981
        %v1983 = vrot.slane %v1950, %v1982
        %v1984 = vlaneseq
        %v1985 = vshrl.u32 %v1984, 7
        %v1986 = vsub.s32 0, %v1985
        %v1987 = vrot.slane %v1964, %v1986
        %v1988 = vlaneseq
        %v1989 = vshrl.u32 %v1988, 7
        %v1990 = vsub.s32 1, %v1989
        %v1991 = vrot.slane %v1964, %v1990
        %v1992 = vlaneseq
        %v1993 = vshrl.u32 %v1992, 7
        %v1994 = vsub.s32 0, %v1993
        %v1995 = vrot.slane %v1972, %v1994
        %v1996 = vlaneseq
        %v1997 = vshrl.u32 %v1996, 7
        %v1998 = vsub.s32 1, %v1997
        %v1999 = vrot.slane %v1972, %v1998
        %v2000 = vlaneseq
        %v2001 = vshrl.u32 %v2000, 7
        %v2002 = vsub.s32 0, %v2001
        %v2003 = vrot.slane %v1974, %v2002
        %v2004 = vlaneseq
        %v2005 = vshrl.u32 %v2004, 7
        %v2006 = vsub.s32 1, %v2005
        %v2007 = vrot.slane %v1974, %v2006
        %v2008 = vlaneseq
        %v2009 = vshrl.u32 %v2008, 7
        %v2010 = vsub.s32 0, %v2009
        %v2011 = vrot.slane %v1957, %v2010
        %v2012 = vlaneseq
        %v2013 = vshrl.u32 %v2012, 7
        %v2014 = vsub.s32 1, %v2013
        %v2015 = vrot.slane %v1957, %v2014
        %v2016 = vlaneseq
        %v2017 = vshrl.u32 %v2016, 7
        %v2018 = vsub.s32 0, %v2017
        %v2019 = vrot.slane %v1971, %v2018
        %v2020 = vlaneseq
        %v2021 = vshrl.u32 %v2020, 7
        %v2022 = vsub.s32 1, %v2021
        %v2023 = vrot.slane %v1971, %v2022
        %v2024 = vlaneseq
        %v2025 = vshrl.u32 %v2024, 7
        %v2026 = vsub.s32 0, %v2025
        %v2027 = vrot.slane %v1973, %v2026
        %v2028 = vlaneseq
        %v2029 = vshrl.u32 %v2028, 7
        %v2030 = vsub.s32 1, %v2029
        %v2031 = vrot.slane %v1973, %v2030
        %v2032 = vlaneseq
        %v2033 = vshrl.u32 %v2032, 7
        %v2034 = vsub.s32 0, %v2033
        %v2035 = vrot.slane %v1975, %v2034
        %v2036 = vlaneseq
        %v2037 = vshrl.u32 %v2036, 7
        %v2038 = vsub.s32 1, %v2037
        %v2039 = vrot.slane %v1975, %v2038
        %v2056 = vadd.f32 %v1844, %v1979
        %v2057 = vadd.f32 %v1846, %v1983
        %v2058 = vadd.f32 %v1848, %v1979
        %v2059 = vadd.f32 %v1850, %v1983
        %v2060 = vadd.f32 %v1854, %v1987
        %v2061 = vadd.f32 %v1856, %v1991
        %v2062 = vadd.f32 %v1858, %v1987
        %v2063 = vadd.f32 %v1860, %v1991
        %v2064 = vadd.f32 %v1864, %v1995
        %v2065 = vadd.f32 %v1866, %v1999
        %v2066 = vadd.f32 %v1868, %v1995
        %v2067 = vadd.f32 %v1870, %v1999
        %v2068 = vadd.f32 %v1874, %v2003
        %v2069 = vadd.f32 %v1876, %v2007
        %v2070 = vadd.f32 %v1878, %v2003
        %v2071 = vadd.f32 %v1880, %v2007
        %v2072 = vadd.f32 %v1884, %v2011
        %v2073 = vadd.f32 %v1886, %v2015
        %v2074 = vadd.f32 %v1888, %v2011
        %v2075 = vadd.f32 %v1890, %v2015
        %v2076 = vadd.f32 %v1894, %v2019
        %v2077 = vadd.f32 %v1896, %v2023
        %v2078 = vadd.f32 %v1898, %v2019
        %v2079 = vadd.f32 %v1900, %v2023
        %v2080 = vadd.f32 %v1904, %v2027
        %v2081 = vadd.f32 %v1906, %v2031
        %v2082 = vadd.f32 %v1908, %v2027
        %v2083 = vadd.f32 %v1910, %v2031
        %v2084 = vadd.f32 %v1914, %v2035
        %v2085 = vadd.f32 %v1916, %v2039
        %v2086 = vadd.f32 %v1918, %v2035
        %v2087 = vadd.f32 %v1920, %v2039
        %vm2088 = vcmp.gt.f32.partialorder %v2056, 0.0
        %vm2089 = vcmp.gt.f32.partialorder %v2057, 0.0
        %vm2090 = vcmp.gt.f32.partialorder %v2058, 0.0
        %vm2091 = vcmp.gt.f32.partialorder %v2059, 0.0
        %vm2092 = vcmp.gt.f32.partialorder %v2060, 0.0
        %vm2093 = vcmp.gt.f32.partialorder %v2061, 0.0
        %vm2094 = vcmp.gt.f32.partialorder %v2062, 0.0
        %vm2095 = vcmp.gt.f32.partialorder %v2063, 0.0
        %vm2096 = vcmp.gt.f32.partialorder %v2064, 0.0
        %vm2097 = vcmp.gt.f32.partialorder %v2065, 0.0
        %vm2098 = vcmp.gt.f32.partialorder %v2066, 0.0
        %vm2099 = vcmp.gt.f32.partialorder %v2067, 0.0
        %vm2100 = vcmp.gt.f32.partialorder %v2068, 0.0
        %vm2101 = vcmp.gt.f32.partialorder %v2069, 0.0
        %vm2102 = vcmp.gt.f32.partialorder %v2070, 0.0
        %vm2103 = vcmp.gt.f32.partialorder %v2071, 0.0
        %vm2104 = vcmp.gt.f32.partialorder %v2072, 0.0
        %vm2105 = vcmp.gt.f32.partialorder %v2073, 0.0
        %vm2106 = vcmp.gt.f32.partialorder %v2074, 0.0
        %vm2107 = vcmp.gt.f32.partialorder %v2075, 0.0
        %vm2108 = vcmp.gt.f32.partialorder %v2076, 0.0
        %vm2109 = vcmp.gt.f32.partialorder %v2077, 0.0
        %vm2110 = vcmp.gt.f32.partialorder %v2078, 0.0
        %vm2111 = vcmp.gt.f32.partialorder %v2079, 0.0
        %vm2112 = vcmp.gt.f32.partialorder %v2080, 0.0
        %vm2113 = vcmp.gt.f32.partialorder %v2081, 0.0
        %vm2114 = vcmp.gt.f32.partialorder %v2082, 0.0
        %vm2115 = vcmp.gt.f32.partialorder %v2083, 0.0
        %vm2116 = vcmp.gt.f32.partialorder %v2084, 0.0
        %vm2117 = vcmp.gt.f32.partialorder %v2085, 0.0
        %vm2118 = vcmp.gt.f32.partialorder %v2086, 0.0
        %vm2119 = vcmp.gt.f32.partialorder %v2087, 0.0
        %v2120 = vmin.f32 %v2056, 0.0
        %v2121 = vmin.f32 %v2057, 0.0
        %v2122 = vmin.f32 %v2058, 0.0
        %v2123 = vmin.f32 %v2059, 0.0
        %v2124 = vmin.f32 %v2060, 0.0
        %v2125 = vmin.f32 %v2061, 0.0
        %v2126 = vmin.f32 %v2062, 0.0
        %v2127 = vmin.f32 %v2063, 0.0
        %v2128 = vmin.f32 %v2064, 0.0
        %v2129 = vmin.f32 %v2065, 0.0
        %v2130 = vmin.f32 %v2066, 0.0
        %v2131 = vmin.f32 %v2067, 0.0
        %v2132 = vmin.f32 %v2068, 0.0
        %v2133 = vmin.f32 %v2069, 0.0
        %v2134 = vmin.f32 %v2070, 0.0
        %v2135 = vmin.f32 %v2071, 0.0
        %v2136 = vmin.f32 %v2072, 0.0
        %v2137 = vmin.f32 %v2073, 0.0
        %v2138 = vmin.f32 %v2074, 0.0
        %v2139 = vmin.f32 %v2075, 0.0
        %v2140 = vmin.f32 %v2076, 0.0
        %v2141 = vmin.f32 %v2077, 0.0
        %v2142 = vmin.f32 %v2078, 0.0
        %v2143 = vmin.f32 %v2079, 0.0
        %v2144 = vmin.f32 %v2080, 0.0
        %v2145 = vmin.f32 %v2081, 0.0
        %v2146 = vmin.f32 %v2082, 0.0
        %v2147 = vmin.f32 %v2083, 0.0
        %v2148 = vmin.f32 %v2084, 0.0
        %v2149 = vmin.f32 %v2085, 0.0
        %v2150 = vmin.f32 %v2086, 0.0
        %v2151 = vmin.f32 %v2087, 0.0
        %v2152 = vmul.f32 %v2120, 1.442695
        %v2153 = vpow.pop %v2152
        %v2154 = vmul.f32 %v2121, 1.442695
        %v2155 = vpow.pop %v2154
        %v2156 = vmul.f32 %v2122, 1.442695
        %v2157 = vpow.pop %v2156
        %v2158 = vmul.f32 %v2123, 1.442695
        %v2159 = vpow.pop %v2158
        %v2160 = vmul.f32 %v2124, 1.442695
        %v2161 = vpow.pop %v2160
        %v2162 = vmul.f32 %v2125, 1.442695
        %v2163 = vpow.pop %v2162
        %v2164 = vmul.f32 %v2126, 1.442695
        %v2165 = vpow.pop %v2164
        %v2166 = vmul.f32 %v2127, 1.442695
        %v2167 = vpow.pop %v2166
        %v2168 = vmul.f32 %v2128, 1.442695
        %v2169 = vpow.pop %v2168
        %v2170 = vmul.f32 %v2129, 1.442695
        %v2171 = vpow.pop %v2170
        %v2172 = vmul.f32 %v2130, 1.442695
        %v2173 = vpow.pop %v2172
        %v2174 = vmul.f32 %v2131, 1.442695
        %v2175 = vpow.pop %v2174
        %v2176 = vmul.f32 %v2132, 1.442695
        %v2177 = vpow.pop %v2176
        %v2178 = vmul.f32 %v2133, 1.442695
        %v2179 = vpow.pop %v2178
        %v2180 = vmul.f32 %v2134, 1.442695
        %v2181 = vpow.pop %v2180
        %v2182 = vmul.f32 %v2135, 1.442695
        %v2183 = vpow.pop %v2182
        %v2184 = vmul.f32 %v2136, 1.442695
        %v2185 = vpow.pop %v2184
        %v2186 = vmul.f32 %v2137, 1.442695
        %v2187 = vpow.pop %v2186
        %v2188 = vmul.f32 %v2138, 1.442695
        %v2189 = vpow.pop %v2188
        %v2190 = vmul.f32 %v2139, 1.442695
        %v2191 = vpow.pop %v2190
        %v2192 = vmul.f32 %v2140, 1.442695
        %v2193 = vpow.pop %v2192
        %v2194 = vmul.f32 %v2141, 1.442695
        %v2195 = vpow.pop %v2194
        %v2196 = vmul.f32 %v2142, 1.442695
        %v2197 = vpow.pop %v2196
        %v2198 = vmul.f32 %v2143, 1.442695
        %v2199 = vpow.pop %v2198
        %v2200 = vmul.f32 %v2144, 1.442695
        %v2201 = vpow.pop %v2200
        %v2202 = vmul.f32 %v2145, 1.442695
        %v2203 = vpow.pop %v2202
        %v2204 = vmul.f32 %v2146, 1.442695
        %v2205 = vpow.pop %v2204
        %v2206 = vmul.f32 %v2147, 1.442695
        %v2207 = vpow.pop %v2206
        %v2208 = vmul.f32 %v2148, 1.442695
        %v2209 = vpow.pop %v2208
        %v2210 = vmul.f32 %v2149, 1.442695
        %v2211 = vpow.pop %v2210
        %v2212 = vmul.f32 %v2150, 1.442695
        %v2213 = vpow.pop %v2212
        %v2214 = vmul.f32 %v2151, 1.442695
        %v2215 = vpow.pop %v2214
        %v2216 = vsub.f32 %v2153, 1.0
        %v2217 = vsub.f32 %v2155, 1.0
        %v2218 = vsub.f32 %v2157, 1.0
        %v2219 = vsub.f32 %v2159, 1.0
        %v2220 = vsub.f32 %v2161, 1.0
        %v2221 = vsub.f32 %v2163, 1.0
        %v2222 = vsub.f32 %v2165, 1.0
        %v2223 = vsub.f32 %v2167, 1.0
        %v2224 = vsub.f32 %v2169, 1.0
        %v2225 = vsub.f32 %v2171, 1.0
        %v2226 = vsub.f32 %v2173, 1.0
        %v2227 = vsub.f32 %v2175, 1.0
        %v2228 = vsub.f32 %v2177, 1.0
        %v2229 = vsub.f32 %v2179, 1.0
        %v2230 = vsub.f32 %v2181, 1.0
        %v2231 = vsub.f32 %v2183, 1.0
        %v2232 = vsub.f32 %v2185, 1.0
        %v2233 = vsub.f32 %v2187, 1.0
        %v2234 = vsub.f32 %v2189, 1.0
        %v2235 = vsub.f32 %v2191, 1.0
        %v2236 = vsub.f32 %v2193, 1.0
        %v2237 = vsub.f32 %v2195, 1.0
        %v2238 = vsub.f32 %v2197, 1.0
        %v2239 = vsub.f32 %v2199, 1.0
        %v2240 = vsub.f32 %v2201, 1.0
        %v2241 = vsub.f32 %v2203, 1.0
        %v2242 = vsub.f32 %v2205, 1.0
        %v2243 = vsub.f32 %v2207, 1.0
        %v2244 = vsub.f32 %v2209, 1.0
        %v2245 = vsub.f32 %v2211, 1.0
        %v2246 = vsub.f32 %v2213, 1.0
        %v2247 = vsub.f32 %v2215, 1.0
        %v2248 = vsel %vm2088, %v2056, %v2216
        %v2249 = vsel %vm2089, %v2057, %v2217
        %v2250 = vsel %vm2090, %v2058, %v2218
        %v2251 = vsel %vm2091, %v2059, %v2219
        %v2252 = vsel %vm2092, %v2060, %v2220
        %v2253 = vsel %vm2093, %v2061, %v2221
        %v2254 = vsel %vm2094, %v2062, %v2222
        %v2255 = vsel %vm2095, %v2063, %v2223
        %v2256 = vsel %vm2096, %v2064, %v2224
        %v2257 = vsel %vm2097, %v2065, %v2225
        %v2258 = vsel %vm2098, %v2066, %v2226
        %v2259 = vsel %vm2099, %v2067, %v2227
        %v2260 = vsel %vm2100, %v2068, %v2228
        %v2261 = vsel %vm2101, %v2069, %v2229
        %v2262 = vsel %vm2102, %v2070, %v2230
        %v2263 = vsel %vm2103, %v2071, %v2231
        %v2264 = vsel %vm2104, %v2072, %v2232
        %v2265 = vsel %vm2105, %v2073, %v2233
        %v2266 = vsel %vm2106, %v2074, %v2234
        %v2267 = vsel %vm2107, %v2075, %v2235
        %v2268 = vsel %vm2108, %v2076, %v2236
        %v2269 = vsel %vm2109, %v2077, %v2237
        %v2270 = vsel %vm2110, %v2078, %v2238
        %v2271 = vsel %vm2111, %v2079, %v2239
        %v2272 = vsel %vm2112, %v2080, %v2240
        %v2273 = vsel %vm2113, %v2081, %v2241
        %v2274 = vsel %vm2114, %v2082, %v2242
        %v2275 = vsel %vm2115, %v2083, %v2243
        %v2276 = vsel %vm2116, %v2084, %v2244
        %v2277 = vsel %vm2117, %v2085, %v2245
        %v2278 = vsel %vm2118, %v2086, %v2246
        %v2279 = vsel %vm2119, %v2087, %v2247
        %v2280 = vpack.c.bf16 %v1664, %v1663
        %v2281 = vld [vmem:[#allocation17] sm:$0xf]
        %v2282 = vld [vmem:[#allocation17 + $0x4] sm:$0xf]
        %v2283 = vld [vmem:[#allocation17 + $0x8] sm:$0xf]
        %v2284 = vld [vmem:[#allocation17 + $0xc] sm:$0xf]
        %v2285 = vld [vmem:[#allocation17 + $0x10] sm:$0xf]
        %v2286 = vld [vmem:[#allocation17 + $0x14] sm:$0xf]
        %v2287 = vld [vmem:[#allocation17 + $0x18] sm:$0xf]
        %v2288 = vld [vmem:[#allocation17 + $0x1c] sm:$0xf]
        %v2289 = vld [vmem:[#allocation17 + $0x20] sm:$0xf]
        %v2290 = vld [vmem:[#allocation17 + $0x24] sm:$0xf]
        %v2291 = vld [vmem:[#allocation17 + $0x28] sm:$0xf]
        %v2292 = vld [vmem:[#allocation17 + $0x2c] sm:$0xf]
        %v2293 = vld [vmem:[#allocation17 + $0x30] sm:$0xf]
        %v2294 = vld [vmem:[#allocation17 + $0x34] sm:$0xf]
        %v2295 = vld [vmem:[#allocation17 + $0x38] sm:$0xf]
        %v2296 = vld [vmem:[#allocation17 + $0x3c] sm:$0xf]
        %v2297 = vld [vmem:[%s14] sm:$0x1]
        %v2298 = vlaneseq
        %v2299 = vshrl.u32 %v2298, 7
        %v2300 = vsub.s32 0, %v2299
        %v2301 = vrot.slane %v2297, %v2300
        %v2318 = vunpack.c.l.b16 %v2281
        %v2319 = vunpack.c.l.b16 %v2282
        %v2320 = vunpack.c.l.b16 %v2283
        %v2321 = vunpack.c.l.b16 %v2284
        %v2322 = vunpack.c.l.b16 %v2285
        %v2323 = vunpack.c.l.b16 %v2286
        %v2324 = vunpack.c.l.b16 %v2287
        %v2325 = vunpack.c.l.b16 %v2288
        %v2326 = vunpack.c.l.b16 %v2289
        %v2327 = vunpack.c.l.b16 %v2290
        %v2328 = vunpack.c.l.b16 %v2291
        %v2329 = vunpack.c.l.b16 %v2292
        %v2330 = vunpack.c.l.b16 %v2293
        %v2331 = vunpack.c.l.b16 %v2294
        %v2332 = vunpack.c.l.b16 %v2295
        %v2333 = vunpack.c.l.b16 %v2296
        %v2334 = vpack.c.b16 %v2319, %v2318
        %v2335 = vpack.c.b16 %v2321, %v2320
        %v2336 = vpack.c.b16 %v2323, %v2322
        %v2337 = vpack.c.b16 %v2325, %v2324
        %v2338 = vpack.c.b16 %v2327, %v2326
        %v2339 = vpack.c.b16 %v2329, %v2328
        %v2340 = vpack.c.b16 %v2331, %v2330
        %v2341 = vpack.c.b16 %v2333, %v2332
        %2350 = vmatprep.subr.bf16.mxu0 0
        %2351 = vmatpush1.bf16.msra.mxu0 %v2341
        %2352 = vmatprep.subr.bf16.mxu0 0
        %2353 = vmatpush1.bf16.msra.mxu0 %v2340
        %2354 = vmatprep.subr.bf16.mxu0 0
        %2355 = vmatpush1.bf16.msra.mxu0 %v2339
        %2356 = vmatprep.subr.bf16.mxu0 0
        %2357 = vmatpush1.bf16.msra.mxu0 %v2338
        %2358 = vmatprep.subr.bf16.mxu0 0
        %2359 = vmatpush1.bf16.msra.mxu0 %v2337
        %2360 = vmatprep.subr.bf16.mxu0 0
        %2361 = vmatpush1.bf16.msra.mxu0 %v2336
        %2362 = vmatprep.subr.bf16.mxu0 0
        %2363 = vmatpush1.bf16.msra.mxu0 %v2335
        %2364 = vmatprep.subr.bf16.mxu0 0
        %2365 = vmatpush1.bf16.msra.mxu0 %v2334
        %2366 = vmatprep.subr.bf16.mxu0 0
        %2367 = vmatpush2.bf16.msra.mxu0 0
        %2368 = vmatprep.subr.bf16.mxu0 0
        %2369 = vmatpush2.bf16.msra.mxu0 0
        %2370 = vmatprep.subr.bf16.mxu0 0
        %2371 = vmatpush2.bf16.msra.mxu0 0
        %2372 = vmatprep.subr.bf16.mxu0 0
        %2373 = vmatpush2.bf16.msra.mxu0 0
        %2374 = vmatprep.subr.bf16.mxu0 0
        %2375 = vmatpush2.bf16.msra.mxu0 0
        %2376 = vmatprep.subr.bf16.mxu0 0
        %2377 = vmatpush2.bf16.msra.mxu0 0
        %2378 = vmatprep.subr.bf16.mxu0 0
        %2379 = vmatpush2.bf16.msra.mxu0 0
        %2380 = vmatprep.subr.bf16.mxu0 0
        %2381 = vmatpush2.bf16.msra.mxu0 0
        %2382 = vmatprep.mubr.bf16.mxu0 0
        %2383 = vmatmul.mubr.bf16.gmra.mxu0 %v2280
        %v2384 = vpop.f32.mrf.mxu0
        %v2385 = vadd.f32 %v2301, %v2384
        %v2386 = vpop.f32.mrf.mxu0
        %v2387 = vpop.f32.mrf.mxu0
        %v2388 = vadd.f32 %v2301, %v2387
        %v2389 = vpop.f32.mrf.mxu0
        %2390 = vdwg.mxu0
        %v2391 = vmul.f32 %v2385, %v2248
        %v2392 = vmul.f32 %v2388, %v2250
        %v2393 = vmul.f32 %v2385, %v2252
        %v2394 = vmul.f32 %v2388, %v2254
        %v2395 = vmul.f32 %v2385, %v2256
        %v2396 = vmul.f32 %v2388, %v2258
        %v2397 = vmul.f32 %v2385, %v2260
        %v2398 = vmul.f32 %v2388, %v2262
        %v2399 = vmul.f32 %v2385, %v2264
        %v2400 = vmul.f32 %v2388, %v2266
        %v2401 = vmul.f32 %v2385, %v2268
        %v2402 = vmul.f32 %v2388, %v2270
        %v2403 = vmul.f32 %v2385, %v2272
        %v2404 = vmul.f32 %v2388, %v2274
        %v2405 = vmul.f32 %v2385, %v2276
        %v2406 = vmul.f32 %v2388, %v2278
        %v2407 = vpack.c.bf16 %v2392, %v2391
        %v2408 = vpack.c.bf16 %v2394, %v2393
        %v2409 = vpack.c.bf16 %v2396, %v2395
        %v2410 = vpack.c.bf16 %v2398, %v2397
        %v2411 = vpack.c.bf16 %v2400, %v2399
        %v2412 = vpack.c.bf16 %v2402, %v2401
        %v2413 = vpack.c.bf16 %v2404, %v2403
        %v2414 = vpack.c.bf16 %v2406, %v2405
        %v2415 = vld [vmem:[%s12] sm:$0xf]
        %v2416 = vld [vmem:[%s12 + $0x4] sm:$0xf]
        %v2417 = vld [vmem:[%s12 + $0x8] sm:$0xf]
        %v2418 = vld [vmem:[%s12 + $0xc] sm:$0xf]
        %v2419 = vld [vmem:[%s12 + $0x10] sm:$0xf]
        %v2420 = vld [vmem:[%s12 + $0x14] sm:$0xf]
        %v2421 = vld [vmem:[%s12 + $0x18] sm:$0xf]
        %v2422 = vld [vmem:[%s12 + $0x1c] sm:$0xf]
        %v2423 = vld [vmem:[%s12 + $0x20] sm:$0xf]
        %v2424 = vld [vmem:[%s12 + $0x24] sm:$0xf]
        %v2425 = vld [vmem:[%s12 + $0x28] sm:$0xf]
        %v2426 = vld [vmem:[%s12 + $0x2c] sm:$0xf]
        %v2427 = vld [vmem:[%s12 + $0x30] sm:$0xf]
        %v2428 = vld [vmem:[%s12 + $0x34] sm:$0xf]
        %v2429 = vld [vmem:[%s12 + $0x38] sm:$0xf]
        %v2430 = vld [vmem:[%s12 + $0x3c] sm:$0xf]
        %v2447 = vunpack.c.l.b16 %v2415
        %v2448 = vunpack.c.l.b16 %v2416
        %v2449 = vunpack.c.l.b16 %v2417
        %v2450 = vunpack.c.l.b16 %v2418
        %v2451 = vunpack.c.l.b16 %v2419
        %v2452 = vunpack.c.l.b16 %v2420
        %v2453 = vunpack.c.l.b16 %v2421
        %v2454 = vunpack.c.l.b16 %v2422
        %v2455 = vunpack.c.l.b16 %v2423
        %v2456 = vunpack.c.l.b16 %v2424
        %v2457 = vunpack.c.l.b16 %v2425
        %v2458 = vunpack.c.l.b16 %v2426
        %v2459 = vunpack.c.l.b16 %v2427
        %v2460 = vunpack.c.l.b16 %v2428
        %v2461 = vunpack.c.l.b16 %v2429
        %v2462 = vunpack.c.l.b16 %v2430
        %v2463 = vpack.c.b16 %v2448, %v2447
        %v2464 = vpack.c.b16 %v2450, %v2449
        %v2465 = vpack.c.b16 %v2452, %v2451
        %v2466 = vpack.c.b16 %v2454, %v2453
        %v2467 = vpack.c.b16 %v2456, %v2455
        %v2468 = vpack.c.b16 %v2458, %v2457
        %v2469 = vpack.c.b16 %v2460, %v2459
        %v2470 = vpack.c.b16 %v2462, %v2461
        %2479 = vmatprep.subr.bf16.mxu0 0
        %2480 = vmatpush1.bf16.msra.mxu0 %v2470
        %2481 = vmatprep.subr.bf16.mxu0 0
        %2482 = vmatpush1.bf16.msra.mxu0 %v2469
        %2483 = vmatprep.subr.bf16.mxu0 0
        %2484 = vmatpush1.bf16.msra.mxu0 %v2468
        %2485 = vmatprep.subr.bf16.mxu0 0
        %2486 = vmatpush1.bf16.msra.mxu0 %v2467
        %2487 = vmatprep.subr.bf16.mxu0 0
        %2488 = vmatpush1.bf16.msra.mxu0 %v2466
        %2489 = vmatprep.subr.bf16.mxu0 0
        %2490 = vmatpush1.bf16.msra.mxu0 %v2465
        %2491 = vmatprep.subr.bf16.mxu0 0
        %2492 = vmatpush1.bf16.msra.mxu0 %v2464
        %2493 = vmatprep.subr.bf16.mxu0 0
        %2494 = vmatpush1.bf16.msra.mxu0 %v2463
        %2495 = vmatprep.subr.bf16.mxu0 0
        %2496 = vmatpush2.bf16.msra.mxu0 0
        %2497 = vmatprep.subr.bf16.mxu0 0
        %2498 = vmatpush2.bf16.msra.mxu0 0
        %2499 = vmatprep.subr.bf16.mxu0 0
        %2500 = vmatpush2.bf16.msra.mxu0 0
        %2501 = vmatprep.subr.bf16.mxu0 0
        %2502 = vmatpush2.bf16.msra.mxu0 0
        %2503 = vmatprep.subr.bf16.mxu0 0
        %2504 = vmatpush2.bf16.msra.mxu0 0
        %2505 = vmatprep.subr.bf16.mxu0 0
        %2506 = vmatpush2.bf16.msra.mxu0 0
        %2507 = vmatprep.subr.bf16.mxu0 0
        %2508 = vmatpush2.bf16.msra.mxu0 0
        %2509 = vmatprep.subr.bf16.mxu0 0
        %2510 = vmatpush2.bf16.msra.mxu0 0
        %2511 = vmatprep.mubr.bf16.mxu0 0
        %2512 = vmatmul.mubr.bf16.gmra.mxu0 %v2407
        %v2513 = vpop.f32.mrf.mxu0
        %v2514 = vadd.f32 0.0, %v2513
        %v2515 = vpop.f32.mrf.mxu0
        %v2516 = vpop.f32.mrf.mxu0
        %v2517 = vadd.f32 0.0, %v2516
        %v2518 = vpop.f32.mrf.mxu0
        %2519 = vmatprep.mubr.bf16.mxu0 0
        %2520 = vmatmul.mubr.bf16.gmra.mxu0 %v2408
        %v2521 = vpop.f32.mrf.mxu0
        %v2522 = vadd.f32 0.0, %v2521
        %v2523 = vpop.f32.mrf.mxu0
        %v2524 = vpop.f32.mrf.mxu0
        %v2525 = vadd.f32 0.0, %v2524
        %v2526 = vpop.f32.mrf.mxu0
        %2527 = vmatprep.mubr.bf16.mxu0 0
        %2528 = vmatmul.mubr.bf16.gmra.mxu0 %v2409
        %v2529 = vpop.f32.mrf.mxu0
        %v2530 = vadd.f32 0.0, %v2529
        %v2531 = vpop.f32.mrf.mxu0
        %v2532 = vpop.f32.mrf.mxu0
        %v2533 = vadd.f32 0.0, %v2532
        %v2534 = vpop.f32.mrf.mxu0
        %2535 = vmatprep.mubr.bf16.mxu0 0
        %2536 = vmatmul.mubr.bf16.gmra.mxu0 %v2410
        %v2537 = vpop.f32.mrf.mxu0
        %v2538 = vadd.f32 0.0, %v2537
        %v2539 = vpop.f32.mrf.mxu0
        %v2540 = vpop.f32.mrf.mxu0
        %v2541 = vadd.f32 0.0, %v2540
        %v2542 = vpop.f32.mrf.mxu0
        %2543 = vmatprep.mubr.bf16.mxu0 0
        %2544 = vmatmul.mubr.bf16.gmra.mxu0 %v2411
        %v2545 = vpop.f32.mrf.mxu0
        %v2546 = vadd.f32 0.0, %v2545
        %v2547 = vpop.f32.mrf.mxu0
        %v2548 = vpop.f32.mrf.mxu0
        %v2549 = vadd.f32 0.0, %v2548
        %v2550 = vpop.f32.mrf.mxu0
        %2551 = vmatprep.mubr.bf16.mxu0 0
        %2552 = vmatmul.mubr.bf16.gmra.mxu0 %v2412
        %v2553 = vpop.f32.mrf.mxu0
        %v2554 = vadd.f32 0.0, %v2553
        %v2555 = vpop.f32.mrf.mxu0
        %v2556 = vpop.f32.mrf.mxu0
        %v2557 = vadd.f32 0.0, %v2556
        %v2558 = vpop.f32.mrf.mxu0
        %2559 = vmatprep.mubr.bf16.mxu0 0
        %2560 = vmatmul.mubr.bf16.gmra.mxu0 %v2413
        %v2561 = vpop.f32.mrf.mxu0
        %v2562 = vadd.f32 0.0, %v2561
        %v2563 = vpop.f32.mrf.mxu0
        %v2564 = vpop.f32.mrf.mxu0
        %v2565 = vadd.f32 0.0, %v2564
        %v2566 = vpop.f32.mrf.mxu0
        %2567 = vmatprep.mubr.bf16.mxu0 0
        %2568 = vmatmul.mubr.bf16.gmra.mxu0 %v2414
        %v2569 = vpop.f32.mrf.mxu0
        %v2570 = vadd.f32 0.0, %v2569
        %v2571 = vpop.f32.mrf.mxu0
        %v2572 = vpop.f32.mrf.mxu0
        %v2573 = vadd.f32 0.0, %v2572
        %v2574 = vpop.f32.mrf.mxu0
        %2575 = vdwg.mxu0
        %vm2576 = vcmask 31744
        %v2577 = vsel %vm2576, %v2514, -inf
        %v2578 = vsel %vm2576, %v2522, -inf
        %v2579 = vsel %vm2576, %v2530, -inf
        %v2580 = vmax.f32 %v2577, %v2579
        %v2581 = vsel %vm2576, %v2538, -inf
        %v2582 = vmax.f32 %v2578, %v2581
        %v2583 = vsel %vm2576, %v2546, -inf
        %v2584 = vmax.f32 %v2580, %v2583
        %v2585 = vsel %vm2576, %v2554, -inf
        %v2586 = vmax.f32 %v2582, %v2585
        %v2587 = vsel %vm2576, %v2562, -inf
        %v2588 = vmax.f32 %v2584, %v2587
        %v2589 = vsel %vm2576, %v2570, -inf
        %v2590 = vmax.f32 %v2586, %v2589
        %v2591 = vmax.f32 %v2588, %v2590
        %v2592 = vsel %vm2576, %v2517, -inf
        %v2593 = vsel %vm2576, %v2525, -inf
        %v2594 = vsel %vm2576, %v2533, -inf
        %v2595 = vmax.f32 %v2592, %v2594
        %v2596 = vsel %vm2576, %v2541, -inf
        %v2597 = vmax.f32 %v2593, %v2596
        %v2598 = vsel %vm2576, %v2549, -inf
        %v2599 = vmax.f32 %v2595, %v2598
        %v2600 = vsel %vm2576, %v2557, -inf
        %v2601 = vmax.f32 %v2597, %v2600
        %v2602 = vsel %vm2576, %v2565, -inf
        %v2603 = vmax.f32 %v2599, %v2602
        %v2604 = vsel %vm2576, %v2573, -inf
        %v2605 = vmax.f32 %v2601, %v2604
        %v2606 = vmax.f32 %v2603, %v2605
        %v2607 = vsub.f32 %v2514, %v2591
        %v2608 = vsub.f32 %v2517, %v2606
        %v2609 = vsub.f32 %v2522, %v2591
        %v2610 = vsub.f32 %v2525, %v2606
        %v2611 = vsub.f32 %v2530, %v2591
        %v2612 = vsub.f32 %v2533, %v2606
        %v2613 = vsub.f32 %v2538, %v2591
        %v2614 = vsub.f32 %v2541, %v2606
        %v2615 = vsub.f32 %v2546, %v2591
        %v2616 = vsub.f32 %v2549, %v2606
        %v2617 = vsub.f32 %v2554, %v2591
        %v2618 = vsub.f32 %v2557, %v2606
        %v2619 = vsub.f32 %v2562, %v2591
        %v2620 = vsub.f32 %v2565, %v2606
        %v2621 = vsub.f32 %v2570, %v2591
        %v2622 = vsub.f32 %v2573, %v2606
        %v2623 = vmul.f32 %v2607, 1.442695
        %v2624 = vpow.pop %v2623
        %v2625 = vmul.f32 %v2608, 1.442695
        %v2626 = vpow.pop %v2625
        %v2627 = vmul.f32 %v2609, 1.442695
        %v2628 = vpow.pop %v2627
        %v2629 = vmul.f32 %v2610, 1.442695
        %v2630 = vpow.pop %v2629
        %v2631 = vmul.f32 %v2611, 1.442695
        %v2632 = vpow.pop %v2631
        %v2633 = vmul.f32 %v2612, 1.442695
        %v2634 = vpow.pop %v2633
        %v2635 = vmul.f32 %v2613, 1.442695
        %v2636 = vpow.pop %v2635
        %v2637 = vmul.f32 %v2614, 1.442695
        %v2638 = vpow.pop %v2637
        %v2639 = vmul.f32 %v2615, 1.442695
        %v2640 = vpow.pop %v2639
        %v2641 = vmul.f32 %v2616, 1.442695
        %v2642 = vpow.pop %v2641
        %v2643 = vmul.f32 %v2617, 1.442695
        %v2644 = vpow.pop %v2643
        %v2645 = vmul.f32 %v2618, 1.442695
        %v2646 = vpow.pop %v2645
        %v2647 = vmul.f32 %v2619, 1.442695
        %v2648 = vpow.pop %v2647
        %v2649 = vmul.f32 %v2620, 1.442695
        %v2650 = vpow.pop %v2649
        %v2651 = vmul.f32 %v2621, 1.442695
        %v2652 = vpow.pop %v2651
        %v2653 = vmul.f32 %v2622, 1.442695
        %v2654 = vpow.pop %v2653
        %v2655 = vsel %vm2576, %v2624, 0.0
        %v2656 = vsel %vm2576, %v2628, 0.0
        %v2657 = vadd.f32 %v2655, %v2656
        %v2658 = vsel %vm2576, %v2632, 0.0
        %v2659 = vadd.f32 %v2657, %v2658
        %v2660 = vsel %vm2576, %v2636, 0.0
        %v2661 = vadd.f32 %v2659, %v2660
        %v2662 = vsel %vm2576, %v2640, 0.0
        %v2663 = vadd.f32 %v2661, %v2662
        %v2664 = vsel %vm2576, %v2644, 0.0
        %v2665 = vadd.f32 %v2663, %v2664
        %v2666 = vsel %vm2576, %v2648, 0.0
        %v2667 = vadd.f32 %v2665, %v2666
        %v2668 = vsel %vm2576, %v2652, 0.0
        %v2669 = vadd.f32 %v2667, %v2668
        %v2670 = vsel %vm2576, %v2626, 0.0
        %v2671 = vsel %vm2576, %v2630, 0.0
        %v2672 = vadd.f32 %v2670, %v2671
        %v2673 = vsel %vm2576, %v2634, 0.0
        %v2674 = vadd.f32 %v2672, %v2673
        %v2675 = vsel %vm2576, %v2638, 0.0
        %v2676 = vadd.f32 %v2674, %v2675
        %v2677 = vsel %vm2576, %v2642, 0.0
        %v2678 = vadd.f32 %v2676, %v2677
        %v2679 = vsel %vm2576, %v2646, 0.0
        %v2680 = vadd.f32 %v2678, %v2679
        %v2681 = vsel %vm2576, %v2650, 0.0
        %v2682 = vadd.f32 %v2680, %v2681
        %v2683 = vsel %vm2576, %v2654, 0.0
        %v2684 = vadd.f32 %v2682, %v2683
        %v2685 = vrcp.pop %v2669
        %v2686 = vrcp.pop %v2684
        %v2687 = vmul.f32 %v2624, %v2685
        %v2688 = vmul.f32 %v2626, %v2686
        %v2689 = vmul.f32 %v2628, %v2685
        %v2690 = vmul.f32 %v2630, %v2686
        %v2691 = vmul.f32 %v2632, %v2685
        %v2692 = vmul.f32 %v2634, %v2686
        %v2693 = vmul.f32 %v2636, %v2685
        %v2694 = vmul.f32 %v2638, %v2686
        %v2695 = vmul.f32 %v2640, %v2685
        %v2696 = vmul.f32 %v2642, %v2686
        %v2697 = vmul.f32 %v2644, %v2685
        %v2698 = vmul.f32 %v2646, %v2686
        %v2699 = vmul.f32 %v2648, %v2685
        %v2700 = vmul.f32 %v2650, %v2686
        %v2701 = vmul.f32 %v2652, %v2685
        %v2702 = vmul.f32 %v2654, %v2686
        %v2703 = vpack.c.bf16 %v2688, %v2687
        %v2704 = vpack.c.bf16 %v2690, %v2689
        %v2705 = vpack.c.bf16 %v2692, %v2691
        %v2706 = vpack.c.bf16 %v2694, %v2693
        %v2707 = vpack.c.bf16 %v2696, %v2695
        %v2708 = vpack.c.bf16 %v2698, %v2697
        %v2709 = vpack.c.bf16 %v2700, %v2699
        %v2710 = vpack.c.bf16 %v2702, %v2701
        %v2711 = vld [vmem:[#allocation22] sm:$0x3]
        %v2713 = vsel %vm2576, %v2703, 0
        %v2716 = vsel %vm2576, %v2704, 0
        %v2719 = vsel %vm2576, %v2705, 0
        %v2722 = vsel %vm2576, %v2706, 0
        %v2725 = vsel %vm2576, %v2707, 0
        %v2728 = vsel %vm2576, %v2708, 0
        %v2731 = vsel %vm2576, %v2709, 0
        %v2734 = vsel %vm2576, %v2710, 0
        %vm2736 = vcmask 1041408
        %v2738 = vsel %vm2736, %v2711, 0
        %2740 = vmatprep.subr.bf16.mxu0 0
        %2741 = vmatpush1.bf16.msra.mxu0 0
        %2742 = vmatprep.subr.bf16.mxu0 0
        %2743 = vmatpush1.bf16.msra.mxu0 0
        %2744 = vmatprep.subr.bf16.mxu0 0
        %2745 = vmatpush1.bf16.msra.mxu0 0
        %2746 = vmatprep.subr.bf16.mxu0 0
        %2747 = vmatpush1.bf16.msra.mxu0 0
        %2748 = vmatprep.subr.bf16.mxu0 0
        %2749 = vmatpush1.bf16.msra.mxu0 0
        %2750 = vmatprep.subr.bf16.mxu0 0
        %2751 = vmatpush1.bf16.msra.mxu0 0
        %2752 = vmatprep.subr.bf16.mxu0 0
        %2753 = vmatpush1.bf16.msra.mxu0 0
        %2754 = vmatprep.subr.bf16.mxu0 0
        %2755 = vmatpush1.bf16.msra.mxu0 %v2738
        %2756 = vmatprep.subr.bf16.mxu0 0
        %2757 = vmatpush2.bf16.msra.mxu0 0
        %2758 = vmatprep.subr.bf16.mxu0 0
        %2759 = vmatpush2.bf16.msra.mxu0 0
        %2760 = vmatprep.subr.bf16.mxu0 0
        %2761 = vmatpush2.bf16.msra.mxu0 0
        %2762 = vmatprep.subr.bf16.mxu0 0
        %2763 = vmatpush2.bf16.msra.mxu0 0
        %2764 = vmatprep.subr.bf16.mxu0 0
        %2765 = vmatpush2.bf16.msra.mxu0 0
        %2766 = vmatprep.subr.bf16.mxu0 0
        %2767 = vmatpush2.bf16.msra.mxu0 0
        %2768 = vmatprep.subr.bf16.mxu0 0
        %2769 = vmatpush2.bf16.msra.mxu0 0
        %2770 = vmatprep.subr.bf16.mxu0 0
        %2771 = vmatpush2.bf16.msra.mxu0 0
        %2772 = vmatprep.mubr.bf16.mxu0 0
        %2773 = vmatmul.mubr.bf16.gmra.mxu0 %v2713
        %v2774 = vpop.f32.mrf.mxu0
        %v2775 = vadd.f32 0.0, %v2774
        %v2776 = vpop.f32.mrf.mxu0
        %v2777 = vpop.f32.mrf.mxu0
        %v2778 = vadd.f32 0.0, %v2777
        %v2779 = vpop.f32.mrf.mxu0
        %2780 = vmatprep.mubr.bf16.mxu0 0
        %2781 = vmatmul.mubr.bf16.gmra.mxu0 %v2716
        %v2782 = vpop.f32.mrf.mxu0
        %v2783 = vadd.f32 0.0, %v2782
        %v2784 = vpop.f32.mrf.mxu0
        %v2785 = vpop.f32.mrf.mxu0
        %v2786 = vadd.f32 0.0, %v2785
        %v2787 = vpop.f32.mrf.mxu0
        %2788 = vmatprep.mubr.bf16.mxu0 0
        %2789 = vmatmul.mubr.bf16.gmra.mxu0 %v2719
        %v2790 = vpop.f32.mrf.mxu0
        %v2791 = vadd.f32 0.0, %v2790
        %v2792 = vpop.f32.mrf.mxu0
        %v2793 = vpop.f32.mrf.mxu0
        %v2794 = vadd.f32 0.0, %v2793
        %v2795 = vpop.f32.mrf.mxu0
        %2796 = vmatprep.mubr.bf16.mxu0 0
        %2797 = vmatmul.mubr.bf16.gmra.mxu0 %v2722
        %v2798 = vpop.f32.mrf.mxu0
        %v2799 = vadd.f32 0.0, %v2798
        %v2800 = vpop.f32.mrf.mxu0
        %v2801 = vpop.f32.mrf.mxu0
        %v2802 = vadd.f32 0.0, %v2801
        %v2803 = vpop.f32.mrf.mxu0
        %2804 = vmatprep.mubr.bf16.mxu0 0
        %2805 = vmatmul.mubr.bf16.gmra.mxu0 %v2725
        %v2806 = vpop.f32.mrf.mxu0
        %v2807 = vadd.f32 0.0, %v2806
        %v2808 = vpop.f32.mrf.mxu0
        %v2809 = vpop.f32.mrf.mxu0
        %v2810 = vadd.f32 0.0, %v2809
        %v2811 = vpop.f32.mrf.mxu0
        %2812 = vmatprep.mubr.bf16.mxu0 0
        %2813 = vmatmul.mubr.bf16.gmra.mxu0 %v2728
        %v2814 = vpop.f32.mrf.mxu0
        %v2815 = vadd.f32 0.0, %v2814
        %v2816 = vpop.f32.mrf.mxu0
        %v2817 = vpop.f32.mrf.mxu0
        %v2818 = vadd.f32 0.0, %v2817
        %v2819 = vpop.f32.mrf.mxu0
        %2820 = vmatprep.mubr.bf16.mxu0 0
        %2821 = vmatmul.mubr.bf16.gmra.mxu0 %v2731
        %v2822 = vpop.f32.mrf.mxu0
        %v2823 = vadd.f32 0.0, %v2822
        %v2824 = vpop.f32.mrf.mxu0
        %v2825 = vpop.f32.mrf.mxu0
        %v2826 = vadd.f32 0.0, %v2825
        %v2827 = vpop.f32.mrf.mxu0
        %2828 = vmatprep.mubr.bf16.mxu0 0
        %2829 = vmatmul.mubr.bf16.gmra.mxu0 %v2734
        %v2830 = vpop.f32.mrf.mxu0
        %v2831 = vadd.f32 0.0, %v2830
        %v2832 = vpop.f32.mrf.mxu0
        %v2833 = vpop.f32.mrf.mxu0
        %v2834 = vadd.f32 0.0, %v2833
        %v2835 = vpop.f32.mrf.mxu0
        %2836 = vdwg.mxu0
        %v2837 = vmul.f32 %v2775, %v2249
        %v2838 = vmul.f32 %v2778, %v2251
        %v2839 = vmul.f32 %v2783, %v2253
        %v2840 = vmul.f32 %v2786, %v2255
        %v2841 = vmul.f32 %v2791, %v2257
        %v2842 = vmul.f32 %v2794, %v2259
        %v2843 = vmul.f32 %v2799, %v2261
        %v2844 = vmul.f32 %v2802, %v2263
        %v2845 = vmul.f32 %v2807, %v2265
        %v2846 = vmul.f32 %v2810, %v2267
        %v2847 = vmul.f32 %v2815, %v2269
        %v2848 = vmul.f32 %v2818, %v2271
        %v2849 = vmul.f32 %v2823, %v2273
        %v2850 = vmul.f32 %v2826, %v2275
        %v2851 = vmul.f32 %v2831, %v2277
        %v2852 = vmul.f32 %v2834, %v2279
        %v2853 = vadd.f32 %v2837, %v2839
        %v2854 = vadd.f32 %v2853, %v2841
        %v2855 = vadd.f32 %v2854, %v2843
        %v2856 = vadd.f32 %v2855, %v2845
        %v2857 = vadd.f32 %v2856, %v2847
        %v2858 = vadd.f32 %v2857, %v2849
        %v2859 = vadd.f32 %v2858, %v2851
        %v2860 = vadd.f32 %v2838, %v2840
        %v2861 = vadd.f32 %v2860, %v2842
        %v2862 = vadd.f32 %v2861, %v2844
        %v2863 = vadd.f32 %v2862, %v2846
        %v2864 = vadd.f32 %v2863, %v2848
        %v2865 = vadd.f32 %v2864, %v2850
        %v2866 = vadd.f32 %v2865, %v2852
        %v2867 = vpack.c.bf16 %v2866, %v2859
        %v2868 = vld [vmem:[#allocation19] sm:$0xf]
        %v2869 = vld [vmem:[#allocation19 + $0x4] sm:$0xf]
        %v2870 = vld [vmem:[#allocation19 + $0x8] sm:$0xf]
        %v2871 = vld [vmem:[#allocation19 + $0xc] sm:$0xf]
        %v2872 = vld [vmem:[#allocation19 + $0x10] sm:$0xf]
        %v2873 = vld [vmem:[#allocation19 + $0x14] sm:$0xf]
        %v2874 = vld [vmem:[#allocation19 + $0x18] sm:$0xf]
        %v2875 = vld [vmem:[#allocation19 + $0x1c] sm:$0xf]
        %v2876 = vld [vmem:[#allocation19 + $0x20] sm:$0xf]
        %v2877 = vld [vmem:[#allocation19 + $0x24] sm:$0xf]
        %v2878 = vld [vmem:[#allocation19 + $0x28] sm:$0xf]
        %v2879 = vld [vmem:[#allocation19 + $0x2c] sm:$0xf]
        %v2880 = vld [vmem:[#allocation19 + $0x30] sm:$0xf]
        %v2881 = vld [vmem:[#allocation19 + $0x34] sm:$0xf]
        %v2882 = vld [vmem:[#allocation19 + $0x38] sm:$0xf]
        %v2883 = vld [vmem:[#allocation19 + $0x3c] sm:$0xf]
        %v2884 = vld [vmem:[%s14 + $0x1] sm:$0x1]
        %v2885 = vlaneseq
        %v2886 = vshrl.u32 %v2885, 7
        %v2887 = vsub.s32 0, %v2886
        %v2888 = vrot.slane %v2884, %v2887
        %v2905 = vunpack.c.l.b16 %v2868
        %v2906 = vunpack.c.l.b16 %v2869
        %v2907 = vunpack.c.l.b16 %v2870
        %v2908 = vunpack.c.l.b16 %v2871
        %v2909 = vunpack.c.l.b16 %v2872
        %v2910 = vunpack.c.l.b16 %v2873
        %v2911 = vunpack.c.l.b16 %v2874
        %v2912 = vunpack.c.l.b16 %v2875
        %v2913 = vunpack.c.l.b16 %v2876
        %v2914 = vunpack.c.l.b16 %v2877
        %v2915 = vunpack.c.l.b16 %v2878
        %v2916 = vunpack.c.l.b16 %v2879
        %v2917 = vunpack.c.l.b16 %v2880
        %v2918 = vunpack.c.l.b16 %v2881
        %v2919 = vunpack.c.l.b16 %v2882
        %v2920 = vunpack.c.l.b16 %v2883
        %v2921 = vpack.c.b16 %v2906, %v2905
        %v2922 = vpack.c.b16 %v2908, %v2907
        %v2923 = vpack.c.b16 %v2910, %v2909
        %v2924 = vpack.c.b16 %v2912, %v2911
        %v2925 = vpack.c.b16 %v2914, %v2913
        %v2926 = vpack.c.b16 %v2916, %v2915
        %v2927 = vpack.c.b16 %v2918, %v2917
        %v2928 = vpack.c.b16 %v2920, %v2919
        %2937 = vmatprep.subr.bf16.mxu0 0
        %2938 = vmatpush1.bf16.msra.mxu0 %v2928
        %2939 = vmatprep.subr.bf16.mxu0 0
        %2940 = vmatpush1.bf16.msra.mxu0 %v2927
        %2941 = vmatprep.subr.bf16.mxu0 0
        %2942 = vmatpush1.bf16.msra.mxu0 %v2926
        %2943 = vmatprep.subr.bf16.mxu0 0
        %2944 = vmatpush1.bf16.msra.mxu0 %v2925
        %2945 = vmatprep.subr.bf16.mxu0 0
        %2946 = vmatpush1.bf16.msra.mxu0 %v2924
        %2947 = vmatprep.subr.bf16.mxu0 0
        %2948 = vmatpush1.bf16.msra.mxu0 %v2923
        %2949 = vmatprep.subr.bf16.mxu0 0
        %2950 = vmatpush1.bf16.msra.mxu0 %v2922
        %2951 = vmatprep.subr.bf16.mxu0 0
        %2952 = vmatpush1.bf16.msra.mxu0 %v2921
        %2953 = vmatprep.subr.bf16.mxu0 0
        %2954 = vmatpush2.bf16.msra.mxu0 0
        %2955 = vmatprep.subr.bf16.mxu0 0
        %2956 = vmatpush2.bf16.msra.mxu0 0
        %2957 = vmatprep.subr.bf16.mxu0 0
        %2958 = vmatpush2.bf16.msra.mxu0 0
        %2959 = vmatprep.subr.bf16.mxu0 0
        %2960 = vmatpush2.bf16.msra.mxu0 0
        %2961 = vmatprep.subr.bf16.mxu0 0
        %2962 = vmatpush2.bf16.msra.mxu0 0
        %2963 = vmatprep.subr.bf16.mxu0 0
        %2964 = vmatpush2.bf16.msra.mxu0 0
        %2965 = vmatprep.subr.bf16.mxu0 0
        %2966 = vmatpush2.bf16.msra.mxu0 0
        %2967 = vmatprep.subr.bf16.mxu0 0
        %2968 = vmatpush2.bf16.msra.mxu0 0
        %2969 = vmatprep.mubr.bf16.mxu0 0
        %2970 = vmatmul.mubr.bf16.gmra.mxu0 %v2867
        %v2971 = vpop.f32.mrf.mxu0
        %v2972 = vadd.f32 %v2888, %v2971
        %v2973 = vpop.f32.mrf.mxu0
        %v2974 = vpop.f32.mrf.mxu0
        %v2975 = vadd.f32 %v2888, %v2974
        %v2976 = vpop.f32.mrf.mxu0
        %2977 = vdwg.mxu0
        %vm2978 = vcmp.gt.f32.partialorder %v2972, 0.0
        %vm2979 = vcmp.gt.f32.partialorder %v2975, 0.0
        %v2980 = vmin.f32 %v2972, 0.0
        %v2981 = vmin.f32 %v2975, 0.0
        %v2982 = vmul.f32 %v2980, 1.442695
        %v2983 = vpow.pop %v2982
        %v2984 = vmul.f32 %v2981, 1.442695
        %v2985 = vpow.pop %v2984
        %v2986 = vsub.f32 %v2983, 1.0
        %v2987 = vsub.f32 %v2985, 1.0
        %v2988 = vsel %vm2978, %v2972, %v2986
        %v2989 = vsel %vm2979, %v2975, %v2987
        %v2990 = vpack.c.bf16 %v2989, %v2988
        %v2991 = vld [vmem:[#allocation20] sm:$0xff]
        %v2992 = vld [vmem:[#allocation20 + $0x8] sm:$0xff]
        %v2993 = vld [vmem:[#allocation20 + $0x10] sm:$0xff]
        %v2994 = vld [vmem:[#allocation20 + $0x18] sm:$0xff]
        %v2995 = vld [vmem:[#allocation20 + $0x20] sm:$0xff]
        %v2996 = vld [vmem:[#allocation20 + $0x28] sm:$0xff]
        %v2997 = vld [vmem:[#allocation20 + $0x30] sm:$0xff]
        %v2998 = vld [vmem:[#allocation20 + $0x38] sm:$0xff]
        %v2999 = vld [vmem:[#allocation20 + $0x40] sm:$0xff]
        %v3000 = vld [vmem:[#allocation20 + $0x48] sm:$0xff]
        %v3001 = vld [vmem:[#allocation20 + $0x50] sm:$0xff]
        %v3002 = vld [vmem:[#allocation20 + $0x58] sm:$0xff]
        %v3003 = vld [vmem:[#allocation20 + $0x60] sm:$0xff]
        %v3004 = vld [vmem:[#allocation20 + $0x68] sm:$0xff]
        %v3005 = vld [vmem:[#allocation20 + $0x70] sm:$0xff]
        %v3006 = vld [vmem:[#allocation20 + $0x78] sm:$0xff]
        %v3007 = vld [vmem:[#allocation20 + $0x80] sm:$0xff]
        %v3008 = vld [vmem:[#allocation20 + $0x88] sm:$0xff]
        %v3009 = vld [vmem:[#allocation20 + $0x90] sm:$0xff]
        %v3010 = vld [vmem:[#allocation20 + $0x98] sm:$0xff]
        %v3011 = vld [vmem:[#allocation20 + $0xa0] sm:$0xff]
        %v3012 = vld [vmem:[#allocation20 + $0xa8] sm:$0xff]
        %v3013 = vld [vmem:[#allocation20 + $0xb0] sm:$0xff]
        %v3014 = vld [vmem:[#allocation20 + $0xb8] sm:$0xff]
        %v3015 = vld [vmem:[#allocation20 + $0xc0] sm:$0xff]
        %v3016 = vld [vmem:[#allocation20 + $0xc8] sm:$0xff]
        %v3017 = vld [vmem:[#allocation20 + $0xd0] sm:$0xff]
        %v3018 = vld [vmem:[#allocation20 + $0xd8] sm:$0xff]
        %v3019 = vld [vmem:[#allocation20 + $0xe0] sm:$0xff]
        %v3020 = vld [vmem:[#allocation20 + $0xe8] sm:$0xff]
        %v3021 = vld [vmem:[#allocation20 + $0xf0] sm:$0xff]
        %v3022 = vld [vmem:[#allocation20 + $0xf8] sm:$0xff]
        %v3055 = vunpack.c.l.b16 %v2991
        %v3056 = vunpack.c.h.b16 %v2991
        %v3057 = vunpack.c.l.b16 %v2992
        %v3058 = vunpack.c.h.b16 %v2992
        %v3059 = vunpack.c.l.b16 %v2993
        %v3060 = vunpack.c.h.b16 %v2993
        %v3061 = vunpack.c.l.b16 %v2994
        %v3062 = vunpack.c.h.b16 %v2994
        %v3063 = vunpack.c.l.b16 %v2995
        %v3064 = vunpack.c.h.b16 %v2995
        %v3065 = vunpack.c.l.b16 %v2996
        %v3066 = vunpack.c.h.b16 %v2996
        %v3067 = vunpack.c.l.b16 %v2997
        %v3068 = vunpack.c.h.b16 %v2997
        %v3069 = vunpack.c.l.b16 %v2998
        %v3070 = vunpack.c.h.b16 %v2998
        %v3071 = vunpack.c.l.b16 %v2999
        %v3072 = vunpack.c.h.b16 %v2999
        %v3073 = vunpack.c.l.b16 %v3000
        %v3074 = vunpack.c.h.b16 %v3000
        %v3075 = vunpack.c.l.b16 %v3001
        %v3076 = vunpack.c.h.b16 %v3001
        %v3077 = vunpack.c.l.b16 %v3002
        %v3078 = vunpack.c.h.b16 %v3002
        %v3079 = vunpack.c.l.b16 %v3003
        %v3080 = vunpack.c.h.b16 %v3003
        %v3081 = vunpack.c.l.b16 %v3004
        %v3082 = vunpack.c.h.b16 %v3004
        %v3083 = vunpack.c.l.b16 %v3005
        %v3084 = vunpack.c.h.b16 %v3005
        %v3085 = vunpack.c.l.b16 %v3006
        %v3086 = vunpack.c.h.b16 %v3006
        %v3087 = vunpack.c.l.b16 %v3007
        %v3088 = vunpack.c.h.b16 %v3007
        %v3089 = vunpack.c.l.b16 %v3008
        %v3090 = vunpack.c.h.b16 %v3008
        %v3091 = vunpack.c.l.b16 %v3009
        %v3092 = vunpack.c.h.b16 %v3009
        %v3093 = vunpack.c.l.b16 %v3010
        %v3094 = vunpack.c.h.b16 %v3010
        %v3095 = vunpack.c.l.b16 %v3011
        %v3096 = vunpack.c.h.b16 %v3011
        %v3097 = vunpack.c.l.b16 %v3012
        %v3098 = vunpack.c.h.b16 %v3012
        %v3099 = vunpack.c.l.b16 %v3013
        %v3100 = vunpack.c.h.b16 %v3013
        %v3101 = vunpack.c.l.b16 %v3014
        %v3102 = vunpack.c.h.b16 %v3014
        %v3103 = vunpack.c.l.b16 %v3015
        %v3104 = vunpack.c.h.b16 %v3015
        %v3105 = vunpack.c.l.b16 %v3016
        %v3106 = vunpack.c.h.b16 %v3016
        %v3107 = vunpack.c.l.b16 %v3017
        %v3108 = vunpack.c.h.b16 %v3017
        %v3109 = vunpack.c.l.b16 %v3018
        %v3110 = vunpack.c.h.b16 %v3018
        %v3111 = vunpack.c.l.b16 %v3019
        %v3112 = vunpack.c.h.b16 %v3019
        %v3113 = vunpack.c.l.b16 %v3020
        %v3114 = vunpack.c.h.b16 %v3020
        %v3115 = vunpack.c.l.b16 %v3021
        %v3116 = vunpack.c.h.b16 %v3021
        %v3117 = vunpack.c.l.b16 %v3022
        %v3118 = vunpack.c.h.b16 %v3022
        %v3119 = vpack.c.b16 %v3059, %v3055
        %v3120 = vpack.c.b16 %v3060, %v3056
        %v3121 = vpack.c.b16 %v3061, %v3057
        %v3122 = vpack.c.b16 %v3062, %v3058
        %v3123 = vpack.c.b16 %v3067, %v3063
        %v3124 = vpack.c.b16 %v3068, %v3064
        %v3125 = vpack.c.b16 %v3069, %v3065
        %v3126 = vpack.c.b16 %v3070, %v3066
        %v3127 = vpack.c.b16 %v3075, %v3071
        %v3128 = vpack.c.b16 %v3076, %v3072
        %v3129 = vpack.c.b16 %v3077, %v3073
        %v3130 = vpack.c.b16 %v3078, %v3074
        %v3131 = vpack.c.b16 %v3083, %v3079
        %v3132 = vpack.c.b16 %v3084, %v3080
        %v3133 = vpack.c.b16 %v3085, %v3081
        %v3134 = vpack.c.b16 %v3086, %v3082
        %v3135 = vpack.c.b16 %v3091, %v3087
        %v3136 = vpack.c.b16 %v3092, %v3088
        %v3137 = vpack.c.b16 %v3093, %v3089
        %v3138 = vpack.c.b16 %v3094, %v3090
        %v3139 = vpack.c.b16 %v3099, %v3095
        %v3140 = vpack.c.b16 %v3100, %v3096
        %v3141 = vpack.c.b16 %v3101, %v3097
        %v3142 = vpack.c.b16 %v3102, %v3098
        %v3143 = vpack.c.b16 %v3107, %v3103
        %v3144 = vpack.c.b16 %v3108, %v3104
        %v3145 = vpack.c.b16 %v3109, %v3105
        %v3146 = vpack.c.b16 %v3110, %v3106
        %v3147 = vpack.c.b16 %v3115, %v3111
        %v3148 = vpack.c.b16 %v3116, %v3112
        %v3149 = vpack.c.b16 %v3117, %v3113
        %v3150 = vpack.c.b16 %v3118, %v3114
        %3183 = vmatprep.subr.bf16.mxu0 %v3148
        %3184 = vmatpush1.bf16.msra.mxu0 %v3147
        %3185 = vmatprep.subr.bf16.mxu0 %v3144
        %3186 = vmatpush1.bf16.msra.mxu0 %v3143
        %3187 = vmatprep.subr.bf16.mxu0 %v3140
        %3188 = vmatpush1.bf16.msra.mxu0 %v3139
        %3189 = vmatprep.subr.bf16.mxu0 %v3136
        %3190 = vmatpush1.bf16.msra.mxu0 %v3135
        %3191 = vmatprep.subr.bf16.mxu0 %v3132
        %3192 = vmatpush1.bf16.msra.mxu0 %v3131
        %3193 = vmatprep.subr.bf16.mxu0 %v3128
        %3194 = vmatpush1.bf16.msra.mxu0 %v3127
        %3195 = vmatprep.subr.bf16.mxu0 %v3124
        %3196 = vmatpush1.bf16.msra.mxu0 %v3123
        %3197 = vmatprep.subr.bf16.mxu0 %v3120
        %3198 = vmatpush1.bf16.msra.mxu0 %v3119
        %3199 = vmatprep.subr.bf16.mxu0 0
        %3200 = vmatpush2.bf16.msra.mxu0 0
        %3201 = vmatprep.subr.bf16.mxu0 0
        %3202 = vmatpush2.bf16.msra.mxu0 0
        %3203 = vmatprep.subr.bf16.mxu0 0
        %3204 = vmatpush2.bf16.msra.mxu0 0
        %3205 = vmatprep.subr.bf16.mxu0 0
        %3206 = vmatpush2.bf16.msra.mxu0 0
        %3207 = vmatprep.subr.bf16.mxu0 0
        %3208 = vmatpush2.bf16.msra.mxu0 0
        %3209 = vmatprep.subr.bf16.mxu0 0
        %3210 = vmatpush2.bf16.msra.mxu0 0
        %3211 = vmatprep.subr.bf16.mxu0 0
        %3212 = vmatpush2.bf16.msra.mxu0 0
        %3213 = vmatprep.subr.bf16.mxu0 0
        %3214 = vmatpush2.bf16.msra.mxu0 0
        %3215 = vmatprep.mubr.bf16.mxu0 0
        %3216 = vmatmul.mubr.bf16.gmra.mxu0 %v2990
        %v3217 = vpop.f32.mrf.mxu0
        %v3218 = vadd.f32 0.0, %v3217
        %v3219 = vpop.f32.mrf.mxu0
        %v3220 = vadd.f32 0.0, %v3219
        %v3221 = vpop.f32.mrf.mxu0
        %v3222 = vadd.f32 0.0, %v3221
        %v3223 = vpop.f32.mrf.mxu0
        %v3224 = vadd.f32 0.0, %v3223
        %3225 = vdwg.mxu0
        %3226 = vmatprep.subr.bf16.mxu0 %v3150
        %3227 = vmatpush1.bf16.msra.mxu0 %v3149
        %3228 = vmatprep.subr.bf16.mxu0 %v3146
        %3229 = vmatpush1.bf16.msra.mxu0 %v3145
        %3230 = vmatprep.subr.bf16.mxu0 %v3142
        %3231 = vmatpush1.bf16.msra.mxu0 %v3141
        %3232 = vmatprep.subr.bf16.mxu0 %v3138
        %3233 = vmatpush1.bf16.msra.mxu0 %v3137
        %3234 = vmatprep.subr.bf16.mxu0 %v3134
        %3235 = vmatpush1.bf16.msra.mxu0 %v3133
        %3236 = vmatprep.subr.bf16.mxu0 %v3130
        %3237 = vmatpush1.bf16.msra.mxu0 %v3129
        %3238 = vmatprep.subr.bf16.mxu0 %v3126
        %3239 = vmatpush1.bf16.msra.mxu0 %v3125
        %3240 = vmatprep.subr.bf16.mxu0 %v3122
        %3241 = vmatpush1.bf16.msra.mxu0 %v3121
        %3242 = vmatprep.subr.bf16.mxu0 0
        %3243 = vmatpush2.bf16.msra.mxu0 0
        %3244 = vmatprep.subr.bf16.mxu0 0
        %3245 = vmatpush2.bf16.msra.mxu0 0
        %3246 = vmatprep.subr.bf16.mxu0 0
        %3247 = vmatpush2.bf16.msra.mxu0 0
        %3248 = vmatprep.subr.bf16.mxu0 0
        %3249 = vmatpush2.bf16.msra.mxu0 0
        %3250 = vmatprep.subr.bf16.mxu0 0
        %3251 = vmatpush2.bf16.msra.mxu0 0
        %3252 = vmatprep.subr.bf16.mxu0 0
        %3253 = vmatpush2.bf16.msra.mxu0 0
        %3254 = vmatprep.subr.bf16.mxu0 0
        %3255 = vmatpush2.bf16.msra.mxu0 0
        %3256 = vmatprep.subr.bf16.mxu0 0
        %3257 = vmatpush2.bf16.msra.mxu0 0
        %3258 = vmatprep.mubr.bf16.mxu0 0
        %3259 = vmatmul.mubr.bf16.gmra.mxu0 %v2990
        %v3260 = vpop.f32.mrf.mxu0
        %v3261 = vadd.f32 0.0, %v3260
        %v3262 = vpop.f32.mrf.mxu0
        %v3263 = vadd.f32 0.0, %v3262
        %v3264 = vpop.f32.mrf.mxu0
        %v3265 = vadd.f32 0.0, %v3264
        %v3266 = vpop.f32.mrf.mxu0
        %v3267 = vadd.f32 0.0, %v3266
        %3268 = vdwg.mxu0
        %v3269 = vadd.f32 %v1644, %v3218
        %v3270 = vadd.f32 %v1645, %v3220
        %v3271 = vadd.f32 %v1646, %v3261
        %v3272 = vadd.f32 %v1647, %v3263
        %v3273 = vadd.f32 %v1649, %v3222
        %v3274 = vadd.f32 %v1650, %v3224
        %v3275 = vadd.f32 %v1651, %v3265
        %v3276 = vadd.f32 %v1652, %v3267
        %v3277 = vtanh.pop %v3269
        %v3278 = vtanh.pop %v3273
        %v3279 = vxor.u32 %v3270, 2147483648
        %v3280 = vxor.u32 %v3271, 2147483648
        %v3281 = vxor.u32 %v3272, 2147483648
        %v3282 = vxor.u32 %v3274, 2147483648
        %v3283 = vxor.u32 %v3275, 2147483648
        %v3284 = vxor.u32 %v3276, 2147483648
        %v3285 = vmul.f32 %v3279, 1.442695
        %v3286 = vpow.pop %v3285
        %v3287 = vmul.f32 %v3280, 1.442695
        %v3288 = vpow.pop %v3287
        %v3289 = vmul.f32 %v3281, 1.442695
        %v3290 = vpow.pop %v3289
        %v3291 = vmul.f32 %v3282, 1.442695
        %v3292 = vpow.pop %v3291
        %v3293 = vmul.f32 %v3283, 1.442695
        %v3294 = vpow.pop %v3293
        %v3295 = vmul.f32 %v3284, 1.442695
        %v3296 = vpow.pop %v3295
        %v3297 = vadd.f32 %v3286, 1.0
        %v3298 = vadd.f32 %v3288, 1.0
        %v3299 = vadd.f32 %v3290, 1.0
        %v3300 = vadd.f32 %v3292, 1.0
        %v3301 = vadd.f32 %v3294, 1.0
        %v3302 = vadd.f32 %v3296, 1.0
        %v3303 = vrcp.pop %v3297
        %v3304 = vmul.f32 1.0, %v3303
        %v3305 = vrcp.pop %v3298
        %v3306 = vmul.f32 1.0, %v3305
        %v3307 = vrcp.pop %v3299
        %v3308 = vmul.f32 1.0, %v3307
        %v3309 = vrcp.pop %v3300
        %v3310 = vmul.f32 1.0, %v3309
        %v3311 = vrcp.pop %v3301
        %v3312 = vmul.f32 1.0, %v3311
        %v3313 = vrcp.pop %v3302
        %v3314 = vmul.f32 1.0, %v3313
        %v3315 = vld [vmem:[%s14 + $0x2] sm:$0x1]
        %v3316 = vmul.f32 %v3277, %v3306
        %v3317 = vmul.f32 %v3278, %v3312
        %v3318 = vmul.f32 %v823, %v3304
        %v3319 = vmul.f32 %v824, %v3310
        %v3320 = vadd.f32 %v3316, %v3318
        %v3321 = vadd.f32 %v3317, %v3319
        %v3322 = vlaneseq
        %v3323 = vshrl.u32 %v3322, 7
        %v3324 = vsub.s32 0, %v3323
        %v3325 = vrot.slane %v3315, %v3324
        %v3326 = vmul.f32 %v3325, %v3320
        %v3327 = vmul.f32 %v3325, %v3321
        %v3328 = vld [vmem:[%s14 + $0x3] sm:$0x1]
        %v3329 = vlaneseq
        %v3330 = vshrl.u32 %v3329, 7
        %v3331 = vsub.s32 0, %v3330
        %v3332 = vrot.slane %v3328, %v3331
        %v3333 = vadd.f32 %v3326, %v3332
        %v3334 = vadd.f32 %v3327, %v3332
        %v3335 = vld [vmem:[%s14 + $0x4] sm:$0x1]
        %vm3336 = vcmp.gt.f32.partialorder %v3333, 0.0
        %vm3337 = vcmp.gt.f32.partialorder %v3334, 0.0
        %v3338 = vmin.f32 %v3333, 0.0
        %v3339 = vmin.f32 %v3334, 0.0
        %v3340 = vmul.f32 %v3338, 1.442695
        %v3341 = vpow.pop %v3340
        %v3342 = vmul.f32 %v3339, 1.442695
        %v3343 = vpow.pop %v3342
        %v3344 = vsub.f32 %v3341, 1.0
        %v3345 = vsub.f32 %v3343, 1.0
        %v3346 = vsel %vm3336, %v3333, %v3344
        %v3347 = vsel %vm3337, %v3334, %v3345
        %v3348 = vmul.f32 %v3308, %v3346
        %v3349 = vmul.f32 %v3314, %v3347
        %v3350 = vlaneseq
        %v3351 = vshrl.u32 %v3350, 7
        %v3352 = vsub.s32 0, %v3351
        %v3353 = vrot.slane %v3335, %v3352
        %v3354 = vmul.f32 %v3353, %v3348
        %v3355 = vmul.f32 %v3353, %v3349
        %v3356 = vld [vmem:[%s14 + $0x5] sm:$0x1]
        %v3357 = vlaneseq
        %v3358 = vshrl.u32 %v3357, 7
        %v3359 = vsub.s32 0, %v3358
        %v3360 = vrot.slane %v3356, %v3359
        %v3361 = vadd.f32 %v3354, %v3360
        %v3362 = vadd.f32 %v3355, %v3360
        %3363 = vst [vmem:[#allocation2] sm:$0xff] %v3361
        %3364 = vst [vmem:[#allocation2 + $0x8] sm:$0xff] %v3362
        %3365 = vst [vmem:[#allocation3] sm:$0xff] %v3333
        %3366 = vst [vmem:[#allocation3 + $0x8] sm:$0xff] %v3334
        %v3367 = vpack.c.bf16 %v3334, %v3333
        %3368 = vst [vmem:[#allocation4] sm:$0xf] %v829
        %3369 = vst [vmem:[#allocation4 + $0x4] sm:$0xf] %v830
        %3370 = vst [vmem:[#allocation4 + $0x8] sm:$0xf] %v831
        %3371 = vst [vmem:[#allocation4 + $0xc] sm:$0xf] %v832
        %3372 = vst [vmem:[#allocation4 + $0x10] sm:$0xf] %v833
        %3373 = vst [vmem:[#allocation4 + $0x14] sm:$0xf] %v834
        %3374 = vst [vmem:[#allocation4 + $0x18] sm:$0xf] %v835
        %3375 = vst [vmem:[#allocation4 + $0x1c] sm:$0xf] %v836
        %3376 = vst [vmem:[#allocation4 + $0x20] sm:$0xf] %v837
        %3377 = vst [vmem:[#allocation4 + $0x24] sm:$0xf] %v838
        %3378 = vst [vmem:[#allocation4 + $0x28] sm:$0xf] %v839
        %3379 = vst [vmem:[#allocation4 + $0x2c] sm:$0xf] %v840
        %3380 = vst [vmem:[#allocation4 + $0x30] sm:$0xf] %v841
        %3381 = vst [vmem:[#allocation4 + $0x34] sm:$0xf] %v842
        %v3383 = vunpack.c.l.b16 %v3367
        %v3384 = vunpack.c.h.b16 %v3367
        %v3385 = vpack.c.b16 %v3383, %v3383
        %v3386 = vpack.c.b16 %v3384, %v3384
        %s3389 = scalar_lea.vmem [#allocation4], 56
        %3390 = vst [vmem:[%s3389] sm:$0xf] %v3385
        %3391 = vst [vmem:[%s3389 + $0x4] sm:$0xf] %v3386
        %3392 = vst [vmem:[%s759] sm:$0xff] %v3361
        %3393 = vst [vmem:[%s759 + $0x8] sm:$0xff] %v3362
        %p3394 = scmp.eq.s32.totalorder %s46, 11
        // Predicated region
        $region129: #{tpu_custom_call.1} parent=79 // pred_check
          %p3395 = pneg %p3394
        $region130: #{tpu_custom_call.1} parent=79 // pred_check_branch
          %3397 = sbr.rel (%p3395) target = $region132
        $region131: #{tpu_custom_call.1} parent=79 // pred_region
          %3398 = vst [vmem:[#allocation24] sm:$0xff] %v3361
          %3399 = vst [vmem:[#allocation24 + $0x8] sm:$0xff] %v3362
          %s3400 = scalar_lea.vmem [#allocation24], 16
          %3401 = vst [vmem:[%s3400] sm:$0xff] %v3333
          %3402 = vst [vmem:[%s3400 + $0x8] sm:$0xff] %v3334
          %3403 = vst [vmem:[#allocation26] sm:$0xf] %v829
          %3404 = vst [vmem:[#allocation26 + $0x4] sm:$0xf] %v830
          %3405 = vst [vmem:[#allocation26 + $0x8] sm:$0xf] %v831
          %3406 = vst [vmem:[#allocation26 + $0xc] sm:$0xf] %v832
          %3407 = vst [vmem:[#allocation26 + $0x10] sm:$0xf] %v833
          %3408 = vst [vmem:[#allocation26 + $0x14] sm:$0xf] %v834
          %3409 = vst [vmem:[#allocation26 + $0x18] sm:$0xf] %v835
          %3410 = vst [vmem:[#allocation26 + $0x1c] sm:$0xf] %v836
          %3411 = vst [vmem:[#allocation26 + $0x20] sm:$0xf] %v837
          %3412 = vst [vmem:[#allocation26 + $0x24] sm:$0xf] %v838
          %3413 = vst [vmem:[#allocation26 + $0x28] sm:$0xf] %v839
          %3414 = vst [vmem:[#allocation26 + $0x2c] sm:$0xf] %v840
          %3415 = vst [vmem:[#allocation26 + $0x30] sm:$0xf] %v841
          %3416 = vst [vmem:[#allocation26 + $0x34] sm:$0xf] %v842
          %s3417 = scalar_lea.vmem [#allocation26], 56
          %3418 = vst [vmem:[%s3417] sm:$0xf] %v3385
          %3419 = vst [vmem:[%s3417 + $0x4] sm:$0xf] %v3386
        $region132: #{tpu_custom_call.1} parent=79 // pred_fallthru
          _
        %s3420 = sand.u32 %s400, 1
        %s3421 = scalar_lea.sflag [#allocation7], %s3420
        %s3422 = sand.u32 %s400, 1
        %s3423 = smul.addr %s3422, 16
        %s3424 = scalar_lea.vmem [#allocation23], %s3423
        // Predicated region
        $region133: #{tpu_custom_call.1} parent=79 // pred_check
          %p3425 = pneg %p410
        $region134: #{tpu_custom_call.1} parent=79 // pred_check_branch
          %3427 = sbr.rel (%p3425) target = $region136
        $region135: #{tpu_custom_call.1} parent=79 // pred_region
          %s3428 = smul.u32 2, %s45
          %s3430 = ssub.s32 256, 256
          %3431 = vsyncadd %s3421, %s3430
          %s3432 = smul.addr %s46, 2
          %s3433 = sadd.s32 %s3428, %s3432
          %s3434 = smul.addr %s3433, 128
          %s3435 = scalar_lea.hbm %s15, %s3434
          %s3436 = sshll.u32 %s3424, 4
          %s3437 = int_to_ptr.vmem [resolvable:$true] %s3436
          %3442 = dma.vmem_to_hbm [thread:$0]  %s3437, 256, %s3435, %s3421, 128, 128, 8
        $region136: #{tpu_custom_call.1} parent=79 // pred_fallthru
          _
        // Predicated region
        $region137: #{tpu_custom_call.1} parent=79 // pred_check
          %p3443 = pneg %p436
        $region138: #{tpu_custom_call.1} parent=79 // pred_check_branch
          %3445 = sbr.rel (%p3443) target = $region140
        $region139: #{tpu_custom_call.1} parent=79 // pred_region
          %s3446 = smul.u32 2, %s45
          %s3448 = ssub.s32 512, 512
          %3449 = vsyncadd [#allocation25], %s3448
          %s3450 = smul.addr %s3446, 128
          %s3451 = scalar_lea.hbm %s16, %s3450
          %s3452 = sshll.u32 [#allocation24], 4
          %s3453 = int_to_ptr.vmem [resolvable:$true] %s3452
          %3458 = dma.vmem_to_hbm [thread:$0]  %s3453, 512, %s3451, [#allocation25], 128, 128, 8
        $region140: #{tpu_custom_call.1} parent=79 // pred_fallthru
          _
        // Predicated region
        $region141: #{tpu_custom_call.1} parent=79 // pred_check
          %p3459 = pneg %p462
        $region142: #{tpu_custom_call.1} parent=79 // pred_check_branch
          %3461 = sbr.rel (%p3459) target = $region144
        $region143: #{tpu_custom_call.1} parent=79 // pred_region
          %s3462 = smul.u32 2, %s45
          %s3464 = ssub.s32 1024, 1024
          %3465 = vsyncadd [#allocation25], %s3464
          %s3466 = smul.addr %s3462, 64
          %s3467 = scalar_lea.hbm %s17, %s3466
          %s3468 = sshll.u32 [#allocation26], 4
          %s3469 = int_to_ptr.vmem [resolvable:$true] %s3468
          %3474 = dma.vmem_to_hbm [thread:$0]  %s3469, 1024, %s3467, [#allocation25], 64, 64, 4
        $region144: #{tpu_custom_call.1} parent=79 // pred_fallthru
          _
        // Predicated region
        $region145: #{tpu_custom_call.1} parent=79 // pred_check
          %p3475 = pneg %p436
        $region146: #{tpu_custom_call.1} parent=79 // pred_check_branch
          %3477 = sbr.rel (%p3475) target = $region148
        $region147: #{tpu_custom_call.1} parent=79 // pred_region
          %3478 = dma.done [#allocation25], 512
        $region148: #{tpu_custom_call.1} parent=79 // pred_fallthru
          _
        // Predicated region
        $region149: #{tpu_custom_call.1} parent=79 // pred_check
          %p3479 = pneg %p462
        $region150: #{tpu_custom_call.1} parent=79 // pred_check_branch
          %3481 = sbr.rel (%p3479) target = $region152
        $region151: #{tpu_custom_call.1} parent=79 // pred_region
          %3482 = dma.done [#allocation25], 1024
        $region152: #{tpu_custom_call.1} parent=79 // pred_fallthru
          _
      $region80: #{tpu_custom_call.1} parent=5 // pred_fallthru
        _
      %p3483 = scmp.le.s32.totalorder 2, %s36
      // Predicated region
      $region153: #{tpu_custom_call.1} parent=5 // pred_check
        %p3484 = pneg %p3483
      $region154: #{tpu_custom_call.1} parent=5 // pred_check_branch
        %3486 = sbr.rel (%p3484) target = $region156
      $region155: #{tpu_custom_call.1} parent=5 // pred_region
        %s3487 = ssub.s32 %s36, 2
        // Predicated region
        $region157: #{tpu_custom_call.1} parent=155 // pred_check
          %p3488 = pneg %p416
        $region158: #{tpu_custom_call.1} parent=155 // pred_check_branch
          %3490 = sbr.rel (%p3488) target = $region160
        $region159: #{tpu_custom_call.1} parent=155 // pred_region
          %s3491 = sand.u32 %s401, 1
          %s3492 = scalar_lea.sflag [#allocation7], %s3491
          %s3493 = sand.u32 %s401, 1
          %s3494 = smul.addr %s3493, 16
          %s3495 = scalar_lea.vmem [#allocation23], %s3494
          %3496 = dma.done %s3492, 256
        $region160: #{tpu_custom_call.1} parent=155 // pred_fallthru
          _
      $region156: #{tpu_custom_call.1} parent=5 // pred_fallthru
        _
    $region6: #{tpu_custom_call.1} parent=1 // loop_footer
      %s40 = sadd.s32 1, %s36
    $region7: #{tpu_custom_call.1} parent=1 // loop_footer_branch
      %35 = sbr.rel target = $region3
    $region8: #{tpu_custom_call.1} parent=1 // loop_exit
      _
    %3497 = vsyncpa [#allocation6], 1
    %s3498 = scalar_lea.sflag [#allocation6], 1
    %3499 = vsyncpa %s3498, 1
    %3500 = vsyncpa [#allocation9], 1
    %3501 = vsyncpa [#allocation12], 1
    %3502 = vsyncpa [#allocation15], 1
    %3503 = vsyncpa [#allocation18], 1
    %3504 = vsyncpa [#allocation21], 1
    %3505 = vsyncpa [#allocation7], 1
    %s3506 = scalar_lea.sflag [#allocation7], 1
    %3507 = vsyncpa %s3506, 1
    %3508 = vsyncpa [#allocation25], 1

</llo_original>
